<compile_context>
chip_gen: v7x
topology: tpu7x:2x2x1
jax: 0.10.0
libtpu: 0.0.40
codegen_flags: <defaults>
</compile_context>

<pallas_src>
import math
import numpy as np
import jax
import jax.numpy as jnp
from jax import lax
from jax.experimental import pallas as pl
from jax.experimental.pallas import tpu as pltpu

# ---------------- model hyper-params (small but consistent with the module) ----
T = 128            # sequence length (batch = 1)
DIM = 256          # model dim
NUM_HEADS = 2
HEAD_DIM = 128     # hard-coded in CausalSelfAttention
HDIM = NUM_HEADS * HEAD_DIM          # 256
MLP_HDIM = 4 * DIM                   # 1024
ATTN_SCALE = 0.12
RMS_EPS = 1.1920929e-07              # torch.finfo(float32).eps (F.rms_norm default)
NEG_INF = -1e30


def _rms_norm(v):
    ms = jnp.mean(v * v, axis=-1, keepdims=True)
    return v * lax.rsqrt(ms + RMS_EPS)


def block_kernel(blam_ref, alam_ref,                 # SMEM scalars (2,) each
                 x_ref, x0_ref, ve_ref,              # (T, DIM), (T, DIM), (T, HDIM) f32
                 qkv_wT_ref,                         # (DIM, 3*HDIM)  bf16, pre-transposed
                 attn_projT_ref,                     # (HDIM, DIM)    bf16, pre-transposed
                 fc_wT_hbm,                          # (DIM, MLP_HDIM)   bf16, HBM
                 mlp_projT_hbm,                      # (MLP_HDIM, DIM)   bf16, HBM
                 cos2_ref, sin2_ref,                 # (T, HEAD_DIM) f32: [cos,cos] / [sin,-sin]
                 mask_ref,                           # (T, T) f32 additive causal mask
                 out_ref,                            # (T, DIM) f32
                 fc_buf, mlp_buf, dma_sem):          # scratch: VMEM bf16 x2, DMA sems (2,)
    # Start MLP-weight DMA (HBM -> VMEM) immediately; it hides behind attention.
    fc_cp = pltpu.make_async_copy(fc_wT_hbm, fc_buf, dma_sem.at[0])
    mlp_cp = pltpu.make_async_copy(mlp_projT_hbm, mlp_buf, dma_sem.at[1])
    fc_cp.start()
    mlp_cp.start()

    l0, l1 = blam_ref[0], blam_ref[1]
    la0, la1 = alam_ref[0], alam_ref[1]

    # residual mix: x = lambdas[0]*x + lambdas[1]*x0
    x = l0 * x_ref[...] + l1 * x0_ref[...]

    # ---------------- attention branch ----------------
    xn = _rms_norm(x)
    qkv = jnp.dot(xn.astype(jnp.bfloat16), qkv_wT_ref[...],
                  preferred_element_type=jnp.float32)          # (T, 3*HDIM) f32

    cos2 = cos2_ref[...]
    sin2 = sin2_ref[...]
    mask = mask_ref[...]
    w_proj = attn_projT_ref[...]                               # (HDIM, DIM) bf16
    # TODO(synk): FlexAttention BlockMask generality (doc / sliding-window masks)
    # is not replicated; plain causal masking is used here.
    # TODO(synk): on v7x, split heads / MLP hidden over a parallel grid dim to use
    # the second TensorCore; at this demo size the kernel stays single-core.

    y = jnp.zeros((T, DIM), jnp.float32)
    for h in range(NUM_HEADS):
        q = qkv[:, h * HEAD_DIM:(h + 1) * HEAD_DIM]
        k = qkv[:, (NUM_HEADS + h) * HEAD_DIM:(NUM_HEADS + h + 1) * HEAD_DIM]
        v = qkv[:, (2 * NUM_HEADS + h) * HEAD_DIM:(2 * NUM_HEADS + h + 1) * HEAD_DIM]

        q = _rms_norm(q)
        k = _rms_norm(k)

        # rotary: y = x*[cos,cos] + roll(x, D/2)*[sin,-sin] (half-dim shift is its own inverse)
        q = q * cos2 + pltpu.roll(q, shift=HEAD_DIM // 2, axis=1) * sin2
        k = k * cos2 + pltpu.roll(k, shift=HEAD_DIM // 2, axis=1) * sin2

        ve_h = ve_ref[:, h * HEAD_DIM:(h + 1) * HEAD_DIM]
        v = la0 * v + la1 * ve_h

        # scores: contract last dims of q and k -> no materialized k transpose
        s = lax.dot_general(q.astype(jnp.bfloat16), k.astype(jnp.bfloat16),
                            dimension_numbers=(((1,), (1,)), ((), ())),
                            preferred_element_type=jnp.float32)
        s = s * ATTN_SCALE + mask
        s = s - jnp.max(s, axis=-1, keepdims=True)
        p = jnp.exp(s)
        p = p * pl.reciprocal(jnp.sum(p, axis=-1, keepdims=True), approx=True)

        pv = jnp.dot(p.astype(jnp.bfloat16), v.astype(jnp.bfloat16),
                     preferred_element_type=jnp.float32)        # (T, HEAD_DIM)
        # per-head out-projection accumulation (no lane-axis concat)
        y = y + jnp.dot(pv.astype(jnp.bfloat16),
                        w_proj[h * HEAD_DIM:(h + 1) * HEAD_DIM, :],
                        preferred_element_type=jnp.float32)

    x = x + y

    # ---------------- MLP branch ----------------
    fc_cp.wait()
    mlp_cp.wait()
    xn2 = _rms_norm(x)
    h1 = jnp.dot(xn2.astype(jnp.bfloat16), fc_buf[...],
                 preferred_element_type=jnp.float32)            # (T, MLP_HDIM)
    h1 = jnp.square(jnp.maximum(h1, 0.0))                       # relu(x)^2 in f32
    m = jnp.dot(h1.astype(jnp.bfloat16), mlp_buf[...],
                preferred_element_type=jnp.float32)
    out_ref[...] = x + m


def block_forward(x, ve, x0, params):
    """x, x0: (1, T, DIM); ve: (1, T, HDIM). Returns (1, T, DIM)."""
    assert x.shape[0] == 1, "Must use batch size = 1 (matches FlexAttention assert)"
    x2 = x[0].astype(jnp.float32)
    x02 = x0[0].astype(jnp.float32)
    ve2 = ve[0].astype(jnp.float32)

    vmem = pl.BlockSpec(memory_space=pltpu.MemorySpace.VMEM)
    smem = pl.BlockSpec(memory_space=pltpu.MemorySpace.SMEM)
    hbm = pl.BlockSpec(memory_space=pl.ANY)   # MLP weights stay in HBM; DMA'd inside

    cost = pl.CostEstimate(flops=int(2.2e8),
                           transcendentals=2 * T * T,
                           bytes_accessed=int(2.4e6))

    out = pl.pallas_call(
        block_kernel,
        out_shape=jax.ShapeDtypeStruct((T, DIM), jnp.float32),
        in_specs=[smem, smem,                 # lambdas
                  vmem, vmem, vmem,           # x, x0, ve
                  vmem, vmem,                 # qkv_wT, attn_projT (bf16)
                  hbm, hbm,                   # fc_wT, mlp_projT (bf16, HBM)
                  vmem, vmem, vmem],          # cos2, sin2, causal mask
        out_specs=vmem,
        scratch_shapes=[pltpu.VMEM((DIM, MLP_HDIM), jnp.bfloat16),
                        pltpu.VMEM((MLP_HDIM, DIM), jnp.bfloat16),
                        pltpu.SemaphoreType.DMA((2,))],
        cost_estimate=cost,
    )(params["block_lambdas"], params["attn_lambdas"],
      x2, x02, ve2,
      params["qkv_wT_bf16"], params["attn_projT_bf16"],
      params["fc_wT_bf16"], params["mlp_projT_bf16"],
      params["cos2"], params["sin2"], params["causal_mask"])
    return out[None]


# ---------------- deterministic parameter construction ----------------
def make_params(key):
    k_qkv, k_fc, k_ap, k_mp = jax.random.split(key, 4)

    bound_qkv = math.sqrt(3.0) * 0.5 * DIM ** (-0.5)
    qkv_w = jax.random.uniform(k_qkv, (3 * HDIM, DIM), jnp.float32,
                               minval=-bound_qkv, maxval=bound_qkv)

    # NOTE: the module zero-inits both c_proj weights; we use non-zero values here
    # so the correctness check actually exercises the attention / MLP paths.
    bound_ap = math.sqrt(3.0) * 0.5 * HDIM ** (-0.5)
    attn_proj_w = jax.random.uniform(k_ap, (DIM, HDIM), jnp.float32,
                                     minval=-bound_ap, maxval=bound_ap)

    bound_fc = math.sqrt(3.0) * 0.5 * DIM ** (-0.5)
    fc_w = jax.random.uniform(k_fc, (MLP_HDIM, DIM), jnp.float32,
                              minval=-bound_fc, maxval=bound_fc)

    bound_mp = math.sqrt(3.0) * 0.5 * MLP_HDIM ** (-0.5)
    mlp_proj_w = jax.random.uniform(k_mp, (DIM, MLP_HDIM), jnp.float32,
                                    minval=-bound_mp, maxval=bound_mp)

    # Rotary tables (head_dim=128): 32 real freqs + 32 zeros -> 64, applied to half-dim.
    n4 = HEAD_DIM // 4
    angular_freq = (1.0 / 1024.0) ** jnp.linspace(0.0, 1.0, n4, dtype=jnp.float32)
    angular_freq = jnp.concatenate([angular_freq, jnp.zeros((n4,), jnp.float32)])
    t = jnp.arange(T, dtype=jnp.float32)
    theta = jnp.einsum("i,j->ij", t, angular_freq)             # (T, 64)
    cos, sin = jnp.cos(theta), jnp.sin(theta)
    cos2 = jnp.concatenate([cos, cos], axis=-1)                # (T, 128)
    sin2 = jnp.concatenate([sin, -sin], axis=-1)               # (T, 128)

    # additive causal mask: 0 on/below the diagonal, -1e30 above
    row = jnp.arange(T)[:, None]
    col = jnp.arange(T)[None, :]
    causal_mask = jnp.where(row >= col, 0.0, NEG_INF).astype(jnp.float32)

    return dict(
        # f32 originals in PyTorch orientation (used by the reference)
        qkv_w=qkv_w, attn_proj_w=attn_proj_w, fc_w=fc_w, mlp_proj_w=mlp_proj_w,
        # pre-transposed bf16 copies for the kernel (no in-kernel transpose,
        # half the weight DMA bytes). In production these would be stored this way.
        qkv_wT_bf16=qkv_w.T.astype(jnp.bfloat16),
        attn_projT_bf16=attn_proj_w.T.astype(jnp.bfloat16),
        fc_wT_bf16=fc_w.T.astype(jnp.bfloat16),
        mlp_projT_bf16=mlp_proj_w.T.astype(jnp.bfloat16),
        # non-degenerate lambdas so both residual mixes are exercised
        block_lambdas=jnp.array([0.8, 0.2], jnp.float32),
        attn_lambdas=jnp.array([0.5, 0.5], jnp.float32),
        cos2=cos2, sin2=sin2, causal_mask=causal_mask,
    )


# ---------------- pure-JAX f32 reference (mirrors the PyTorch forward) ----------------
def block_reference(x, ve, x0, p):
    xb, x0b, veb = x[0], x0[0], ve[0]
    xm = p["block_lambdas"][0] * xb + p["block_lambdas"][1] * x0b
    xn = _rms_norm(xm)
    qkv = xn @ p["qkv_w"].T
    row = jnp.arange(T)[:, None]
    col = jnp.arange(T)[None, :]
    causal = row >= col
    heads = []
    for h in range(NUM_HEADS):
        q = _rms_norm(qkv[:, h * HEAD_DIM:(h + 1) * HEAD_DIM])
        k = _rms_norm(qkv[:, (NUM_HEADS + h) * HEAD_DIM:(NUM_HEADS + h + 1) * HEAD_DIM])
        v = qkv[:, (2 * NUM_HEADS + h) * HEAD_DIM:(2 * NUM_HEADS + h + 1) * HEAD_DIM]
        q = q * p["cos2"] + jnp.roll(q, HEAD_DIM // 2, axis=1) * p["sin2"]
        k = k * p["cos2"] + jnp.roll(k, HEAD_DIM // 2, axis=1) * p["sin2"]
        v = p["attn_lambdas"][0] * v + p["attn_lambdas"][1] * veb[:, h * HEAD_DIM:(h + 1) * HEAD_DIM]
        s = (q @ k.T) * ATTN_SCALE
        s = jnp.where(causal, s, -jnp.inf)
        pm = jax.nn.softmax(s, axis=-1)
        heads.append(pm @ v)
    y = jnp.concatenate(heads, axis=-1) @ p["attn_proj_w"].T
    xm = xm + y
    hmid = jnp.square(jnp.maximum(_rms_norm(xm) @ p["fc_w"].T, 0.0))
    xm = xm + hmid @ p["mlp_proj_w"].T
    return xm[None]


if __name__ == "__main__":
    key = jax.random.PRNGKey(0)
    k_p, k_x, k_x0, k_ve = jax.random.split(key, 4)
    params = make_params(k_p)

    x = jax.random.normal(k_x, (1, T, DIM), jnp.float32)
    x0 = jax.random.normal(k_x0, (1, T, DIM), jnp.float32)
    ve = jax.random.normal(k_ve, (1, T, HDIM), jnp.float32)

    out = jax.block_until_ready(block_forward(x, ve, x0, params))
    ref = jax.block_until_ready(block_reference(x, ve, x0, params))
    assert out.shape == (1, T, DIM)
    # bf16 matmul inputs with f32 accumulation -> compare against f32 reference
    # at bf16-level tolerance.
    np.testing.assert_allclose(np.asarray(out), np.asarray(ref), rtol=2e-2, atol=2e-2)

    print("KERNEL_OK")
</pallas_src>

<mosaic_0001>
module attributes {stable_mosaic.version = 11 : i64} {
  func.func @block_kernel(%arg0: memref<2xf32, #tpu.memory_space<smem>>, %arg1: memref<2xf32, #tpu.memory_space<smem>>, %arg2: memref<128x256xf32, #tpu.memory_space<vmem>>, %arg3: memref<128x256xf32, #tpu.memory_space<vmem>>, %arg4: memref<128x256xf32, #tpu.memory_space<vmem>>, %arg5: memref<256x768xbf16, #tpu.memory_space<vmem>>, %arg6: memref<256x256xbf16, #tpu.memory_space<vmem>>, %arg7: memref<256x1024xbf16, #tpu.memory_space<any>>, %arg8: memref<1024x256xbf16, #tpu.memory_space<any>>, %arg9: memref<128x128xf32, #tpu.memory_space<vmem>>, %arg10: memref<128x128xf32, #tpu.memory_space<vmem>>, %arg11: memref<128x128xf32, #tpu.memory_space<vmem>>, %arg12: memref<128x256xf32, #tpu.memory_space<vmem>>, %arg13: memref<256x1024xbf16, #tpu.memory_space<vmem>>, %arg14: memref<1024x256xbf16, #tpu.memory_space<vmem>>, %arg15: memref<2x!tpu.dma_semaphore, #tpu.memory_space<semaphore_mem>>) attributes {dimension_semantics = [], scalar_prefetch = 0 : i64, scratch_operands = 3 : i64, tpu.core_type = #tpu.core_type<tc>} {
    %c0_i32 = arith.constant 0 : i32
    %0 = tpu.memref_slice %arg15[%c0_i32] : memref<2x!tpu.dma_semaphore, #tpu.memory_space<semaphore_mem>> -> memref<1x!tpu.dma_semaphore, #tpu.memory_space<semaphore_mem>>
    %1 = tpu.memref_squeeze %0 : memref<1x!tpu.dma_semaphore, #tpu.memory_space<semaphore_mem>> -> memref<!tpu.dma_semaphore, #tpu.memory_space<semaphore_mem>>
    tpu.enqueue_dma source(%arg7 : memref<256x1024xbf16, #tpu.memory_space<any>>) target(%arg13 : memref<256x1024xbf16, #tpu.memory_space<vmem>>) target_semaphore(%1 : memref<!tpu.dma_semaphore, #tpu.memory_space<semaphore_mem>>)
    %c1_i32 = arith.constant 1 : i32
    %2 = tpu.memref_slice %arg15[%c1_i32] : memref<2x!tpu.dma_semaphore, #tpu.memory_space<semaphore_mem>> -> memref<1x!tpu.dma_semaphore, #tpu.memory_space<semaphore_mem>>
    %3 = tpu.memref_squeeze %2 : memref<1x!tpu.dma_semaphore, #tpu.memory_space<semaphore_mem>> -> memref<!tpu.dma_semaphore, #tpu.memory_space<semaphore_mem>>
    tpu.enqueue_dma source(%arg8 : memref<1024x256xbf16, #tpu.memory_space<any>>) target(%arg14 : memref<1024x256xbf16, #tpu.memory_space<vmem>>) target_semaphore(%3 : memref<!tpu.dma_semaphore, #tpu.memory_space<semaphore_mem>>)
    %c0 = arith.constant 0 : index
    %4 = memref.load %arg0[%c0] : memref<2xf32, #tpu.memory_space<smem>>
    %c1 = arith.constant 1 : index
    %5 = memref.load %arg0[%c1] : memref<2xf32, #tpu.memory_space<smem>>
    %c0_0 = arith.constant 0 : index
    %6 = memref.load %arg1[%c0_0] : memref<2xf32, #tpu.memory_space<smem>>
    %c1_1 = arith.constant 1 : index
    %7 = memref.load %arg1[%c1_1] : memref<2xf32, #tpu.memory_space<smem>>
    %c0_2 = arith.constant 0 : index
    %c0_3 = arith.constant 0 : index
    %8 = vector.load %arg2[%c0_2, %c0_3] : memref<128x256xf32, #tpu.memory_space<vmem>>, vector<128x256xf32>
    %9 = vector.broadcast %4 : f32 to vector<128x256xf32>
    %10 = arith.mulf %9, %8 : vector<128x256xf32>
    %c0_4 = arith.constant 0 : index
    %c0_5 = arith.constant 0 : index
    %11 = vector.load %arg3[%c0_4, %c0_5] : memref<128x256xf32, #tpu.memory_space<vmem>>, vector<128x256xf32>
    %12 = vector.broadcast %5 : f32 to vector<128x256xf32>
    %13 = arith.mulf %12, %11 : vector<128x256xf32>
    %14 = arith.addf %10, %13 : vector<128x256xf32>
    %15 = arith.mulf %14, %14 : vector<128x256xf32>
    %cst = arith.constant dense<0.000000e+00> : vector<128xf32>
    %16 = vector.multi_reduction <add>, %15, %cst [1] : vector<128x256xf32> to vector<128xf32>
    %17 = vector.shape_cast %16 : vector<128xf32> to vector<128x1xf32>
    %cst_6 = arith.constant 2.560000e+02 : f32
    %18 = vector.broadcast %cst_6 : f32 to vector<128x1xf32>
    %19 = arith.divf %17, %18 : vector<128x1xf32>
    %cst_7 = arith.constant 1.1920929E-7 : f32
    %20 = vector.broadcast %cst_7 : f32 to vector<128x1xf32>
    %21 = arith.addf %19, %20 : vector<128x1xf32>
    %22 = math.rsqrt %21 : vector<128x1xf32>
    %23 = vector.broadcast %22 : vector<128x1xf32> to vector<128x256xf32>
    %24 = arith.mulf %14, %23 : vector<128x256xf32>
    %25 = arith.truncf %24 : vector<128x256xf32> to vector<128x256xbf16>
    %c0_8 = arith.constant 0 : index
    %c0_9 = arith.constant 0 : index
    %26 = vector.load %arg5[%c0_8, %c0_9] : memref<256x768xbf16, #tpu.memory_space<vmem>>, vector<256x768xbf16>
    %cst_10 = arith.constant dense<0.000000e+00> : vector<128x768xf32>
    %27 = tpu.matmul %25, %26, %cst_10 {dimension_numbers = #tpu.dot_dimension_numbers<[1], [0], [0], [1], [0, 0, 1, 1], [], []>} : vector<128x256xbf16>, vector<256x768xbf16>, vector<128x768xf32> -> vector<128x768xf32>
    %c0_11 = arith.constant 0 : index
    %c0_12 = arith.constant 0 : index
    %28 = vector.load %arg9[%c0_11, %c0_12] : memref<128x128xf32, #tpu.memory_space<vmem>>, vector<128x128xf32>
    %c0_13 = arith.constant 0 : index
    %c0_14 = arith.constant 0 : index
    %29 = vector.load %arg10[%c0_13, %c0_14] : memref<128x128xf32, #tpu.memory_space<vmem>>, vector<128x128xf32>
    %c0_15 = arith.constant 0 : index
    %c0_16 = arith.constant 0 : index
    %30 = vector.load %arg11[%c0_15, %c0_16] : memref<128x128xf32, #tpu.memory_space<vmem>>, vector<128x128xf32>
    %c0_17 = arith.constant 0 : index
    %c0_18 = arith.constant 0 : index
    %31 = vector.load %arg6[%c0_17, %c0_18] : memref<256x256xbf16, #tpu.memory_space<vmem>>, vector<256x256xbf16>
    %cst_19 = arith.constant 0.000000e+00 : f32
    %32 = vector.broadcast %cst_19 : f32 to vector<128x256xf32>
    %33 = vector.extract_strided_slice %27 {offsets = [0, 0], sizes = [128, 128], strides = [1, 1]} : vector<128x768xf32> to vector<128x128xf32>
    %34 = vector.extract_strided_slice %27 {offsets = [0, 256], sizes = [128, 128], strides = [1, 1]} : vector<128x768xf32> to vector<128x128xf32>
    %35 = vector.extract_strided_slice %27 {offsets = [0, 512], sizes = [128, 128], strides = [1, 1]} : vector<128x768xf32> to vector<128x128xf32>
    %36 = arith.mulf %33, %33 : vector<128x128xf32>
    %cst_20 = arith.constant dense<0.000000e+00> : vector<128xf32>
    %37 = vector.multi_reduction <add>, %36, %cst_20 [1] : vector<128x128xf32> to vector<128xf32>
    %38 = vector.shape_cast %37 : vector<128xf32> to vector<128x1xf32>
    %cst_21 = arith.constant 1.280000e+02 : f32
    %39 = vector.broadcast %cst_21 : f32 to vector<128x1xf32>
    %40 = arith.divf %38, %39 : vector<128x1xf32>
    %cst_22 = arith.constant 1.1920929E-7 : f32
    %41 = vector.broadcast %cst_22 : f32 to vector<128x1xf32>
    %42 = arith.addf %40, %41 : vector<128x1xf32>
    %43 = math.rsqrt %42 : vector<128x1xf32>
    %44 = vector.broadcast %43 : vector<128x1xf32> to vector<128x128xf32>
    %45 = arith.mulf %33, %44 : vector<128x128xf32>
    %46 = arith.mulf %34, %34 : vector<128x128xf32>
    %cst_23 = arith.constant dense<0.000000e+00> : vector<128xf32>
    %47 = vector.multi_reduction <add>, %46, %cst_23 [1] : vector<128x128xf32> to vector<128xf32>
    %48 = vector.shape_cast %47 : vector<128xf32> to vector<128x1xf32>
    %cst_24 = arith.constant 1.280000e+02 : f32
    %49 = vector.broadcast %cst_24 : f32 to vector<128x1xf32>
    %50 = arith.divf %48, %49 : vector<128x1xf32>
    %cst_25 = arith.constant 1.1920929E-7 : f32
    %51 = vector.broadcast %cst_25 : f32 to vector<128x1xf32>
    %52 = arith.addf %50, %51 : vector<128x1xf32>
    %53 = math.rsqrt %52 : vector<128x1xf32>
    %54 = vector.broadcast %53 : vector<128x1xf32> to vector<128x128xf32>
    %55 = arith.mulf %34, %54 : vector<128x128xf32>
    %56 = arith.mulf %45, %28 : vector<128x128xf32>
    %c64_i32 = arith.constant 64 : i32
    %57 = tpu.dynamic_rotate %45 by %c64_i32 dim 1 : vector<128x128xf32>, i32 -> vector<128x128xf32>
    %58 = arith.mulf %57, %29 : vector<128x128xf32>
    %59 = arith.addf %56, %58 : vector<128x128xf32>
    %60 = arith.mulf %55, %28 : vector<128x128xf32>
    %c64_i32_26 = arith.constant 64 : i32
    %61 = tpu.dynamic_rotate %55 by %c64_i32_26 dim 1 : vector<128x128xf32>, i32 -> vector<128x128xf32>
    %62 = arith.mulf %61, %29 : vector<128x128xf32>
    %63 = arith.addf %60, %62 : vector<128x128xf32>
    %c0_27 = arith.constant 0 : index
    %c0_28 = arith.constant 0 : index
    %64 = vector.load %arg4[%c0_27, %c0_28] : memref<128x256xf32, #tpu.memory_space<vmem>>, vector<128x128xf32>
    %65 = vector.broadcast %6 : f32 to vector<128x128xf32>
    %66 = arith.mulf %65, %35 : vector<128x128xf32>
    %67 = vector.broadcast %7 : f32 to vector<128x128xf32>
    %68 = arith.mulf %67, %64 : vector<128x128xf32>
    %69 = arith.addf %66, %68 : vector<128x128xf32>
    %70 = arith.truncf %59 : vector<128x128xf32> to vector<128x128xbf16>
    %71 = arith.truncf %63 : vector<128x128xf32> to vector<128x128xbf16>
    %cst_29 = arith.constant dense<0.000000e+00> : vector<128x128xf32>
    %72 = tpu.matmul %70, %71, %cst_29 {dimension_numbers = #tpu.dot_dimension_numbers<[1], [1], [0], [0], [0, 0, 1, 0], [], []>} : vector<128x128xbf16>, vector<128x128xbf16>, vector<128x128xf32> -> vector<128x128xf32>
    %cst_30 = arith.constant 1.200000e-01 : f32
    %73 = vector.broadcast %cst_30 : f32 to vector<128x128xf32>
    %74 = arith.mulf %72, %73 : vector<128x128xf32>
    %75 = arith.addf %74, %30 : vector<128x128xf32>
    %cst_31 = arith.constant dense<0xFF800000> : vector<128xf32>
    %76 = vector.multi_reduction <maximumf>, %75, %cst_31 [1] : vector<128x128xf32> to vector<128xf32>
    %77 = vector.shape_cast %76 : vector<128xf32> to vector<128x1xf32>
    %78 = vector.broadcast %77 : vector<128x1xf32> to vector<128x128xf32>
    %79 = arith.subf %75, %78 : vector<128x128xf32>
    %80 = math.exp %79 : vector<128x128xf32>
    %cst_32 = arith.constant dense<0.000000e+00> : vector<128xf32>
    %81 = vector.multi_reduction <add>, %80, %cst_32 [1] : vector<128x128xf32> to vector<128xf32>
    %82 = vector.shape_cast %81 : vector<128xf32> to vector<128x1xf32>
    %83 = tpu.reciprocal %82 {approx = true} : vector<128x1xf32> -> vector<128x1xf32>
    %84 = vector.broadcast %83 : vector<128x1xf32> to vector<128x128xf32>
    %85 = arith.mulf %80, %84 : vector<128x128xf32>
    %86 = arith.truncf %85 : vector<128x128xf32> to vector<128x128xbf16>
    %87 = arith.truncf %69 : vector<128x128xf32> to vector<128x128xbf16>
    %cst_33 = arith.constant dense<0.000000e+00> : vector<128x128xf32>
    %88 = tpu.matmul %86, %87, %cst_33 {dimension_numbers = #tpu.dot_dimension_numbers<[1], [0], [0], [1], [0, 0, 1, 1], [], []>} : vector<128x128xbf16>, vector<128x128xbf16>, vector<128x128xf32> -> vector<128x128xf32>
    %89 = arith.truncf %88 : vector<128x128xf32> to vector<128x128xbf16>
    %90 = vector.extract_strided_slice %31 {offsets = [0, 0], sizes = [128, 256], strides = [1, 1]} : vector<256x256xbf16> to vector<128x256xbf16>
    %cst_34 = arith.constant dense<0.000000e+00> : vector<128x256xf32>
    %91 = tpu.matmul %89, %90, %cst_34 {dimension_numbers = #tpu.dot_dimension_numbers<[1], [0], [0], [1], [0, 0, 1, 1], [], []>} : vector<128x128xbf16>, vector<128x256xbf16>, vector<128x256xf32> -> vector<128x256xf32>
    %92 = arith.addf %32, %91 : vector<128x256xf32>
    %93 = vector.extract_strided_slice %27 {offsets = [0, 128], sizes = [128, 128], strides = [1, 1]} : vector<128x768xf32> to vector<128x128xf32>
    %94 = vector.extract_strided_slice %27 {offsets = [0, 384], sizes = [128, 128], strides = [1, 1]} : vector<128x768xf32> to vector<128x128xf32>
    %95 = vector.extract_strided_slice %27 {offsets = [0, 640], sizes = [128, 128], strides = [1, 1]} : vector<128x768xf32> to vector<128x128xf32>
    %96 = arith.mulf %93, %93 : vector<128x128xf32>
    %cst_35 = arith.constant dense<0.000000e+00> : vector<128xf32>
    %97 = vector.multi_reduction <add>, %96, %cst_35 [1] : vector<128x128xf32> to vector<128xf32>
    %98 = vector.shape_cast %97 : vector<128xf32> to vector<128x1xf32>
    %cst_36 = arith.constant 1.280000e+02 : f32
    %99 = vector.broadcast %cst_36 : f32 to vector<128x1xf32>
    %100 = arith.divf %98, %99 : vector<128x1xf32>
    %cst_37 = arith.constant 1.1920929E-7 : f32
    %101 = vector.broadcast %cst_37 : f32 to vector<128x1xf32>
    %102 = arith.addf %100, %101 : vector<128x1xf32>
    %103 = math.rsqrt %102 : vector<128x1xf32>
    %104 = vector.broadcast %103 : vector<128x1xf32> to vector<128x128xf32>
    %105 = arith.mulf %93, %104 : vector<128x128xf32>
    %106 = arith.mulf %94, %94 : vector<128x128xf32>
    %cst_38 = arith.constant dense<0.000000e+00> : vector<128xf32>
    %107 = vector.multi_reduction <add>, %106, %cst_38 [1] : vector<128x128xf32> to vector<128xf32>
    %108 = vector.shape_cast %107 : vector<128xf32> to vector<128x1xf32>
    %cst_39 = arith.constant 1.280000e+02 : f32
    %109 = vector.broadcast %cst_39 : f32 to vector<128x1xf32>
    %110 = arith.divf %108, %109 : vector<128x1xf32>
    %cst_40 = arith.constant 1.1920929E-7 : f32
    %111 = vector.broadcast %cst_40 : f32 to vector<128x1xf32>
    %112 = arith.addf %110, %111 : vector<128x1xf32>
    %113 = math.rsqrt %112 : vector<128x1xf32>
    %114 = vector.broadcast %113 : vector<128x1xf32> to vector<128x128xf32>
    %115 = arith.mulf %94, %114 : vector<128x128xf32>
    %116 = arith.mulf %105, %28 : vector<128x128xf32>
    %c64_i32_41 = arith.constant 64 : i32
    %117 = tpu.dynamic_rotate %105 by %c64_i32_41 dim 1 : vector<128x128xf32>, i32 -> vector<128x128xf32>
    %118 = arith.mulf %117, %29 : vector<128x128xf32>
    %119 = arith.addf %116, %118 : vector<128x128xf32>
    %120 = arith.mulf %115, %28 : vector<128x128xf32>
    %c64_i32_42 = arith.constant 64 : i32
    %121 = tpu.dynamic_rotate %115 by %c64_i32_42 dim 1 : vector<128x128xf32>, i32 -> vector<128x128xf32>
    %122 = arith.mulf %121, %29 : vector<128x128xf32>
    %123 = arith.addf %120, %122 : vector<128x128xf32>
    %c0_43 = arith.constant 0 : index
    %c128 = arith.constant 128 : index
    %124 = vector.load %arg4[%c0_43, %c128] : memref<128x256xf32, #tpu.memory_space<vmem>>, vector<128x128xf32>
    %125 = vector.broadcast %6 : f32 to vector<128x128xf32>
    %126 = arith.mulf %125, %95 : vector<128x128xf32>
    %127 = vector.broadcast %7 : f32 to vector<128x128xf32>
    %128 = arith.mulf %127, %124 : vector<128x128xf32>
    %129 = arith.addf %126, %128 : vector<128x128xf32>
    %130 = arith.truncf %119 : vector<128x128xf32> to vector<128x128xbf16>
    %131 = arith.truncf %123 : vector<128x128xf32> to vector<128x128xbf16>
    %cst_44 = arith.constant dense<0.000000e+00> : vector<128x128xf32>
    %132 = tpu.matmul %130, %131, %cst_44 {dimension_numbers = #tpu.dot_dimension_numbers<[1], [1], [0], [0], [0, 0, 1, 0], [], []>} : vector<128x128xbf16>, vector<128x128xbf16>, vector<128x128xf32> -> vector<128x128xf32>
    %cst_45 = arith.constant 1.200000e-01 : f32
    %133 = vector.broadcast %cst_45 : f32 to vector<128x128xf32>
    %134 = arith.mulf %132, %133 : vector<128x128xf32>
    %135 = arith.addf %134, %30 : vector<128x128xf32>
    %cst_46 = arith.constant dense<0xFF800000> : vector<128xf32>
    %136 = vector.multi_reduction <maximumf>, %135, %cst_46 [1] : vector<128x128xf32> to vector<128xf32>
    %137 = vector.shape_cast %136 : vector<128xf32> to vector<128x1xf32>
    %138 = vector.broadcast %137 : vector<128x1xf32> to vector<128x128xf32>
    %139 = arith.subf %135, %138 : vector<128x128xf32>
    %140 = math.exp %139 : vector<128x128xf32>
    %cst_47 = arith.constant dense<0.000000e+00> : vector<128xf32>
    %141 = vector.multi_reduction <add>, %140, %cst_47 [1] : vector<128x128xf32> to vector<128xf32>
    %142 = vector.shape_cast %141 : vector<128xf32> to vector<128x1xf32>
    %143 = tpu.reciprocal %142 {approx = true} : vector<128x1xf32> -> vector<128x1xf32>
    %144 = vector.broadcast %143 : vector<128x1xf32> to vector<128x128xf32>
    %145 = arith.mulf %140, %144 : vector<128x128xf32>
    %146 = arith.truncf %145 : vector<128x128xf32> to vector<128x128xbf16>
    %147 = arith.truncf %129 : vector<128x128xf32> to vector<128x128xbf16>
    %cst_48 = arith.constant dense<0.000000e+00> : vector<128x128xf32>
    %148 = tpu.matmul %146, %147, %cst_48 {dimension_numbers = #tpu.dot_dimension_numbers<[1], [0], [0], [1], [0, 0, 1, 1], [], []>} : vector<128x128xbf16>, vector<128x128xbf16>, vector<128x128xf32> -> vector<128x128xf32>
    %149 = arith.truncf %148 : vector<128x128xf32> to vector<128x128xbf16>
    %150 = vector.extract_strided_slice %31 {offsets = [128, 0], sizes = [128, 256], strides = [1, 1]} : vector<256x256xbf16> to vector<128x256xbf16>
    %cst_49 = arith.constant dense<0.000000e+00> : vector<128x256xf32>
    %151 = tpu.matmul %149, %150, %cst_49 {dimension_numbers = #tpu.dot_dimension_numbers<[1], [0], [0], [1], [0, 0, 1, 1], [], []>} : vector<128x128xbf16>, vector<128x256xbf16>, vector<128x256xf32> -> vector<128x256xf32>
    %152 = arith.addf %92, %151 : vector<128x256xf32>
    %153 = arith.addf %14, %152 : vector<128x256xf32>
    %c0_i32_50 = arith.constant 0 : i32
    %154 = tpu.memref_slice %arg15[%c0_i32_50] : memref<2x!tpu.dma_semaphore, #tpu.memory_space<semaphore_mem>> -> memref<1x!tpu.dma_semaphore, #tpu.memory_space<semaphore_mem>>
    %155 = tpu.memref_squeeze %154 : memref<1x!tpu.dma_semaphore, #tpu.memory_space<semaphore_mem>> -> memref<!tpu.dma_semaphore, #tpu.memory_space<semaphore_mem>>
    tpu.wait_dma2 semaphore(%155 : memref<!tpu.dma_semaphore, #tpu.memory_space<semaphore_mem>>) src(%arg7 : memref<256x1024xbf16, #tpu.memory_space<any>>) dst(%arg13 : memref<256x1024xbf16, #tpu.memory_space<vmem>>)
    %c1_i32_51 = arith.constant 1 : i32
    %156 = tpu.memref_slice %arg15[%c1_i32_51] : memref<2x!tpu.dma_semaphore, #tpu.memory_space<semaphore_mem>> -> memref<1x!tpu.dma_semaphore, #tpu.memory_space<semaphore_mem>>
    %157 = tpu.memref_squeeze %156 : memref<1x!tpu.dma_semaphore, #tpu.memory_space<semaphore_mem>> -> memref<!tpu.dma_semaphore, #tpu.memory_space<semaphore_mem>>
    tpu.wait_dma2 semaphore(%157 : memref<!tpu.dma_semaphore, #tpu.memory_space<semaphore_mem>>) src(%arg8 : memref<1024x256xbf16, #tpu.memory_space<any>>) dst(%arg14 : memref<1024x256xbf16, #tpu.memory_space<vmem>>)
    %158 = arith.mulf %153, %153 : vector<128x256xf32>
    %cst_52 = arith.constant dense<0.000000e+00> : vector<128xf32>
    %159 = vector.multi_reduction <add>, %158, %cst_52 [1] : vector<128x256xf32> to vector<128xf32>
    %160 = vector.shape_cast %159 : vector<128xf32> to vector<128x1xf32>
    %cst_53 = arith.constant 2.560000e+02 : f32
    %161 = vector.broadcast %cst_53 : f32 to vector<128x1xf32>
    %162 = arith.divf %160, %161 : vector<128x1xf32>
    %cst_54 = arith.constant 1.1920929E-7 : f32
    %163 = vector.broadcast %cst_54 : f32 to vector<128x1xf32>
    %164 = arith.addf %162, %163 : vector<128x1xf32>
    %165 = math.rsqrt %164 : vector<128x1xf32>
    %166 = vector.broadcast %165 : vector<128x1xf32> to vector<128x256xf32>
    %167 = arith.mulf %153, %166 : vector<128x256xf32>
    %168 = arith.truncf %167 : vector<128x256xf32> to vector<128x256xbf16>
    %c0_55 = arith.constant 0 : index
    %c0_56 = arith.constant 0 : index
    %169 = vector.load %arg13[%c0_55, %c0_56] : memref<256x1024xbf16, #tpu.memory_space<vmem>>, vector<256x1024xbf16>
    %cst_57 = arith.constant dense<0.000000e+00> : vector<128x1024xf32>
    %170 = tpu.matmul %168, %169, %cst_57 {dimension_numbers = #tpu.dot_dimension_numbers<[1], [0], [0], [1], [0, 0, 1, 1], [], []>} : vector<128x256xbf16>, vector<256x1024xbf16>, vector<128x1024xf32> -> vector<128x1024xf32>
    %cst_58 = arith.constant 0.000000e+00 : f32
    %171 = vector.broadcast %cst_58 : f32 to vector<128x1024xf32>
    %172 = arith.maximumf %170, %171 : vector<128x1024xf32>
    %173 = arith.mulf %172, %172 : vector<128x1024xf32>
    %174 = arith.truncf %173 : vector<128x1024xf32> to vector<128x1024xbf16>
    %c0_59 = arith.constant 0 : index
    %c0_60 = arith.constant 0 : index
    %175 = vector.load %arg14[%c0_59, %c0_60] : memref<1024x256xbf16, #tpu.memory_space<vmem>>, vector<1024x256xbf16>
    %cst_61 = arith.constant dense<0.000000e+00> : vector<128x256xf32>
    %176 = tpu.matmul %174, %175, %cst_61 {dimension_numbers = #tpu.dot_dimension_numbers<[1], [0], [0], [1], [0, 0, 1, 1], [], []>} : vector<128x1024xbf16>, vector<1024x256xbf16>, vector<128x256xf32> -> vector<128x256xf32>
    %177 = arith.addf %153, %176 : vector<128x256xf32>
    %c0_62 = arith.constant 0 : index
    %c0_63 = arith.constant 0 : index
    %178 = vector.load %arg12[%c0_62, %c0_63] : memref<128x256xf32, #tpu.memory_space<vmem>>, vector<128x256xf32>
    tpu.vector_store %arg12[%c0_62, %c0_63], %177 {strides = array<i32>} : memref<128x256xf32, #tpu.memory_space<vmem>>, vector<128x256xf32>,
    return
  }
}

</mosaic_0001>

<llo_original>
// kernel: tpu_custom_call.1
$region0: #{tpu_custom_call.1}
  #allocation0 [shape = 'u32[]', space=smem, size = 0x4, offset = 0x4, fixed_abs, tag = 'smem constant byte address 0x4 - core index']
  #allocation1 [shape = 'u32[144,128]{1,0:T(1,128)}', space=vmem, size = 0x12000, scoped, tag = 'internal scratch']
  #allocation2 [shape = 'bf16[256,1024]{1,0:T(16,128)(2,1)}', space=vmem, size = 0x80000, scoped, tag = 'scratch operand']
  #allocation3 [shape = 'bf16[1024,256]{1,0:T(16,128)(2,1)}', space=vmem, size = 0x80000, scoped, tag = 'scratch operand']
  #allocation4 [shape = 's32[2]{0}', space=sflag, size = 0x8, scoped, tag = 'scratch operand']
  #allocation24 [shape = 's32[]', space=sflag, size = 0x4, offset = 0, fixed_abs, tag = 'sflag constant byte address 0x0 - dummy sync flag']
  #allocation26 [shape = 's32[]', space=sflag, size = 0x4, offset = 0, fixed_abs, tag = 'sflag constant byte address 0x0 - dummy sync flag']
  %s0 = inlined_call_operand.hbm [shape: f32[2], index: 0, kind: input, shape index: {}]
  %s1 = inlined_call_operand.vmem [shape: f32[2], index: 1, kind: input, shape index: {}]
  %s2 = inlined_call_operand.hbm [shape: f32[128,256], index: 2, kind: input, shape index: {}]
  %s3 = inlined_call_operand.hbm [shape: f32[128,256], index: 3, kind: input, shape index: {}]
  %s4 = inlined_call_operand.hbm [shape: f32[128,256], index: 4, kind: input, shape index: {}]
  %s5 = inlined_call_operand.hbm [shape: bf16[256,768], index: 5, kind: input, shape index: {}]
  %s6 = inlined_call_operand.hbm [shape: bf16[256,256], index: 6, kind: input, shape index: {}]
  %s7 = inlined_call_operand.hbm [shape: bf16[256,1024], index: 7, kind: input, shape index: {}]
  %s8 = inlined_call_operand.hbm [shape: bf16[1024,256], index: 8, kind: input, shape index: {}]
  %s9 = inlined_call_operand.hbm [shape: f32[128,128], index: 9, kind: input, shape index: {}]
  %s10 = inlined_call_operand.hbm [shape: f32[128,128], index: 10, kind: input, shape index: {}]
  %s11 = inlined_call_operand.hbm [shape: f32[128,128], index: 11, kind: input, shape index: {}]
  %s12 = inlined_call_operand.hbm [shape: f32[128,256], index: 12, kind: output, shape index: {}]
  %s13 = sld [smem:[#allocation0]]
  $region90: #{tpu_custom_call.1} parent=0
    _
  %s15 = ssub.s32 1, %s13
  %s16 = scalar_select 0, %s15, %s13
  $region1: #{tpu_custom_call.1} parent=0
    #allocation5 [shape = 'u8[512]{0}', space=smem, size = 0x200, scoped, tag = 'input window, operand 0, single buffered']
    #allocation6 [shape = 's32[1]{0}', space=sflag, size = 0x4, scoped, tag = 'scoped memory for tpu_custom_call.1']
    #allocation7 [shape = 's32[1]{0}', space=sflag, size = 0x4, scoped, tag = 'scoped memory for tpu_custom_call.1']
    #allocation8 [shape = 's32[1]{0}', space=sflag, size = 0x4, scoped, tag = 'scoped memory for tpu_custom_call.1']
    #allocation9 [shape = 's32[1]{0}', space=sflag, size = 0x4, scoped, tag = 'scoped memory for tpu_custom_call.1']
    #allocation10 [shape = 'u8[512]{0}', space=smem, size = 0x200, scoped, tag = 'input window, operand 1, single buffered']
    #allocation11 [shape = 'u8[131072]{0}', space=vmem, size = 0x20000, scoped, tag = 'input window, operand 2, single buffered']
    #allocation12 [shape = 'u8[131072]{0}', space=vmem, size = 0x20000, scoped, tag = 'input window, operand 3, single buffered']
    #allocation13 [shape = 's32[1]{0}', space=sflag, size = 0x4, scoped, tag = 'scoped memory for tpu_custom_call.1']
    #allocation14 [shape = 'u8[131072]{0}', space=vmem, size = 0x20000, scoped, tag = 'input window, operand 4, single buffered']
    #allocation15 [shape = 'u8[393216]{0}', space=vmem, size = 0x60000, scoped, tag = 'input window, operand 5, single buffered']
    #allocation16 [shape = 's32[1]{0}', space=sflag, size = 0x4, scoped, tag = 'scoped memory for tpu_custom_call.1']
    #allocation17 [shape = 'u8[131072]{0}', space=vmem, size = 0x20000, scoped, tag = 'input window, operand 6, single buffered']
    #allocation18 [shape = 'u8[65536]{0}', space=vmem, size = 0x10000, scoped, tag = 'input window, operand 9, single buffered']
    #allocation19 [shape = 's32[1]{0}', space=sflag, size = 0x4, scoped, tag = 'scoped memory for tpu_custom_call.1']
    #allocation20 [shape = 'u8[65536]{0}', space=vmem, size = 0x10000, scoped, tag = 'input window, operand 10, single buffered']
    #allocation21 [shape = 'u8[65536]{0}', space=vmem, size = 0x10000, scoped, tag = 'input window, operand 11, single buffered']
    #allocation22 [shape = 's32[1]{0}', space=sflag, size = 0x4, scoped, tag = 'scoped memory for tpu_custom_call.1']
    #allocation23 [shape = 'u8[131072]{0}', space=vmem, size = 0x20000, scoped, tag = 'output window, operand 0, single buffered']
    #allocation25 [shape = 'u32[9]{0}', space=smem, size = 0x24, scoped, tag = 'DMA stride descriptor']
    #allocation27 [shape = 'u32[9]{0}', space=smem, size = 0x24, scoped, tag = 'DMA stride descriptor']
    %17 = vsyncpa [#allocation8], 0
    %18 = vsyncpa [#allocation9], 0
    %19 = vsyncpa [#allocation6], 0
    %20 = vsyncpa [#allocation13], 0
    %21 = vsyncpa [#allocation16], 0
    %22 = vsyncpa [#allocation19], 0
    %23 = vsyncpa [#allocation22], 0
    %24 = vsyncpa [#allocation7], 0
    // Predicated region
    $region2: #{tpu_custom_call.1} parent=1 // pred_check
      _
    $region3: #{tpu_custom_call.1} parent=1 // pred_check_branch
      %26 = sbr.rel (0) target = $region5
    $region4: #{tpu_custom_call.1} parent=1 // pred_region
      %s28 = ssub.s32 16, 16
      %29 = vsyncadd [#allocation8], %s28
      %32 = dma.hbm_to_smem %s0, 16, [#allocation5], [#allocation8]
    $region5: #{tpu_custom_call.1} parent=1 // pred_fallthru
      _
    // Predicated region
    $region6: #{tpu_custom_call.1} parent=1 // pred_check
      _
    $region7: #{tpu_custom_call.1} parent=1 // pred_check_branch
      %34 = sbr.rel (0) target = $region9
    $region8: #{tpu_custom_call.1} parent=1 // pred_region
      %s36 = ssub.s32 16, 16
      %37 = vsyncadd [#allocation9], %s36
      %s39 = sshll.u32 %s1, 4
      %s40 = int_to_ptr.vmem [resolvable:$true] %s39
      %42 = dma.vmem_to_smem %s40, 16, [#allocation10], [#allocation9]
    $region9: #{tpu_custom_call.1} parent=1 // pred_fallthru
      _
    // Predicated region
    $region10: #{tpu_custom_call.1} parent=1 // pred_check
      _
    $region11: #{tpu_custom_call.1} parent=1 // pred_check_branch
      %44 = sbr.rel (0) target = $region13
    $region12: #{tpu_custom_call.1} parent=1 // pred_region
      %s46 = ssub.s32 4096, 4096
      %47 = vsyncadd [#allocation6], %s46
      %s48 = sshll.u32 [#allocation11], 4
      %s49 = int_to_ptr.vmem [resolvable:$true] %s48
      %54 = dma.hbm_to_vmem [thread:$0]  %s2, 4096, %s49, [#allocation6], 256, 256, 16
    $region13: #{tpu_custom_call.1} parent=1 // pred_fallthru
      _
    // Predicated region
    $region14: #{tpu_custom_call.1} parent=1 // pred_check
      _
    $region15: #{tpu_custom_call.1} parent=1 // pred_check_branch
      %56 = sbr.rel (0) target = $region17
    $region16: #{tpu_custom_call.1} parent=1 // pred_region
      %s58 = ssub.s32 4096, 4096
      %59 = vsyncadd [#allocation13], %s58
      %s60 = sshll.u32 [#allocation12], 4
      %s61 = int_to_ptr.vmem [resolvable:$true] %s60
      %66 = dma.hbm_to_vmem [thread:$0]  %s3, 4096, %s61, [#allocation13], 256, 256, 16
    $region17: #{tpu_custom_call.1} parent=1 // pred_fallthru
      _
    // Predicated region
    $region18: #{tpu_custom_call.1} parent=1 // pred_check
      _
    $region19: #{tpu_custom_call.1} parent=1 // pred_check_branch
      %68 = sbr.rel (0) target = $region21
    $region20: #{tpu_custom_call.1} parent=1 // pred_region
      %s70 = ssub.s32 4096, 4096
      %71 = vsyncadd [#allocation13], %s70
      %s72 = sshll.u32 [#allocation14], 4
      %s73 = int_to_ptr.vmem [resolvable:$true] %s72
      %78 = dma.hbm_to_vmem [thread:$0]  %s4, 4096, %s73, [#allocation13], 256, 256, 16
    $region21: #{tpu_custom_call.1} parent=1 // pred_fallthru
      _
    // Predicated region
    $region22: #{tpu_custom_call.1} parent=1 // pred_check
      _
    $region23: #{tpu_custom_call.1} parent=1 // pred_check_branch
      %80 = sbr.rel (0) target = $region25
    $region24: #{tpu_custom_call.1} parent=1 // pred_region
      %s82 = ssub.s32 12288, 12288
      %83 = vsyncadd [#allocation16], %s82
      %s84 = sshll.u32 [#allocation15], 4
      %s85 = int_to_ptr.vmem [resolvable:$true] %s84
      %90 = dma.hbm_to_vmem [thread:$0]  %s5, 12288, %s85, [#allocation16], 384, 384, 24
    $region25: #{tpu_custom_call.1} parent=1 // pred_fallthru
      _
    // Predicated region
    $region26: #{tpu_custom_call.1} parent=1 // pred_check
      _
    $region27: #{tpu_custom_call.1} parent=1 // pred_check_branch
      %92 = sbr.rel (0) target = $region29
    $region28: #{tpu_custom_call.1} parent=1 // pred_region
      %s94 = ssub.s32 4096, 4096
      %95 = vsyncadd [#allocation16], %s94
      %s96 = sshll.u32 [#allocation17], 4
      %s97 = int_to_ptr.vmem [resolvable:$true] %s96
      %102 = dma.hbm_to_vmem [thread:$0]  %s6, 4096, %s97, [#allocation16], 128, 128, 8
    $region29: #{tpu_custom_call.1} parent=1 // pred_fallthru
      _
    // Predicated region
    $region30: #{tpu_custom_call.1} parent=1 // pred_check
      _
    $region31: #{tpu_custom_call.1} parent=1 // pred_check_branch
      %104 = sbr.rel (0) target = $region33
    $region32: #{tpu_custom_call.1} parent=1 // pred_region
      %s106 = ssub.s32 2048, 2048
      %107 = vsyncadd [#allocation19], %s106
      %s108 = sshll.u32 [#allocation18], 4
      %s109 = int_to_ptr.vmem [resolvable:$true] %s108
      %114 = dma.hbm_to_vmem [thread:$0]  %s9, 2048, %s109, [#allocation19], 128, 128, 8
    $region33: #{tpu_custom_call.1} parent=1 // pred_fallthru
      _
    // Predicated region
    $region34: #{tpu_custom_call.1} parent=1 // pred_check
      _
    $region35: #{tpu_custom_call.1} parent=1 // pred_check_branch
      %116 = sbr.rel (0) target = $region37
    $region36: #{tpu_custom_call.1} parent=1 // pred_region
      %s118 = ssub.s32 2048, 2048
      %119 = vsyncadd [#allocation19], %s118
      %s120 = sshll.u32 [#allocation20], 4
      %s121 = int_to_ptr.vmem [resolvable:$true] %s120
      %126 = dma.hbm_to_vmem [thread:$0]  %s10, 2048, %s121, [#allocation19], 128, 128, 8
    $region37: #{tpu_custom_call.1} parent=1 // pred_fallthru
      _
    // Predicated region
    $region38: #{tpu_custom_call.1} parent=1 // pred_check
      _
    $region39: #{tpu_custom_call.1} parent=1 // pred_check_branch
      %128 = sbr.rel (0) target = $region41
    $region40: #{tpu_custom_call.1} parent=1 // pred_region
      %s130 = ssub.s32 2048, 2048
      %131 = vsyncadd [#allocation22], %s130
      %s132 = sshll.u32 [#allocation21], 4
      %s133 = int_to_ptr.vmem [resolvable:$true] %s132
      %138 = dma.hbm_to_vmem [thread:$0]  %s11, 2048, %s133, [#allocation22], 128, 128, 8
    $region41: #{tpu_custom_call.1} parent=1 // pred_fallthru
      _
    // Predicated region
    $region42: #{tpu_custom_call.1} parent=1 // pred_check
      _
    $region43: #{tpu_custom_call.1} parent=1 // pred_check_branch
      %140 = sbr.rel (0) target = $region45
    $region44: #{tpu_custom_call.1} parent=1 // pred_region
      %141 = dma.done [#allocation8], 16
    $region45: #{tpu_custom_call.1} parent=1 // pred_fallthru
      _
    // Predicated region
    $region46: #{tpu_custom_call.1} parent=1 // pred_check
      _
    $region47: #{tpu_custom_call.1} parent=1 // pred_check_branch
      %143 = sbr.rel (0) target = $region49
    $region48: #{tpu_custom_call.1} parent=1 // pred_region
      %144 = dma.done [#allocation9], 16
    $region49: #{tpu_custom_call.1} parent=1 // pred_fallthru
      _
    // Predicated region
    $region50: #{tpu_custom_call.1} parent=1 // pred_check
      _
    $region51: #{tpu_custom_call.1} parent=1 // pred_check_branch
      %146 = sbr.rel (0) target = $region53
    $region52: #{tpu_custom_call.1} parent=1 // pred_region
      %147 = dma.done [#allocation6], 4096
    $region53: #{tpu_custom_call.1} parent=1 // pred_fallthru
      _
    // Predicated region
    $region54: #{tpu_custom_call.1} parent=1 // pred_check
      _
    $region55: #{tpu_custom_call.1} parent=1 // pred_check_branch
      %149 = sbr.rel (0) target = $region57
    $region56: #{tpu_custom_call.1} parent=1 // pred_region
      %150 = dma.done [#allocation13], 4096
    $region57: #{tpu_custom_call.1} parent=1 // pred_fallthru
      _
    // Predicated region
    $region58: #{tpu_custom_call.1} parent=1 // pred_check
      _
    $region59: #{tpu_custom_call.1} parent=1 // pred_check_branch
      %152 = sbr.rel (0) target = $region61
    $region60: #{tpu_custom_call.1} parent=1 // pred_region
      %153 = dma.done [#allocation13], 4096
    $region61: #{tpu_custom_call.1} parent=1 // pred_fallthru
      _
    // Predicated region
    $region62: #{tpu_custom_call.1} parent=1 // pred_check
      _
    $region63: #{tpu_custom_call.1} parent=1 // pred_check_branch
      %155 = sbr.rel (0) target = $region65
    $region64: #{tpu_custom_call.1} parent=1 // pred_region
      %156 = dma.done [#allocation16], 12288
    $region65: #{tpu_custom_call.1} parent=1 // pred_fallthru
      _
    // Predicated region
    $region66: #{tpu_custom_call.1} parent=1 // pred_check
      _
    $region67: #{tpu_custom_call.1} parent=1 // pred_check_branch
      %158 = sbr.rel (0) target = $region69
    $region68: #{tpu_custom_call.1} parent=1 // pred_region
      %159 = dma.done [#allocation16], 4096
    $region69: #{tpu_custom_call.1} parent=1 // pred_fallthru
      _
    // Predicated region
    $region70: #{tpu_custom_call.1} parent=1 // pred_check
      _
    $region71: #{tpu_custom_call.1} parent=1 // pred_check_branch
      %161 = sbr.rel (0) target = $region73
    $region72: #{tpu_custom_call.1} parent=1 // pred_region
      %162 = dma.done [#allocation19], 2048
    $region73: #{tpu_custom_call.1} parent=1 // pred_fallthru
      _
    // Predicated region
    $region74: #{tpu_custom_call.1} parent=1 // pred_check
      _
    $region75: #{tpu_custom_call.1} parent=1 // pred_check_branch
      %164 = sbr.rel (0) target = $region77
    $region76: #{tpu_custom_call.1} parent=1 // pred_region
      %165 = dma.done [#allocation19], 2048
    $region77: #{tpu_custom_call.1} parent=1 // pred_fallthru
      _
    // Predicated region
    $region78: #{tpu_custom_call.1} parent=1 // pred_check
      _
    $region79: #{tpu_custom_call.1} parent=1 // pred_check_branch
      %167 = sbr.rel (0) target = $region81
    $region80: #{tpu_custom_call.1} parent=1 // pred_region
      %168 = dma.done [#allocation22], 2048
    $region81: #{tpu_custom_call.1} parent=1 // pred_fallthru
      _
    %169 = sfence
    %s172 = sshll.u32 1, 14
    %s173 = sxor.u32 4294967295, %s172
    %s175 = sld [smem:[#allocation0]]
    %s176 = sadd.s32 2, %s175
    %s178 = sshll.u32 7, 26
    %s179 = sxor.u32 4294967295, %s178
    %s180 = sand.u32 0, %s179
    %s181 = sshll.u32 %s176, 26
    %s182 = sor.u32 %s180, %s181
    %s183 = sshll.u32 [#allocation2], 4
    %s184 = int_to_ptr.vmem [resolvable:$true] %s183
    %187 = sst [smem:[#allocation25]] 1024
    %s188 = scalar_lea.smem [#allocation25], 1
    %189 = sst [smem:[%s188]] 1024
    %s190 = scalar_lea.smem [#allocation25], 2
    %191 = sst [smem:[%s190]] 8
    %s192 = scalar_lea.smem [#allocation25], 3
    %193 = sst [smem:[%s192]] 64
    %s194 = scalar_lea.smem [#allocation25], 4
    %195 = sst [smem:[%s194]] 128
    %s196 = scalar_lea.smem [#allocation25], 5
    %197 = sst [smem:[%s196]] 2
    %s198 = scalar_lea.smem [#allocation25], 6
    %199 = sst [smem:[%s198]] 512
    %s200 = scalar_lea.smem [#allocation25], 7
    %201 = sst [smem:[%s200]] 64
    %s202 = scalar_lea.smem [#allocation25], 8
    %203 = sst [smem:[%s202]] 4
    %205 = dma.general %s7, 16384, %s184, [#allocation4], [#allocation24], [#allocation25], %s182, 0
    %s206 = scalar_lea.sflag [#allocation4], 1
    %s208 = sshll.u32 1, 14
    %s209 = sxor.u32 4294967295, %s208
    %s211 = sadd.s32 2, %s175
    %s213 = sshll.u32 7, 26
    %s214 = sxor.u32 4294967295, %s213
    %s215 = sand.u32 0, %s214
    %s216 = sshll.u32 %s211, 26
    %s217 = sor.u32 %s215, %s216
    %s218 = sshll.u32 [#allocation3], 4
    %s219 = int_to_ptr.vmem [resolvable:$true] %s218
    %222 = sst [smem:[#allocation27]] 256
    %s223 = scalar_lea.smem [#allocation27], 1
    %224 = sst [smem:[%s223]] 256
    %s225 = scalar_lea.smem [#allocation27], 2
    %226 = sst [smem:[%s225]] 2
    %s227 = scalar_lea.smem [#allocation27], 3
    %228 = sst [smem:[%s227]] 64
    %s229 = scalar_lea.smem [#allocation27], 4
    %230 = sst [smem:[%s229]] 128
    %s231 = scalar_lea.smem [#allocation27], 5
    %232 = sst [smem:[%s231]] 2
    %s233 = scalar_lea.smem [#allocation27], 6
    %234 = sst [smem:[%s233]] 128
    %s235 = scalar_lea.smem [#allocation27], 7
    %236 = sst [smem:[%s235]] 64
    %s237 = scalar_lea.smem [#allocation27], 8
    %238 = sst [smem:[%s237]] 4
    %240 = dma.general %s8, 16384, %s219, %s206, [#allocation26], [#allocation27], %s217, 0
    %s241 = sld [smem:[#allocation5]]
    %s242 = sld [smem:[#allocation5 + $0x1]]
    %s243 = sld [smem:[#allocation10]]
    %s244 = sld [smem:[#allocation10 + $0x1]]
    %v245 = vld [vmem:[#allocation11] sm:$0xff]
    %v246 = vld [vmem:[#allocation11 + $0x8] sm:$0xff]
    %v247 = vld [vmem:[#allocation11 + $0x10] sm:$0xff]
    %v248 = vld [vmem:[#allocation11 + $0x18] sm:$0xff]
    %v249 = vld [vmem:[#allocation11 + $0x20] sm:$0xff]
    %v250 = vld [vmem:[#allocation11 + $0x28] sm:$0xff]
    %v251 = vld [vmem:[#allocation11 + $0x30] sm:$0xff]
    %v252 = vld [vmem:[#allocation11 + $0x38] sm:$0xff]
    %v253 = vld [vmem:[#allocation11 + $0x40] sm:$0xff]
    %v254 = vld [vmem:[#allocation11 + $0x48] sm:$0xff]
    %v255 = vld [vmem:[#allocation11 + $0x50] sm:$0xff]
    %v256 = vld [vmem:[#allocation11 + $0x58] sm:$0xff]
    %v257 = vld [vmem:[#allocation11 + $0x60] sm:$0xff]
    %v258 = vld [vmem:[#allocation11 + $0x68] sm:$0xff]
    %v259 = vld [vmem:[#allocation11 + $0x70] sm:$0xff]
    %v260 = vld [vmem:[#allocation11 + $0x78] sm:$0xff]
    %v261 = vld [vmem:[#allocation11 + $0x80] sm:$0xff]
    %v262 = vld [vmem:[#allocation11 + $0x88] sm:$0xff]
    %v263 = vld [vmem:[#allocation11 + $0x90] sm:$0xff]
    %v264 = vld [vmem:[#allocation11 + $0x98] sm:$0xff]
    %v265 = vld [vmem:[#allocation11 + $0xa0] sm:$0xff]
    %v266 = vld [vmem:[#allocation11 + $0xa8] sm:$0xff]
    %v267 = vld [vmem:[#allocation11 + $0xb0] sm:$0xff]
    %v268 = vld [vmem:[#allocation11 + $0xb8] sm:$0xff]
    %v269 = vld [vmem:[#allocation11 + $0xc0] sm:$0xff]
    %v270 = vld [vmem:[#allocation11 + $0xc8] sm:$0xff]
    %v271 = vld [vmem:[#allocation11 + $0xd0] sm:$0xff]
    %v272 = vld [vmem:[#allocation11 + $0xd8] sm:$0xff]
    %v273 = vld [vmem:[#allocation11 + $0xe0] sm:$0xff]
    %v274 = vld [vmem:[#allocation11 + $0xe8] sm:$0xff]
    %v275 = vld [vmem:[#allocation11 + $0xf0] sm:$0xff]
    %v276 = vld [vmem:[#allocation11 + $0xf8] sm:$0xff]
    %v277 = vstv %s241
    %v278 = vmul.f32 %v277, %v245
    %v279 = vmul.f32 %v277, %v246
    %v280 = vmul.f32 %v277, %v247
    %v281 = vmul.f32 %v277, %v248
    %v282 = vmul.f32 %v277, %v249
    %v283 = vmul.f32 %v277, %v250
    %v284 = vmul.f32 %v277, %v251
    %v285 = vmul.f32 %v277, %v252
    %v286 = vmul.f32 %v277, %v253
    %v287 = vmul.f32 %v277, %v254
    %v288 = vmul.f32 %v277, %v255
    %v289 = vmul.f32 %v277, %v256
    %v290 = vmul.f32 %v277, %v257
    %v291 = vmul.f32 %v277, %v258
    %v292 = vmul.f32 %v277, %v259
    %v293 = vmul.f32 %v277, %v260
    %v294 = vmul.f32 %v277, %v261
    %v295 = vmul.f32 %v277, %v262
    %v296 = vmul.f32 %v277, %v263
    %v297 = vmul.f32 %v277, %v264
    %v298 = vmul.f32 %v277, %v265
    %v299 = vmul.f32 %v277, %v266
    %v300 = vmul.f32 %v277, %v267
    %v301 = vmul.f32 %v277, %v268
    %v302 = vmul.f32 %v277, %v269
    %v303 = vmul.f32 %v277, %v270
    %v304 = vmul.f32 %v277, %v271
    %v305 = vmul.f32 %v277, %v272
    %v306 = vmul.f32 %v277, %v273
    %v307 = vmul.f32 %v277, %v274
    %v308 = vmul.f32 %v277, %v275
    %v309 = vmul.f32 %v277, %v276
    %v310 = vld [vmem:[#allocation12] sm:$0xff]
    %v311 = vld [vmem:[#allocation12 + $0x8] sm:$0xff]
    %v312 = vld [vmem:[#allocation12 + $0x10] sm:$0xff]
    %v313 = vld [vmem:[#allocation12 + $0x18] sm:$0xff]
    %v314 = vld [vmem:[#allocation12 + $0x20] sm:$0xff]
    %v315 = vld [vmem:[#allocation12 + $0x28] sm:$0xff]
    %v316 = vld [vmem:[#allocation12 + $0x30] sm:$0xff]
    %v317 = vld [vmem:[#allocation12 + $0x38] sm:$0xff]
    %v318 = vld [vmem:[#allocation12 + $0x40] sm:$0xff]
    %v319 = vld [vmem:[#allocation12 + $0x48] sm:$0xff]
    %v320 = vld [vmem:[#allocation12 + $0x50] sm:$0xff]
    %v321 = vld [vmem:[#allocation12 + $0x58] sm:$0xff]
    %v322 = vld [vmem:[#allocation12 + $0x60] sm:$0xff]
    %v323 = vld [vmem:[#allocation12 + $0x68] sm:$0xff]
    %v324 = vld [vmem:[#allocation12 + $0x70] sm:$0xff]
    %v325 = vld [vmem:[#allocation12 + $0x78] sm:$0xff]
    %v326 = vld [vmem:[#allocation12 + $0x80] sm:$0xff]
    %v327 = vld [vmem:[#allocation12 + $0x88] sm:$0xff]
    %v328 = vld [vmem:[#allocation12 + $0x90] sm:$0xff]
    %v329 = vld [vmem:[#allocation12 + $0x98] sm:$0xff]
    %v330 = vld [vmem:[#allocation12 + $0xa0] sm:$0xff]
    %v331 = vld [vmem:[#allocation12 + $0xa8] sm:$0xff]
    %v332 = vld [vmem:[#allocation12 + $0xb0] sm:$0xff]
    %v333 = vld [vmem:[#allocation12 + $0xb8] sm:$0xff]
    %v334 = vld [vmem:[#allocation12 + $0xc0] sm:$0xff]
    %v335 = vld [vmem:[#allocation12 + $0xc8] sm:$0xff]
    %v336 = vld [vmem:[#allocation12 + $0xd0] sm:$0xff]
    %v337 = vld [vmem:[#allocation12 + $0xd8] sm:$0xff]
    %v338 = vld [vmem:[#allocation12 + $0xe0] sm:$0xff]
    %v339 = vld [vmem:[#allocation12 + $0xe8] sm:$0xff]
    %v340 = vld [vmem:[#allocation12 + $0xf0] sm:$0xff]
    %v341 = vld [vmem:[#allocation12 + $0xf8] sm:$0xff]
    %v342 = vstv %s242
    %v343 = vmul.f32 %v342, %v310
    %v344 = vmul.f32 %v342, %v311
    %v345 = vmul.f32 %v342, %v312
    %v346 = vmul.f32 %v342, %v313
    %v347 = vmul.f32 %v342, %v314
    %v348 = vmul.f32 %v342, %v315
    %v349 = vmul.f32 %v342, %v316
    %v350 = vmul.f32 %v342, %v317
    %v351 = vmul.f32 %v342, %v318
    %v352 = vmul.f32 %v342, %v319
    %v353 = vmul.f32 %v342, %v320
    %v354 = vmul.f32 %v342, %v321
    %v355 = vmul.f32 %v342, %v322
    %v356 = vmul.f32 %v342, %v323
    %v357 = vmul.f32 %v342, %v324
    %v358 = vmul.f32 %v342, %v325
    %v359 = vmul.f32 %v342, %v326
    %v360 = vmul.f32 %v342, %v327
    %v361 = vmul.f32 %v342, %v328
    %v362 = vmul.f32 %v342, %v329
    %v363 = vmul.f32 %v342, %v330
    %v364 = vmul.f32 %v342, %v331
    %v365 = vmul.f32 %v342, %v332
    %v366 = vmul.f32 %v342, %v333
    %v367 = vmul.f32 %v342, %v334
    %v368 = vmul.f32 %v342, %v335
    %v369 = vmul.f32 %v342, %v336
    %v370 = vmul.f32 %v342, %v337
    %v371 = vmul.f32 %v342, %v338
    %v372 = vmul.f32 %v342, %v339
    %v373 = vmul.f32 %v342, %v340
    %v374 = vmul.f32 %v342, %v341
    %v375 = vadd.f32 %v278, %v343
    %v376 = vadd.f32 %v279, %v344
    %v377 = vadd.f32 %v280, %v345
    %v378 = vadd.f32 %v281, %v346
    %v379 = vadd.f32 %v282, %v347
    %v380 = vadd.f32 %v283, %v348
    %v381 = vadd.f32 %v284, %v349
    %v382 = vadd.f32 %v285, %v350
    %v383 = vadd.f32 %v286, %v351
    %v384 = vadd.f32 %v287, %v352
    %v385 = vadd.f32 %v288, %v353
    %v386 = vadd.f32 %v289, %v354
    %v387 = vadd.f32 %v290, %v355
    %v388 = vadd.f32 %v291, %v356
    %v389 = vadd.f32 %v292, %v357
    %v390 = vadd.f32 %v293, %v358
    %v391 = vadd.f32 %v294, %v359
    %v392 = vadd.f32 %v295, %v360
    %v393 = vadd.f32 %v296, %v361
    %v394 = vadd.f32 %v297, %v362
    %v395 = vadd.f32 %v298, %v363
    %v396 = vadd.f32 %v299, %v364
    %v397 = vadd.f32 %v300, %v365
    %v398 = vadd.f32 %v301, %v366
    %v399 = vadd.f32 %v302, %v367
    %v400 = vadd.f32 %v303, %v368
    %v401 = vadd.f32 %v304, %v369
    %v402 = vadd.f32 %v305, %v370
    %v403 = vadd.f32 %v306, %v371
    %v404 = vadd.f32 %v307, %v372
    %v405 = vadd.f32 %v308, %v373
    %v406 = vadd.f32 %v309, %v374
    %v407 = vmul.f32 %v375, %v375
    %v408 = vmul.f32 %v376, %v376
    %v409 = vmul.f32 %v377, %v377
    %v410 = vmul.f32 %v378, %v378
    %v411 = vmul.f32 %v379, %v379
    %v412 = vmul.f32 %v380, %v380
    %v413 = vmul.f32 %v381, %v381
    %v414 = vmul.f32 %v382, %v382
    %v415 = vmul.f32 %v383, %v383
    %v416 = vmul.f32 %v384, %v384
    %v417 = vmul.f32 %v385, %v385
    %v418 = vmul.f32 %v386, %v386
    %v419 = vmul.f32 %v387, %v387
    %v420 = vmul.f32 %v388, %v388
    %v421 = vmul.f32 %v389, %v389
    %v422 = vmul.f32 %v390, %v390
    %v423 = vmul.f32 %v391, %v391
    %v424 = vmul.f32 %v392, %v392
    %v425 = vmul.f32 %v393, %v393
    %v426 = vmul.f32 %v394, %v394
    %v427 = vmul.f32 %v395, %v395
    %v428 = vmul.f32 %v396, %v396
    %v429 = vmul.f32 %v397, %v397
    %v430 = vmul.f32 %v398, %v398
    %v431 = vmul.f32 %v399, %v399
    %v432 = vmul.f32 %v400, %v400
    %v433 = vmul.f32 %v401, %v401
    %v434 = vmul.f32 %v402, %v402
    %v435 = vmul.f32 %v403, %v403
    %v436 = vmul.f32 %v404, %v404
    %v437 = vmul.f32 %v405, %v405
    %v438 = vmul.f32 %v406, %v406
    %v439 = vadd.f32 %v407, %v408
    %440 = vadd.xlane.f32.xlu0 %v439
    %v441 = vpop.xlane.xlu0 %440
    %v442 = vadd.f32 %v409, %v410
    %443 = vadd.xlane.f32.xlu0 %v442
    %v444 = vpop.xlane.xlu0 %443
    %v445 = vadd.f32 %v411, %v412
    %446 = vadd.xlane.f32.xlu0 %v445
    %v447 = vpop.xlane.xlu0 %446
    %v448 = vadd.f32 %v413, %v414
    %449 = vadd.xlane.f32.xlu0 %v448
    %v450 = vpop.xlane.xlu0 %449
    %v451 = vadd.f32 %v415, %v416
    %452 = vadd.xlane.f32.xlu0 %v451
    %v453 = vpop.xlane.xlu0 %452
    %v454 = vadd.f32 %v417, %v418
    %455 = vadd.xlane.f32.xlu0 %v454
    %v456 = vpop.xlane.xlu0 %455
    %v457 = vadd.f32 %v419, %v420
    %458 = vadd.xlane.f32.xlu0 %v457
    %v459 = vpop.xlane.xlu0 %458
    %v460 = vadd.f32 %v421, %v422
    %461 = vadd.xlane.f32.xlu0 %v460
    %v462 = vpop.xlane.xlu0 %461
    %v463 = vadd.f32 %v423, %v424
    %464 = vadd.xlane.f32.xlu0 %v463
    %v465 = vpop.xlane.xlu0 %464
    %v466 = vadd.f32 %v425, %v426
    %467 = vadd.xlane.f32.xlu0 %v466
    %v468 = vpop.xlane.xlu0 %467
    %v469 = vadd.f32 %v427, %v428
    %470 = vadd.xlane.f32.xlu0 %v469
    %v471 = vpop.xlane.xlu0 %470
    %v472 = vadd.f32 %v429, %v430
    %473 = vadd.xlane.f32.xlu0 %v472
    %v474 = vpop.xlane.xlu0 %473
    %v475 = vadd.f32 %v431, %v432
    %476 = vadd.xlane.f32.xlu0 %v475
    %v477 = vpop.xlane.xlu0 %476
    %v478 = vadd.f32 %v433, %v434
    %479 = vadd.xlane.f32.xlu0 %v478
    %v480 = vpop.xlane.xlu0 %479
    %v481 = vadd.f32 %v435, %v436
    %482 = vadd.xlane.f32.xlu0 %v481
    %v483 = vpop.xlane.xlu0 %482
    %v484 = vadd.f32 %v437, %v438
    %485 = vadd.xlane.f32.xlu0 %v484
    %v486 = vpop.xlane.xlu0 %485
    %v487 = vrcp.pop 256.0
    %v488 = vmul.f32 %v441, %v487
    %v489 = vmul.f32 %v444, %v487
    %v490 = vmul.f32 %v447, %v487
    %v491 = vmul.f32 %v450, %v487
    %v492 = vmul.f32 %v453, %v487
    %v493 = vmul.f32 %v456, %v487
    %v494 = vmul.f32 %v459, %v487
    %v495 = vmul.f32 %v462, %v487
    %v496 = vmul.f32 %v465, %v487
    %v497 = vmul.f32 %v468, %v487
    %v498 = vmul.f32 %v471, %v487
    %v499 = vmul.f32 %v474, %v487
    %v500 = vmul.f32 %v477, %v487
    %v501 = vmul.f32 %v480, %v487
    %v502 = vmul.f32 %v483, %v487
    %v503 = vmul.f32 %v486, %v487
    %v504 = vadd.f32 %v488, 1.1920929e-07
    %v505 = vadd.f32 %v489, 1.1920929e-07
    %v506 = vadd.f32 %v490, 1.1920929e-07
    %v507 = vadd.f32 %v491, 1.1920929e-07
    %v508 = vadd.f32 %v492, 1.1920929e-07
    %v509 = vadd.f32 %v493, 1.1920929e-07
    %v510 = vadd.f32 %v494, 1.1920929e-07
    %v511 = vadd.f32 %v495, 1.1920929e-07
    %v512 = vadd.f32 %v496, 1.1920929e-07
    %v513 = vadd.f32 %v497, 1.1920929e-07
    %v514 = vadd.f32 %v498, 1.1920929e-07
    %v515 = vadd.f32 %v499, 1.1920929e-07
    %v516 = vadd.f32 %v500, 1.1920929e-07
    %v517 = vadd.f32 %v501, 1.1920929e-07
    %v518 = vadd.f32 %v502, 1.1920929e-07
    %v519 = vadd.f32 %v503, 1.1920929e-07
    %v520 = vrsqrt.pop %v504
    %v521 = vrsqrt.pop %v505
    %v522 = vrsqrt.pop %v506
    %v523 = vrsqrt.pop %v507
    %v524 = vrsqrt.pop %v508
    %v525 = vrsqrt.pop %v509
    %v526 = vrsqrt.pop %v510
    %v527 = vrsqrt.pop %v511
    %v528 = vrsqrt.pop %v512
    %v529 = vrsqrt.pop %v513
    %v530 = vrsqrt.pop %v514
    %v531 = vrsqrt.pop %v515
    %v532 = vrsqrt.pop %v516
    %v533 = vrsqrt.pop %v517
    %v534 = vrsqrt.pop %v518
    %v535 = vrsqrt.pop %v519
    %v536 = vmul.f32 %v375, %v520
    %v537 = vmul.f32 %v376, %v520
    %v538 = vmul.f32 %v377, %v521
    %v539 = vmul.f32 %v378, %v521
    %v540 = vmul.f32 %v379, %v522
    %v541 = vmul.f32 %v380, %v522
    %v542 = vmul.f32 %v381, %v523
    %v543 = vmul.f32 %v382, %v523
    %v544 = vmul.f32 %v383, %v524
    %v545 = vmul.f32 %v384, %v524
    %v546 = vmul.f32 %v385, %v525
    %v547 = vmul.f32 %v386, %v525
    %v548 = vmul.f32 %v387, %v526
    %v549 = vmul.f32 %v388, %v526
    %v550 = vmul.f32 %v389, %v527
    %v551 = vmul.f32 %v390, %v527
    %v552 = vmul.f32 %v391, %v528
    %v553 = vmul.f32 %v392, %v528
    %v554 = vmul.f32 %v393, %v529
    %v555 = vmul.f32 %v394, %v529
    %v556 = vmul.f32 %v395, %v530
    %v557 = vmul.f32 %v396, %v530
    %v558 = vmul.f32 %v397, %v531
    %v559 = vmul.f32 %v398, %v531
    %v560 = vmul.f32 %v399, %v532
    %v561 = vmul.f32 %v400, %v532
    %v562 = vmul.f32 %v401, %v533
    %v563 = vmul.f32 %v402, %v533
    %v564 = vmul.f32 %v403, %v534
    %v565 = vmul.f32 %v404, %v534
    %v566 = vmul.f32 %v405, %v535
    %v567 = vmul.f32 %v406, %v535
    %v568 = vpack.c.bf16 %v538, %v536
    %v569 = vpack.c.bf16 %v539, %v537
    %v570 = vpack.c.bf16 %v542, %v540
    %v571 = vpack.c.bf16 %v543, %v541
    %v572 = vpack.c.bf16 %v546, %v544
    %v573 = vpack.c.bf16 %v547, %v545
    %v574 = vpack.c.bf16 %v550, %v548
    %v575 = vpack.c.bf16 %v551, %v549
    %v576 = vpack.c.bf16 %v554, %v552
    %v577 = vpack.c.bf16 %v555, %v553
    %v578 = vpack.c.bf16 %v558, %v556
    %v579 = vpack.c.bf16 %v559, %v557
    %v580 = vpack.c.bf16 %v562, %v560
    %v581 = vpack.c.bf16 %v563, %v561
    %v582 = vpack.c.bf16 %v566, %v564
    %v583 = vpack.c.bf16 %v567, %v565
    %v584 = vld [vmem:[#allocation15] sm:$0xff]
    %v585 = vld [vmem:[#allocation15 + $0x8] sm:$0xff]
    %v586 = vld [vmem:[#allocation15 + $0x10] sm:$0xff]
    %v587 = vld [vmem:[#allocation15 + $0x18] sm:$0xff]
    %v588 = vld [vmem:[#allocation15 + $0x20] sm:$0xff]
    %v589 = vld [vmem:[#allocation15 + $0x28] sm:$0xff]
    %v590 = vld [vmem:[#allocation15 + $0x30] sm:$0xff]
    %v591 = vld [vmem:[#allocation15 + $0x38] sm:$0xff]
    %v592 = vld [vmem:[#allocation15 + $0x40] sm:$0xff]
    %v593 = vld [vmem:[#allocation15 + $0x48] sm:$0xff]
    %v594 = vld [vmem:[#allocation15 + $0x50] sm:$0xff]
    %v595 = vld [vmem:[#allocation15 + $0x58] sm:$0xff]
    %v596 = vld [vmem:[#allocation15 + $0x60] sm:$0xff]
    %v597 = vld [vmem:[#allocation15 + $0x68] sm:$0xff]
    %v598 = vld [vmem:[#allocation15 + $0x70] sm:$0xff]
    %v599 = vld [vmem:[#allocation15 + $0x78] sm:$0xff]
    %v600 = vld [vmem:[#allocation15 + $0x80] sm:$0xff]
    %v601 = vld [vmem:[#allocation15 + $0x88] sm:$0xff]
    %v602 = vld [vmem:[#allocation15 + $0x90] sm:$0xff]
    %v603 = vld [vmem:[#allocation15 + $0x98] sm:$0xff]
    %v604 = vld [vmem:[#allocation15 + $0xa0] sm:$0xff]
    %v605 = vld [vmem:[#allocation15 + $0xa8] sm:$0xff]
    %v606 = vld [vmem:[#allocation15 + $0xb0] sm:$0xff]
    %v607 = vld [vmem:[#allocation15 + $0xb8] sm:$0xff]
    %v608 = vld [vmem:[#allocation15 + $0xc0] sm:$0xff]
    %v609 = vld [vmem:[#allocation15 + $0xc8] sm:$0xff]
    %v610 = vld [vmem:[#allocation15 + $0xd0] sm:$0xff]
    %v611 = vld [vmem:[#allocation15 + $0xd8] sm:$0xff]
    %v612 = vld [vmem:[#allocation15 + $0xe0] sm:$0xff]
    %v613 = vld [vmem:[#allocation15 + $0xe8] sm:$0xff]
    %v614 = vld [vmem:[#allocation15 + $0xf0] sm:$0xff]
    %v615 = vld [vmem:[#allocation15 + $0xf8] sm:$0xff]
    %v616 = vld [vmem:[#allocation15 + $0x100] sm:$0xff]
    %v617 = vld [vmem:[#allocation15 + $0x108] sm:$0xff]
    %v618 = vld [vmem:[#allocation15 + $0x110] sm:$0xff]
    %v619 = vld [vmem:[#allocation15 + $0x118] sm:$0xff]
    %v620 = vld [vmem:[#allocation15 + $0x120] sm:$0xff]
    %v621 = vld [vmem:[#allocation15 + $0x128] sm:$0xff]
    %v622 = vld [vmem:[#allocation15 + $0x130] sm:$0xff]
    %v623 = vld [vmem:[#allocation15 + $0x138] sm:$0xff]
    %v624 = vld [vmem:[#allocation15 + $0x140] sm:$0xff]
    %v625 = vld [vmem:[#allocation15 + $0x148] sm:$0xff]
    %v626 = vld [vmem:[#allocation15 + $0x150] sm:$0xff]
    %v627 = vld [vmem:[#allocation15 + $0x158] sm:$0xff]
    %v628 = vld [vmem:[#allocation15 + $0x160] sm:$0xff]
    %v629 = vld [vmem:[#allocation15 + $0x168] sm:$0xff]
    %v630 = vld [vmem:[#allocation15 + $0x170] sm:$0xff]
    %v631 = vld [vmem:[#allocation15 + $0x178] sm:$0xff]
    %v632 = vld [vmem:[#allocation15 + $0x180] sm:$0xff]
    %v633 = vld [vmem:[#allocation15 + $0x188] sm:$0xff]
    %v634 = vld [vmem:[#allocation15 + $0x190] sm:$0xff]
    %v635 = vld [vmem:[#allocation15 + $0x198] sm:$0xff]
    %v636 = vld [vmem:[#allocation15 + $0x1a0] sm:$0xff]
    %v637 = vld [vmem:[#allocation15 + $0x1a8] sm:$0xff]
    %v638 = vld [vmem:[#allocation15 + $0x1b0] sm:$0xff]
    %v639 = vld [vmem:[#allocation15 + $0x1b8] sm:$0xff]
    %v640 = vld [vmem:[#allocation15 + $0x1c0] sm:$0xff]
    %v641 = vld [vmem:[#allocation15 + $0x1c8] sm:$0xff]
    %v642 = vld [vmem:[#allocation15 + $0x1d0] sm:$0xff]
    %v643 = vld [vmem:[#allocation15 + $0x1d8] sm:$0xff]
    %v644 = vld [vmem:[#allocation15 + $0x1e0] sm:$0xff]
    %v645 = vld [vmem:[#allocation15 + $0x1e8] sm:$0xff]
    %v646 = vld [vmem:[#allocation15 + $0x1f0] sm:$0xff]
    %v647 = vld [vmem:[#allocation15 + $0x1f8] sm:$0xff]
    %v648 = vld [vmem:[#allocation15 + $0x200] sm:$0xff]
    %v649 = vld [vmem:[#allocation15 + $0x208] sm:$0xff]
    %v650 = vld [vmem:[#allocation15 + $0x210] sm:$0xff]
    %v651 = vld [vmem:[#allocation15 + $0x218] sm:$0xff]
    %v652 = vld [vmem:[#allocation15 + $0x220] sm:$0xff]
    %v653 = vld [vmem:[#allocation15 + $0x228] sm:$0xff]
    %v654 = vld [vmem:[#allocation15 + $0x230] sm:$0xff]
    %v655 = vld [vmem:[#allocation15 + $0x238] sm:$0xff]
    %v656 = vld [vmem:[#allocation15 + $0x240] sm:$0xff]
    %v657 = vld [vmem:[#allocation15 + $0x248] sm:$0xff]
    %v658 = vld [vmem:[#allocation15 + $0x250] sm:$0xff]
    %v659 = vld [vmem:[#allocation15 + $0x258] sm:$0xff]
    %v660 = vld [vmem:[#allocation15 + $0x260] sm:$0xff]
    %v661 = vld [vmem:[#allocation15 + $0x268] sm:$0xff]
    %v662 = vld [vmem:[#allocation15 + $0x270] sm:$0xff]
    %v663 = vld [vmem:[#allocation15 + $0x278] sm:$0xff]
    %v664 = vld [vmem:[#allocation15 + $0x280] sm:$0xff]
    %v665 = vld [vmem:[#allocation15 + $0x288] sm:$0xff]
    %v666 = vld [vmem:[#allocation15 + $0x290] sm:$0xff]
    %v667 = vld [vmem:[#allocation15 + $0x298] sm:$0xff]
    %v668 = vld [vmem:[#allocation15 + $0x2a0] sm:$0xff]
    %v669 = vld [vmem:[#allocation15 + $0x2a8] sm:$0xff]
    %v670 = vld [vmem:[#allocation15 + $0x2b0] sm:$0xff]
    %v671 = vld [vmem:[#allocation15 + $0x2b8] sm:$0xff]
    %v672 = vld [vmem:[#allocation15 + $0x2c0] sm:$0xff]
    %v673 = vld [vmem:[#allocation15 + $0x2c8] sm:$0xff]
    %v674 = vld [vmem:[#allocation15 + $0x2d0] sm:$0xff]
    %v675 = vld [vmem:[#allocation15 + $0x2d8] sm:$0xff]
    %v676 = vld [vmem:[#allocation15 + $0x2e0] sm:$0xff]
    %v677 = vld [vmem:[#allocation15 + $0x2e8] sm:$0xff]
    %v678 = vld [vmem:[#allocation15 + $0x2f0] sm:$0xff]
    %v679 = vld [vmem:[#allocation15 + $0x2f8] sm:$0xff]
    %v776 = vunpack.c.l.b16 %v584
    %v777 = vunpack.c.h.b16 %v584
    %v778 = vunpack.c.l.b16 %v585
    %v779 = vunpack.c.h.b16 %v585
    %v780 = vunpack.c.l.b16 %v586
    %v781 = vunpack.c.h.b16 %v586
    %v782 = vunpack.c.l.b16 %v587
    %v783 = vunpack.c.h.b16 %v587
    %v784 = vunpack.c.l.b16 %v588
    %v785 = vunpack.c.h.b16 %v588
    %v786 = vunpack.c.l.b16 %v589
    %v787 = vunpack.c.h.b16 %v589
    %v788 = vunpack.c.l.b16 %v590
    %v789 = vunpack.c.h.b16 %v590
    %v790 = vunpack.c.l.b16 %v591
    %v791 = vunpack.c.h.b16 %v591
    %v792 = vunpack.c.l.b16 %v592
    %v793 = vunpack.c.h.b16 %v592
    %v794 = vunpack.c.l.b16 %v593
    %v795 = vunpack.c.h.b16 %v593
    %v796 = vunpack.c.l.b16 %v594
    %v797 = vunpack.c.h.b16 %v594
    %v798 = vunpack.c.l.b16 %v595
    %v799 = vunpack.c.h.b16 %v595
    %v800 = vunpack.c.l.b16 %v596
    %v801 = vunpack.c.h.b16 %v596
    %v802 = vunpack.c.l.b16 %v597
    %v803 = vunpack.c.h.b16 %v597
    %v804 = vunpack.c.l.b16 %v598
    %v805 = vunpack.c.h.b16 %v598
    %v806 = vunpack.c.l.b16 %v599
    %v807 = vunpack.c.h.b16 %v599
    %v808 = vunpack.c.l.b16 %v600
    %v809 = vunpack.c.h.b16 %v600
    %v810 = vunpack.c.l.b16 %v601
    %v811 = vunpack.c.h.b16 %v601
    %v812 = vunpack.c.l.b16 %v602
    %v813 = vunpack.c.h.b16 %v602
    %v814 = vunpack.c.l.b16 %v603
    %v815 = vunpack.c.h.b16 %v603
    %v816 = vunpack.c.l.b16 %v604
    %v817 = vunpack.c.h.b16 %v604
    %v818 = vunpack.c.l.b16 %v605
    %v819 = vunpack.c.h.b16 %v605
    %v820 = vunpack.c.l.b16 %v606
    %v821 = vunpack.c.h.b16 %v606
    %v822 = vunpack.c.l.b16 %v607
    %v823 = vunpack.c.h.b16 %v607
    %v824 = vunpack.c.l.b16 %v608
    %v825 = vunpack.c.h.b16 %v608
    %v826 = vunpack.c.l.b16 %v609
    %v827 = vunpack.c.h.b16 %v609
    %v828 = vunpack.c.l.b16 %v610
    %v829 = vunpack.c.h.b16 %v610
    %v830 = vunpack.c.l.b16 %v611
    %v831 = vunpack.c.h.b16 %v611
    %v832 = vunpack.c.l.b16 %v612
    %v833 = vunpack.c.h.b16 %v612
    %v834 = vunpack.c.l.b16 %v613
    %v835 = vunpack.c.h.b16 %v613
    %v836 = vunpack.c.l.b16 %v614
    %v837 = vunpack.c.h.b16 %v614
    %v838 = vunpack.c.l.b16 %v615
    %v839 = vunpack.c.h.b16 %v615
    %v840 = vunpack.c.l.b16 %v616
    %v841 = vunpack.c.h.b16 %v616
    %v842 = vunpack.c.l.b16 %v617
    %v843 = vunpack.c.h.b16 %v617
    %v844 = vunpack.c.l.b16 %v618
    %v845 = vunpack.c.h.b16 %v618
    %v846 = vunpack.c.l.b16 %v619
    %v847 = vunpack.c.h.b16 %v619
    %v848 = vunpack.c.l.b16 %v620
    %v849 = vunpack.c.h.b16 %v620
    %v850 = vunpack.c.l.b16 %v621
    %v851 = vunpack.c.h.b16 %v621
    %v852 = vunpack.c.l.b16 %v622
    %v853 = vunpack.c.h.b16 %v622
    %v854 = vunpack.c.l.b16 %v623
    %v855 = vunpack.c.h.b16 %v623
    %v856 = vunpack.c.l.b16 %v624
    %v857 = vunpack.c.h.b16 %v624
    %v858 = vunpack.c.l.b16 %v625
    %v859 = vunpack.c.h.b16 %v625
    %v860 = vunpack.c.l.b16 %v626
    %v861 = vunpack.c.h.b16 %v626
    %v862 = vunpack.c.l.b16 %v627
    %v863 = vunpack.c.h.b16 %v627
    %v864 = vunpack.c.l.b16 %v628
    %v865 = vunpack.c.h.b16 %v628
    %v866 = vunpack.c.l.b16 %v629
    %v867 = vunpack.c.h.b16 %v629
    %v868 = vunpack.c.l.b16 %v630
    %v869 = vunpack.c.h.b16 %v630
    %v870 = vunpack.c.l.b16 %v631
    %v871 = vunpack.c.h.b16 %v631
    %v872 = vunpack.c.l.b16 %v632
    %v873 = vunpack.c.h.b16 %v632
    %v874 = vunpack.c.l.b16 %v633
    %v875 = vunpack.c.h.b16 %v633
    %v876 = vunpack.c.l.b16 %v634
    %v877 = vunpack.c.h.b16 %v634
    %v878 = vunpack.c.l.b16 %v635
    %v879 = vunpack.c.h.b16 %v635
    %v880 = vunpack.c.l.b16 %v636
    %v881 = vunpack.c.h.b16 %v636
    %v882 = vunpack.c.l.b16 %v637
    %v883 = vunpack.c.h.b16 %v637
    %v884 = vunpack.c.l.b16 %v638
    %v885 = vunpack.c.h.b16 %v638
    %v886 = vunpack.c.l.b16 %v639
    %v887 = vunpack.c.h.b16 %v639
    %v888 = vunpack.c.l.b16 %v640
    %v889 = vunpack.c.h.b16 %v640
    %v890 = vunpack.c.l.b16 %v641
    %v891 = vunpack.c.h.b16 %v641
    %v892 = vunpack.c.l.b16 %v642
    %v893 = vunpack.c.h.b16 %v642
    %v894 = vunpack.c.l.b16 %v643
    %v895 = vunpack.c.h.b16 %v643
    %v896 = vunpack.c.l.b16 %v644
    %v897 = vunpack.c.h.b16 %v644
    %v898 = vunpack.c.l.b16 %v645
    %v899 = vunpack.c.h.b16 %v645
    %v900 = vunpack.c.l.b16 %v646
    %v901 = vunpack.c.h.b16 %v646
    %v902 = vunpack.c.l.b16 %v647
    %v903 = vunpack.c.h.b16 %v647
    %v904 = vunpack.c.l.b16 %v648
    %v905 = vunpack.c.h.b16 %v648
    %v906 = vunpack.c.l.b16 %v649
    %v907 = vunpack.c.h.b16 %v649
    %v908 = vunpack.c.l.b16 %v650
    %v909 = vunpack.c.h.b16 %v650
    %v910 = vunpack.c.l.b16 %v651
    %v911 = vunpack.c.h.b16 %v651
    %v912 = vunpack.c.l.b16 %v652
    %v913 = vunpack.c.h.b16 %v652
    %v914 = vunpack.c.l.b16 %v653
    %v915 = vunpack.c.h.b16 %v653
    %v916 = vunpack.c.l.b16 %v654
    %v917 = vunpack.c.h.b16 %v654
    %v918 = vunpack.c.l.b16 %v655
    %v919 = vunpack.c.h.b16 %v655
    %v920 = vunpack.c.l.b16 %v656
    %v921 = vunpack.c.h.b16 %v656
    %v922 = vunpack.c.l.b16 %v657
    %v923 = vunpack.c.h.b16 %v657
    %v924 = vunpack.c.l.b16 %v658
    %v925 = vunpack.c.h.b16 %v658
    %v926 = vunpack.c.l.b16 %v659
    %v927 = vunpack.c.h.b16 %v659
    %v928 = vunpack.c.l.b16 %v660
    %v929 = vunpack.c.h.b16 %v660
    %v930 = vunpack.c.l.b16 %v661
    %v931 = vunpack.c.h.b16 %v661
    %v932 = vunpack.c.l.b16 %v662
    %v933 = vunpack.c.h.b16 %v662
    %v934 = vunpack.c.l.b16 %v663
    %v935 = vunpack.c.h.b16 %v663
    %v936 = vunpack.c.l.b16 %v664
    %v937 = vunpack.c.h.b16 %v664
    %v938 = vunpack.c.l.b16 %v665
    %v939 = vunpack.c.h.b16 %v665
    %v940 = vunpack.c.l.b16 %v666
    %v941 = vunpack.c.h.b16 %v666
    %v942 = vunpack.c.l.b16 %v667
    %v943 = vunpack.c.h.b16 %v667
    %v944 = vunpack.c.l.b16 %v668
    %v945 = vunpack.c.h.b16 %v668
    %v946 = vunpack.c.l.b16 %v669
    %v947 = vunpack.c.h.b16 %v669
    %v948 = vunpack.c.l.b16 %v670
    %v949 = vunpack.c.h.b16 %v670
    %v950 = vunpack.c.l.b16 %v671
    %v951 = vunpack.c.h.b16 %v671
    %v952 = vunpack.c.l.b16 %v672
    %v953 = vunpack.c.h.b16 %v672
    %v954 = vunpack.c.l.b16 %v673
    %v955 = vunpack.c.h.b16 %v673
    %v956 = vunpack.c.l.b16 %v674
    %v957 = vunpack.c.h.b16 %v674
    %v958 = vunpack.c.l.b16 %v675
    %v959 = vunpack.c.h.b16 %v675
    %v960 = vunpack.c.l.b16 %v676
    %v961 = vunpack.c.h.b16 %v676
    %v962 = vunpack.c.l.b16 %v677
    %v963 = vunpack.c.h.b16 %v677
    %v964 = vunpack.c.l.b16 %v678
    %v965 = vunpack.c.h.b16 %v678
    %v966 = vunpack.c.l.b16 %v679
    %v967 = vunpack.c.h.b16 %v679
    %v968 = vpack.c.b16 %v782, %v776
    %v969 = vpack.c.b16 %v783, %v777
    %v970 = vpack.c.b16 %v784, %v778
    %v971 = vpack.c.b16 %v785, %v779
    %v972 = vpack.c.b16 %v786, %v780
    %v973 = vpack.c.b16 %v787, %v781
    %v974 = vpack.c.b16 %v794, %v788
    %v975 = vpack.c.b16 %v795, %v789
    %v976 = vpack.c.b16 %v796, %v790
    %v977 = vpack.c.b16 %v797, %v791
    %v978 = vpack.c.b16 %v798, %v792
    %v979 = vpack.c.b16 %v799, %v793
    %v980 = vpack.c.b16 %v806, %v800
    %v981 = vpack.c.b16 %v807, %v801
    %v982 = vpack.c.b16 %v808, %v802
    %v983 = vpack.c.b16 %v809, %v803
    %v984 = vpack.c.b16 %v810, %v804
    %v985 = vpack.c.b16 %v811, %v805
    %v986 = vpack.c.b16 %v818, %v812
    %v987 = vpack.c.b16 %v819, %v813
    %v988 = vpack.c.b16 %v820, %v814
    %v989 = vpack.c.b16 %v821, %v815
    %v990 = vpack.c.b16 %v822, %v816
    %v991 = vpack.c.b16 %v823, %v817
    %v992 = vpack.c.b16 %v830, %v824
    %v993 = vpack.c.b16 %v831, %v825
    %v994 = vpack.c.b16 %v832, %v826
    %v995 = vpack.c.b16 %v833, %v827
    %v996 = vpack.c.b16 %v834, %v828
    %v997 = vpack.c.b16 %v835, %v829
    %v998 = vpack.c.b16 %v842, %v836
    %v999 = vpack.c.b16 %v843, %v837
    %v1000 = vpack.c.b16 %v844, %v838
    %v1001 = vpack.c.b16 %v845, %v839
    %v1002 = vpack.c.b16 %v846, %v840
    %v1003 = vpack.c.b16 %v847, %v841
    %v1004 = vpack.c.b16 %v854, %v848
    %v1005 = vpack.c.b16 %v855, %v849
    %v1006 = vpack.c.b16 %v856, %v850
    %v1007 = vpack.c.b16 %v857, %v851
    %v1008 = vpack.c.b16 %v858, %v852
    %v1009 = vpack.c.b16 %v859, %v853
    %v1010 = vpack.c.b16 %v866, %v860
    %v1011 = vpack.c.b16 %v867, %v861
    %v1012 = vpack.c.b16 %v868, %v862
    %v1013 = vpack.c.b16 %v869, %v863
    %v1014 = vpack.c.b16 %v870, %v864
    %v1015 = vpack.c.b16 %v871, %v865
    %v1016 = vpack.c.b16 %v878, %v872
    %v1017 = vpack.c.b16 %v879, %v873
    %v1018 = vpack.c.b16 %v880, %v874
    %v1019 = vpack.c.b16 %v881, %v875
    %v1020 = vpack.c.b16 %v882, %v876
    %v1021 = vpack.c.b16 %v883, %v877
    %v1022 = vpack.c.b16 %v890, %v884
    %v1023 = vpack.c.b16 %v891, %v885
    %v1024 = vpack.c.b16 %v892, %v886
    %v1025 = vpack.c.b16 %v893, %v887
    %v1026 = vpack.c.b16 %v894, %v888
    %v1027 = vpack.c.b16 %v895, %v889
    %v1028 = vpack.c.b16 %v902, %v896
    %v1029 = vpack.c.b16 %v903, %v897
    %v1030 = vpack.c.b16 %v904, %v898
    %v1031 = vpack.c.b16 %v905, %v899
    %v1032 = vpack.c.b16 %v906, %v900
    %v1033 = vpack.c.b16 %v907, %v901
    %v1034 = vpack.c.b16 %v914, %v908
    %v1035 = vpack.c.b16 %v915, %v909
    %v1036 = vpack.c.b16 %v916, %v910
    %v1037 = vpack.c.b16 %v917, %v911
    %v1038 = vpack.c.b16 %v918, %v912
    %v1039 = vpack.c.b16 %v919, %v913
    %v1040 = vpack.c.b16 %v926, %v920
    %v1041 = vpack.c.b16 %v927, %v921
    %v1042 = vpack.c.b16 %v928, %v922
    %v1043 = vpack.c.b16 %v929, %v923
    %v1044 = vpack.c.b16 %v930, %v924
    %v1045 = vpack.c.b16 %v931, %v925
    %v1046 = vpack.c.b16 %v938, %v932
    %v1047 = vpack.c.b16 %v939, %v933
    %v1048 = vpack.c.b16 %v940, %v934
    %v1049 = vpack.c.b16 %v941, %v935
    %v1050 = vpack.c.b16 %v942, %v936
    %v1051 = vpack.c.b16 %v943, %v937
    %v1052 = vpack.c.b16 %v950, %v944
    %v1053 = vpack.c.b16 %v951, %v945
    %v1054 = vpack.c.b16 %v952, %v946
    %v1055 = vpack.c.b16 %v953, %v947
    %v1056 = vpack.c.b16 %v954, %v948
    %v1057 = vpack.c.b16 %v955, %v949
    %v1058 = vpack.c.b16 %v962, %v956
    %v1059 = vpack.c.b16 %v963, %v957
    %v1060 = vpack.c.b16 %v964, %v958
    %v1061 = vpack.c.b16 %v965, %v959
    %v1062 = vpack.c.b16 %v966, %v960
    %v1063 = vpack.c.b16 %v967, %v961
    %1160 = vmatprep.subr.bf16.mxu0 %v969
    %1161 = vmatpush1.bf16.msra.mxu0 %v968
    %1162 = vmatprep.subr.bf16.mxu0 %v975
    %1163 = vmatpush1.bf16.msra.mxu0 %v974
    %1164 = vmatprep.subr.bf16.mxu0 %v981
    %1165 = vmatpush1.bf16.msra.mxu0 %v980
    %1166 = vmatprep.subr.bf16.mxu0 %v987
    %1167 = vmatpush1.bf16.msra.mxu0 %v986
    %1168 = vmatprep.subr.bf16.mxu0 %v993
    %1169 = vmatpush1.bf16.msra.mxu0 %v992
    %1170 = vmatprep.subr.bf16.mxu0 %v999
    %1171 = vmatpush1.bf16.msra.mxu0 %v998
    %1172 = vmatprep.subr.bf16.mxu0 %v1005
    %1173 = vmatpush1.bf16.msra.mxu0 %v1004
    %1174 = vmatprep.subr.bf16.mxu0 %v1011
    %1175 = vmatpush1.bf16.msra.mxu0 %v1010
    %1176 = vmatprep.subr.bf16.mxu0 %v1017
    %1177 = vmatpush1.bf16.msra.mxu0 %v1016
    %1178 = vmatprep.subr.bf16.mxu0 %v1023
    %1179 = vmatpush1.bf16.msra.mxu0 %v1022
    %1180 = vmatprep.subr.bf16.mxu0 %v1029
    %1181 = vmatpush1.bf16.msra.mxu0 %v1028
    %1182 = vmatprep.subr.bf16.mxu0 %v1035
    %1183 = vmatpush1.bf16.msra.mxu0 %v1034
    %1184 = vmatprep.subr.bf16.mxu0 %v1041
    %1185 = vmatpush1.bf16.msra.mxu0 %v1040
    %1186 = vmatprep.subr.bf16.mxu0 %v1047
    %1187 = vmatpush1.bf16.msra.mxu0 %v1046
    %1188 = vmatprep.subr.bf16.mxu0 %v1053
    %1189 = vmatpush1.bf16.msra.mxu0 %v1052
    %1190 = vmatprep.subr.bf16.mxu0 %v1059
    %1191 = vmatpush1.bf16.msra.mxu0 %v1058
    %1192 = vmatprep.mubr.bf16.mxu0 %v569
    %1193 = vmatmul.mubr.bf16.gmra.mrb[0].mxu0 %v568
    %v1194 = vpop.f32.mrb[0].mxu0
    %v1195 = vadd.f32 0.0, %v1194
    %v1196 = vpop.f32.mrb[0].mxu0
    %v1197 = vadd.f32 0.0, %v1196
    %v1198 = vpop.f32.mrb[0].mxu0
    %v1199 = vadd.f32 0.0, %v1198
    %v1200 = vpop.f32.mrb[0].mxu0
    %v1201 = vadd.f32 0.0, %v1200
    %1202 = vmatprep.mubr.bf16.mxu0 %v571
    %1203 = vmatmul.mubr.bf16.gmra.mrb[0].mxu0 %v570
    %v1204 = vpop.f32.mrb[0].mxu0
    %v1205 = vadd.f32 0.0, %v1204
    %v1206 = vpop.f32.mrb[0].mxu0
    %v1207 = vadd.f32 0.0, %v1206
    %v1208 = vpop.f32.mrb[0].mxu0
    %v1209 = vadd.f32 0.0, %v1208
    %v1210 = vpop.f32.mrb[0].mxu0
    %v1211 = vadd.f32 0.0, %v1210
    %1212 = vmatprep.mubr.bf16.mxu0 %v573
    %1213 = vmatmul.mubr.bf16.gmra.mrb[0].mxu0 %v572
    %v1214 = vpop.f32.mrb[0].mxu0
    %v1215 = vadd.f32 0.0, %v1214
    %v1216 = vpop.f32.mrb[0].mxu0
    %v1217 = vadd.f32 0.0, %v1216
    %v1218 = vpop.f32.mrb[0].mxu0
    %v1219 = vadd.f32 0.0, %v1218
    %v1220 = vpop.f32.mrb[0].mxu0
    %v1221 = vadd.f32 0.0, %v1220
    %1222 = vmatprep.mubr.bf16.mxu0 %v575
    %1223 = vmatmul.mubr.bf16.gmra.mrb[0].mxu0 %v574
    %v1224 = vpop.f32.mrb[0].mxu0
    %v1225 = vadd.f32 0.0, %v1224
    %v1226 = vpop.f32.mrb[0].mxu0
    %v1227 = vadd.f32 0.0, %v1226
    %v1228 = vpop.f32.mrb[0].mxu0
    %v1229 = vadd.f32 0.0, %v1228
    %v1230 = vpop.f32.mrb[0].mxu0
    %v1231 = vadd.f32 0.0, %v1230
    %1232 = vmatprep.mubr.bf16.mxu0 %v577
    %1233 = vmatmul.mubr.bf16.gmra.mrb[0].mxu0 %v576
    %v1234 = vpop.f32.mrb[0].mxu0
    %v1235 = vadd.f32 0.0, %v1234
    %v1236 = vpop.f32.mrb[0].mxu0
    %v1237 = vadd.f32 0.0, %v1236
    %v1238 = vpop.f32.mrb[0].mxu0
    %v1239 = vadd.f32 0.0, %v1238
    %v1240 = vpop.f32.mrb[0].mxu0
    %v1241 = vadd.f32 0.0, %v1240
    %1242 = vmatprep.mubr.bf16.mxu0 %v579
    %1243 = vmatmul.mubr.bf16.gmra.mrb[0].mxu0 %v578
    %v1244 = vpop.f32.mrb[0].mxu0
    %v1245 = vadd.f32 0.0, %v1244
    %v1246 = vpop.f32.mrb[0].mxu0
    %v1247 = vadd.f32 0.0, %v1246
    %v1248 = vpop.f32.mrb[0].mxu0
    %v1249 = vadd.f32 0.0, %v1248
    %v1250 = vpop.f32.mrb[0].mxu0
    %v1251 = vadd.f32 0.0, %v1250
    %1252 = vmatprep.mubr.bf16.mxu0 %v581
    %1253 = vmatmul.mubr.bf16.gmra.mrb[0].mxu0 %v580
    %v1254 = vpop.f32.mrb[0].mxu0
    %v1255 = vadd.f32 0.0, %v1254
    %v1256 = vpop.f32.mrb[0].mxu0
    %v1257 = vadd.f32 0.0, %v1256
    %v1258 = vpop.f32.mrb[0].mxu0
    %v1259 = vadd.f32 0.0, %v1258
    %v1260 = vpop.f32.mrb[0].mxu0
    %v1261 = vadd.f32 0.0, %v1260
    %1262 = vmatprep.mubr.bf16.mxu0 %v583
    %1263 = vmatmul.mubr.bf16.gmra.mrb[0].mxu0 %v582
    %v1264 = vpop.f32.mrb[0].mxu0
    %v1265 = vadd.f32 0.0, %v1264
    %v1266 = vpop.f32.mrb[0].mxu0
    %v1267 = vadd.f32 0.0, %v1266
    %v1268 = vpop.f32.mrb[0].mxu0
    %v1269 = vadd.f32 0.0, %v1268
    %v1270 = vpop.f32.mrb[0].mxu0
    %v1271 = vadd.f32 0.0, %v1270
    %1272 = vdwg.mxu0
    %1273 = vmatprep.subr.bf16.mxu0 %v971
    %1274 = vmatpush1.bf16.msra.mxu0 %v970
    %1275 = vmatprep.subr.bf16.mxu0 %v977
    %1276 = vmatpush1.bf16.msra.mxu0 %v976
    %1277 = vmatprep.subr.bf16.mxu0 %v983
    %1278 = vmatpush1.bf16.msra.mxu0 %v982
    %1279 = vmatprep.subr.bf16.mxu0 %v989
    %1280 = vmatpush1.bf16.msra.mxu0 %v988
    %1281 = vmatprep.subr.bf16.mxu0 %v995
    %1282 = vmatpush1.bf16.msra.mxu0 %v994
    %1283 = vmatprep.subr.bf16.mxu0 %v1001
    %1284 = vmatpush1.bf16.msra.mxu0 %v1000
    %1285 = vmatprep.subr.bf16.mxu0 %v1007
    %1286 = vmatpush1.bf16.msra.mxu0 %v1006
    %1287 = vmatprep.subr.bf16.mxu0 %v1013
    %1288 = vmatpush1.bf16.msra.mxu0 %v1012
    %1289 = vmatprep.subr.bf16.mxu0 %v1019
    %1290 = vmatpush1.bf16.msra.mxu0 %v1018
    %1291 = vmatprep.subr.bf16.mxu0 %v1025
    %1292 = vmatpush1.bf16.msra.mxu0 %v1024
    %1293 = vmatprep.subr.bf16.mxu0 %v1031
    %1294 = vmatpush1.bf16.msra.mxu0 %v1030
    %1295 = vmatprep.subr.bf16.mxu0 %v1037
    %1296 = vmatpush1.bf16.msra.mxu0 %v1036
    %1297 = vmatprep.subr.bf16.mxu0 %v1043
    %1298 = vmatpush1.bf16.msra.mxu0 %v1042
    %1299 = vmatprep.subr.bf16.mxu0 %v1049
    %1300 = vmatpush1.bf16.msra.mxu0 %v1048
    %1301 = vmatprep.subr.bf16.mxu0 %v1055
    %1302 = vmatpush1.bf16.msra.mxu0 %v1054
    %1303 = vmatprep.subr.bf16.mxu0 %v1061
    %1304 = vmatpush1.bf16.msra.mxu0 %v1060
    %1305 = vmatprep.mubr.bf16.mxu0 %v569
    %1306 = vmatmul.mubr.bf16.gmra.mrb[0].mxu0 %v568
    %v1307 = vpop.f32.mrb[0].mxu0
    %v1308 = vadd.f32 0.0, %v1307
    %v1309 = vpop.f32.mrb[0].mxu0
    %v1310 = vadd.f32 0.0, %v1309
    %v1311 = vpop.f32.mrb[0].mxu0
    %v1312 = vadd.f32 0.0, %v1311
    %v1313 = vpop.f32.mrb[0].mxu0
    %v1314 = vadd.f32 0.0, %v1313
    %1315 = vmatprep.mubr.bf16.mxu0 %v571
    %1316 = vmatmul.mubr.bf16.gmra.mrb[0].mxu0 %v570
    %v1317 = vpop.f32.mrb[0].mxu0
    %v1318 = vadd.f32 0.0, %v1317
    %v1319 = vpop.f32.mrb[0].mxu0
    %v1320 = vadd.f32 0.0, %v1319
    %v1321 = vpop.f32.mrb[0].mxu0
    %v1322 = vadd.f32 0.0, %v1321
    %v1323 = vpop.f32.mrb[0].mxu0
    %v1324 = vadd.f32 0.0, %v1323
    %1325 = vmatprep.mubr.bf16.mxu0 %v573
    %1326 = vmatmul.mubr.bf16.gmra.mrb[0].mxu0 %v572
    %v1327 = vpop.f32.mrb[0].mxu0
    %v1328 = vadd.f32 0.0, %v1327
    %v1329 = vpop.f32.mrb[0].mxu0
    %v1330 = vadd.f32 0.0, %v1329
    %v1331 = vpop.f32.mrb[0].mxu0
    %v1332 = vadd.f32 0.0, %v1331
    %v1333 = vpop.f32.mrb[0].mxu0
    %v1334 = vadd.f32 0.0, %v1333
    %1335 = vmatprep.mubr.bf16.mxu0 %v575
    %1336 = vmatmul.mubr.bf16.gmra.mrb[0].mxu0 %v574
    %v1337 = vpop.f32.mrb[0].mxu0
    %v1338 = vadd.f32 0.0, %v1337
    %v1339 = vpop.f32.mrb[0].mxu0
    %v1340 = vadd.f32 0.0, %v1339
    %v1341 = vpop.f32.mrb[0].mxu0
    %v1342 = vadd.f32 0.0, %v1341
    %v1343 = vpop.f32.mrb[0].mxu0
    %v1344 = vadd.f32 0.0, %v1343
    %1345 = vmatprep.mubr.bf16.mxu0 %v577
    %1346 = vmatmul.mubr.bf16.gmra.mrb[0].mxu0 %v576
    %v1347 = vpop.f32.mrb[0].mxu0
    %v1348 = vadd.f32 0.0, %v1347
    %v1349 = vpop.f32.mrb[0].mxu0
    %v1350 = vadd.f32 0.0, %v1349
    %v1351 = vpop.f32.mrb[0].mxu0
    %v1352 = vadd.f32 0.0, %v1351
    %v1353 = vpop.f32.mrb[0].mxu0
    %v1354 = vadd.f32 0.0, %v1353
    %1355 = vmatprep.mubr.bf16.mxu0 %v579
    %1356 = vmatmul.mubr.bf16.gmra.mrb[0].mxu0 %v578
    %v1357 = vpop.f32.mrb[0].mxu0
    %v1358 = vadd.f32 0.0, %v1357
    %v1359 = vpop.f32.mrb[0].mxu0
    %v1360 = vadd.f32 0.0, %v1359
    %v1361 = vpop.f32.mrb[0].mxu0
    %v1362 = vadd.f32 0.0, %v1361
    %v1363 = vpop.f32.mrb[0].mxu0
    %v1364 = vadd.f32 0.0, %v1363
    %1365 = vmatprep.mubr.bf16.mxu0 %v581
    %1366 = vmatmul.mubr.bf16.gmra.mrb[0].mxu0 %v580
    %v1367 = vpop.f32.mrb[0].mxu0
    %v1368 = vadd.f32 0.0, %v1367
    %v1369 = vpop.f32.mrb[0].mxu0
    %v1370 = vadd.f32 0.0, %v1369
    %v1371 = vpop.f32.mrb[0].mxu0
    %v1372 = vadd.f32 0.0, %v1371
    %v1373 = vpop.f32.mrb[0].mxu0
    %v1374 = vadd.f32 0.0, %v1373
    %1375 = vmatprep.mubr.bf16.mxu0 %v583
    %1376 = vmatmul.mubr.bf16.gmra.mrb[0].mxu0 %v582
    %v1377 = vpop.f32.mrb[0].mxu0
    %v1378 = vadd.f32 0.0, %v1377
    %v1379 = vpop.f32.mrb[0].mxu0
    %v1380 = vadd.f32 0.0, %v1379
    %v1381 = vpop.f32.mrb[0].mxu0
    %v1382 = vadd.f32 0.0, %v1381
    %v1383 = vpop.f32.mrb[0].mxu0
    %v1384 = vadd.f32 0.0, %v1383
    %1385 = vdwg.mxu0
    %1386 = vmatprep.subr.bf16.mxu0 %v973
    %1387 = vmatpush1.bf16.msra.mxu0 %v972
    %1388 = vmatprep.subr.bf16.mxu0 %v979
    %1389 = vmatpush1.bf16.msra.mxu0 %v978
    %1390 = vmatprep.subr.bf16.mxu0 %v985
    %1391 = vmatpush1.bf16.msra.mxu0 %v984
    %1392 = vmatprep.subr.bf16.mxu0 %v991
    %1393 = vmatpush1.bf16.msra.mxu0 %v990
    %1394 = vmatprep.subr.bf16.mxu0 %v997
    %1395 = vmatpush1.bf16.msra.mxu0 %v996
    %1396 = vmatprep.subr.bf16.mxu0 %v1003
    %1397 = vmatpush1.bf16.msra.mxu0 %v1002
    %1398 = vmatprep.subr.bf16.mxu0 %v1009
    %1399 = vmatpush1.bf16.msra.mxu0 %v1008
    %1400 = vmatprep.subr.bf16.mxu0 %v1015
    %1401 = vmatpush1.bf16.msra.mxu0 %v1014
    %1402 = vmatprep.subr.bf16.mxu0 %v1021
    %1403 = vmatpush1.bf16.msra.mxu0 %v1020
    %1404 = vmatprep.subr.bf16.mxu0 %v1027
    %1405 = vmatpush1.bf16.msra.mxu0 %v1026
    %1406 = vmatprep.subr.bf16.mxu0 %v1033
    %1407 = vmatpush1.bf16.msra.mxu0 %v1032
    %1408 = vmatprep.subr.bf16.mxu0 %v1039
    %1409 = vmatpush1.bf16.msra.mxu0 %v1038
    %1410 = vmatprep.subr.bf16.mxu0 %v1045
    %1411 = vmatpush1.bf16.msra.mxu0 %v1044
    %1412 = vmatprep.subr.bf16.mxu0 %v1051
    %1413 = vmatpush1.bf16.msra.mxu0 %v1050
    %1414 = vmatprep.subr.bf16.mxu0 %v1057
    %1415 = vmatpush1.bf16.msra.mxu0 %v1056
    %1416 = vmatprep.subr.bf16.mxu0 %v1063
    %1417 = vmatpush1.bf16.msra.mxu0 %v1062
    %1418 = vmatprep.mubr.bf16.mxu0 %v569
    %1419 = vmatmul.mubr.bf16.gmra.mrb[0].mxu0 %v568
    %v1420 = vpop.f32.mrb[0].mxu0
    %v1421 = vadd.f32 0.0, %v1420
    %v1422 = vpop.f32.mrb[0].mxu0
    %v1423 = vadd.f32 0.0, %v1422
    %v1424 = vpop.f32.mrb[0].mxu0
    %v1425 = vadd.f32 0.0, %v1424
    %v1426 = vpop.f32.mrb[0].mxu0
    %v1427 = vadd.f32 0.0, %v1426
    %1428 = vmatprep.mubr.bf16.mxu0 %v571
    %1429 = vmatmul.mubr.bf16.gmra.mrb[0].mxu0 %v570
    %v1430 = vpop.f32.mrb[0].mxu0
    %v1431 = vadd.f32 0.0, %v1430
    %v1432 = vpop.f32.mrb[0].mxu0
    %v1433 = vadd.f32 0.0, %v1432
    %v1434 = vpop.f32.mrb[0].mxu0
    %v1435 = vadd.f32 0.0, %v1434
    %v1436 = vpop.f32.mrb[0].mxu0
    %v1437 = vadd.f32 0.0, %v1436
    %1438 = vmatprep.mubr.bf16.mxu0 %v573
    %1439 = vmatmul.mubr.bf16.gmra.mrb[0].mxu0 %v572
    %v1440 = vpop.f32.mrb[0].mxu0
    %v1441 = vadd.f32 0.0, %v1440
    %v1442 = vpop.f32.mrb[0].mxu0
    %v1443 = vadd.f32 0.0, %v1442
    %v1444 = vpop.f32.mrb[0].mxu0
    %v1445 = vadd.f32 0.0, %v1444
    %v1446 = vpop.f32.mrb[0].mxu0
    %v1447 = vadd.f32 0.0, %v1446
    %1448 = vmatprep.mubr.bf16.mxu0 %v575
    %1449 = vmatmul.mubr.bf16.gmra.mrb[0].mxu0 %v574
    %v1450 = vpop.f32.mrb[0].mxu0
    %v1451 = vadd.f32 0.0, %v1450
    %v1452 = vpop.f32.mrb[0].mxu0
    %v1453 = vadd.f32 0.0, %v1452
    %v1454 = vpop.f32.mrb[0].mxu0
    %v1455 = vadd.f32 0.0, %v1454
    %v1456 = vpop.f32.mrb[0].mxu0
    %v1457 = vadd.f32 0.0, %v1456
    %1458 = vmatprep.mubr.bf16.mxu0 %v577
    %1459 = vmatmul.mubr.bf16.gmra.mrb[0].mxu0 %v576
    %v1460 = vpop.f32.mrb[0].mxu0
    %v1461 = vadd.f32 0.0, %v1460
    %v1462 = vpop.f32.mrb[0].mxu0
    %v1463 = vadd.f32 0.0, %v1462
    %v1464 = vpop.f32.mrb[0].mxu0
    %v1465 = vadd.f32 0.0, %v1464
    %v1466 = vpop.f32.mrb[0].mxu0
    %v1467 = vadd.f32 0.0, %v1466
    %1468 = vmatprep.mubr.bf16.mxu0 %v579
    %1469 = vmatmul.mubr.bf16.gmra.mrb[0].mxu0 %v578
    %v1470 = vpop.f32.mrb[0].mxu0
    %v1471 = vadd.f32 0.0, %v1470
    %v1472 = vpop.f32.mrb[0].mxu0
    %v1473 = vadd.f32 0.0, %v1472
    %v1474 = vpop.f32.mrb[0].mxu0
    %v1475 = vadd.f32 0.0, %v1474
    %v1476 = vpop.f32.mrb[0].mxu0
    %v1477 = vadd.f32 0.0, %v1476
    %1478 = vmatprep.mubr.bf16.mxu0 %v581
    %1479 = vmatmul.mubr.bf16.gmra.mrb[0].mxu0 %v580
    %v1480 = vpop.f32.mrb[0].mxu0
    %v1481 = vadd.f32 0.0, %v1480
    %v1482 = vpop.f32.mrb[0].mxu0
    %v1483 = vadd.f32 0.0, %v1482
    %v1484 = vpop.f32.mrb[0].mxu0
    %v1485 = vadd.f32 0.0, %v1484
    %v1486 = vpop.f32.mrb[0].mxu0
    %v1487 = vadd.f32 0.0, %v1486
    %1488 = vmatprep.mubr.bf16.mxu0 %v583
    %1489 = vmatmul.mubr.bf16.gmra.mrb[0].mxu0 %v582
    %v1490 = vpop.f32.mrb[0].mxu0
    %v1491 = vadd.f32 0.0, %v1490
    %v1492 = vpop.f32.mrb[0].mxu0
    %v1493 = vadd.f32 0.0, %v1492
    %v1494 = vpop.f32.mrb[0].mxu0
    %v1495 = vadd.f32 0.0, %v1494
    %v1496 = vpop.f32.mrb[0].mxu0
    %v1497 = vadd.f32 0.0, %v1496
    %1498 = vdwg.mxu0
    %v1499 = vld [vmem:[#allocation18] sm:$0xff]
    %v1500 = vld [vmem:[#allocation18 + $0x8] sm:$0xff]
    %v1501 = vld [vmem:[#allocation18 + $0x10] sm:$0xff]
    %v1502 = vld [vmem:[#allocation18 + $0x18] sm:$0xff]
    %v1503 = vld [vmem:[#allocation18 + $0x20] sm:$0xff]
    %v1504 = vld [vmem:[#allocation18 + $0x28] sm:$0xff]
    %v1505 = vld [vmem:[#allocation18 + $0x30] sm:$0xff]
    %v1506 = vld [vmem:[#allocation18 + $0x38] sm:$0xff]
    %v1507 = vld [vmem:[#allocation18 + $0x40] sm:$0xff]
    %v1508 = vld [vmem:[#allocation18 + $0x48] sm:$0xff]
    %v1509 = vld [vmem:[#allocation18 + $0x50] sm:$0xff]
    %v1510 = vld [vmem:[#allocation18 + $0x58] sm:$0xff]
    %v1511 = vld [vmem:[#allocation18 + $0x60] sm:$0xff]
    %v1512 = vld [vmem:[#allocation18 + $0x68] sm:$0xff]
    %v1513 = vld [vmem:[#allocation18 + $0x70] sm:$0xff]
    %v1514 = vld [vmem:[#allocation18 + $0x78] sm:$0xff]
    %v1515 = vld [vmem:[#allocation20] sm:$0xff]
    %v1516 = vld [vmem:[#allocation20 + $0x8] sm:$0xff]
    %v1517 = vld [vmem:[#allocation20 + $0x10] sm:$0xff]
    %v1518 = vld [vmem:[#allocation20 + $0x18] sm:$0xff]
    %v1519 = vld [vmem:[#allocation20 + $0x20] sm:$0xff]
    %v1520 = vld [vmem:[#allocation20 + $0x28] sm:$0xff]
    %v1521 = vld [vmem:[#allocation20 + $0x30] sm:$0xff]
    %v1522 = vld [vmem:[#allocation20 + $0x38] sm:$0xff]
    %v1523 = vld [vmem:[#allocation20 + $0x40] sm:$0xff]
    %v1524 = vld [vmem:[#allocation20 + $0x48] sm:$0xff]
    %v1525 = vld [vmem:[#allocation20 + $0x50] sm:$0xff]
    %v1526 = vld [vmem:[#allocation20 + $0x58] sm:$0xff]
    %v1527 = vld [vmem:[#allocation20 + $0x60] sm:$0xff]
    %v1528 = vld [vmem:[#allocation20 + $0x68] sm:$0xff]
    %v1529 = vld [vmem:[#allocation20 + $0x70] sm:$0xff]
    %v1530 = vld [vmem:[#allocation20 + $0x78] sm:$0xff]
    %v1531 = vld [vmem:[#allocation21] sm:$0xff]
    %v1532 = vld [vmem:[#allocation21 + $0x8] sm:$0xff]
    %v1533 = vld [vmem:[#allocation21 + $0x10] sm:$0xff]
    %v1534 = vld [vmem:[#allocation21 + $0x18] sm:$0xff]
    %v1535 = vld [vmem:[#allocation21 + $0x20] sm:$0xff]
    %v1536 = vld [vmem:[#allocation21 + $0x28] sm:$0xff]
    %v1537 = vld [vmem:[#allocation21 + $0x30] sm:$0xff]
    %v1538 = vld [vmem:[#allocation21 + $0x38] sm:$0xff]
    %v1539 = vld [vmem:[#allocation21 + $0x40] sm:$0xff]
    %v1540 = vld [vmem:[#allocation21 + $0x48] sm:$0xff]
    %v1541 = vld [vmem:[#allocation21 + $0x50] sm:$0xff]
    %v1542 = vld [vmem:[#allocation21 + $0x58] sm:$0xff]
    %v1543 = vld [vmem:[#allocation21 + $0x60] sm:$0xff]
    %v1544 = vld [vmem:[#allocation21 + $0x68] sm:$0xff]
    %v1545 = vld [vmem:[#allocation21 + $0x70] sm:$0xff]
    %v1546 = vld [vmem:[#allocation21 + $0x78] sm:$0xff]
    %v1547 = vld [vmem:[#allocation17] sm:$0xff]
    %v1548 = vld [vmem:[#allocation17 + $0x8] sm:$0xff]
    %v1549 = vld [vmem:[#allocation17 + $0x10] sm:$0xff]
    %v1550 = vld [vmem:[#allocation17 + $0x18] sm:$0xff]
    %v1551 = vld [vmem:[#allocation17 + $0x20] sm:$0xff]
    %v1552 = vld [vmem:[#allocation17 + $0x28] sm:$0xff]
    %v1553 = vld [vmem:[#allocation17 + $0x30] sm:$0xff]
    %v1554 = vld [vmem:[#allocation17 + $0x38] sm:$0xff]
    %v1555 = vld [vmem:[#allocation17 + $0x40] sm:$0xff]
    %v1556 = vld [vmem:[#allocation17 + $0x48] sm:$0xff]
    %v1557 = vld [vmem:[#allocation17 + $0x50] sm:$0xff]
    %v1558 = vld [vmem:[#allocation17 + $0x58] sm:$0xff]
    %v1559 = vld [vmem:[#allocation17 + $0x60] sm:$0xff]
    %v1560 = vld [vmem:[#allocation17 + $0x68] sm:$0xff]
    %v1561 = vld [vmem:[#allocation17 + $0x70] sm:$0xff]
    %v1562 = vld [vmem:[#allocation17 + $0x78] sm:$0xff]
    %v1563 = vld [vmem:[#allocation17 + $0x80] sm:$0xff]
    %v1564 = vld [vmem:[#allocation17 + $0x88] sm:$0xff]
    %v1565 = vld [vmem:[#allocation17 + $0x90] sm:$0xff]
    %v1566 = vld [vmem:[#allocation17 + $0x98] sm:$0xff]
    %v1567 = vld [vmem:[#allocation17 + $0xa0] sm:$0xff]
    %v1568 = vld [vmem:[#allocation17 + $0xa8] sm:$0xff]
    %v1569 = vld [vmem:[#allocation17 + $0xb0] sm:$0xff]
    %v1570 = vld [vmem:[#allocation17 + $0xb8] sm:$0xff]
    %v1571 = vld [vmem:[#allocation17 + $0xc0] sm:$0xff]
    %v1572 = vld [vmem:[#allocation17 + $0xc8] sm:$0xff]
    %v1573 = vld [vmem:[#allocation17 + $0xd0] sm:$0xff]
    %v1574 = vld [vmem:[#allocation17 + $0xd8] sm:$0xff]
    %v1575 = vld [vmem:[#allocation17 + $0xe0] sm:$0xff]
    %v1576 = vld [vmem:[#allocation17 + $0xe8] sm:$0xff]
    %v1577 = vld [vmem:[#allocation17 + $0xf0] sm:$0xff]
    %v1578 = vld [vmem:[#allocation17 + $0xf8] sm:$0xff]
    %v1579 = vmul.f32 %v1195, %v1195
    %v1580 = vmul.f32 %v1199, %v1199
    %v1581 = vmul.f32 %v1205, %v1205
    %v1582 = vmul.f32 %v1209, %v1209
    %v1583 = vmul.f32 %v1215, %v1215
    %v1584 = vmul.f32 %v1219, %v1219
    %v1585 = vmul.f32 %v1225, %v1225
    %v1586 = vmul.f32 %v1229, %v1229
    %v1587 = vmul.f32 %v1235, %v1235
    %v1588 = vmul.f32 %v1239, %v1239
    %v1589 = vmul.f32 %v1245, %v1245
    %v1590 = vmul.f32 %v1249, %v1249
    %v1591 = vmul.f32 %v1255, %v1255
    %v1592 = vmul.f32 %v1259, %v1259
    %v1593 = vmul.f32 %v1265, %v1265
    %v1594 = vmul.f32 %v1269, %v1269
    %1595 = vadd.xlane.f32.xlu0 %v1579
    %v1596 = vpop.xlane.xlu0 %1595
    %1597 = vadd.xlane.f32.xlu0 %v1580
    %v1598 = vpop.xlane.xlu0 %1597
    %1599 = vadd.xlane.f32.xlu0 %v1581
    %v1600 = vpop.xlane.xlu0 %1599
    %1601 = vadd.xlane.f32.xlu0 %v1582
    %v1602 = vpop.xlane.xlu0 %1601
    %1603 = vadd.xlane.f32.xlu0 %v1583
    %v1604 = vpop.xlane.xlu0 %1603
    %1605 = vadd.xlane.f32.xlu0 %v1584
    %v1606 = vpop.xlane.xlu0 %1605
    %1607 = vadd.xlane.f32.xlu0 %v1585
    %v1608 = vpop.xlane.xlu0 %1607
    %1609 = vadd.xlane.f32.xlu0 %v1586
    %v1610 = vpop.xlane.xlu0 %1609
    %1611 = vadd.xlane.f32.xlu0 %v1587
    %v1612 = vpop.xlane.xlu0 %1611
    %1613 = vadd.xlane.f32.xlu0 %v1588
    %v1614 = vpop.xlane.xlu0 %1613
    %1615 = vadd.xlane.f32.xlu0 %v1589
    %v1616 = vpop.xlane.xlu0 %1615
    %1617 = vadd.xlane.f32.xlu0 %v1590
    %v1618 = vpop.xlane.xlu0 %1617
    %1619 = vadd.xlane.f32.xlu0 %v1591
    %v1620 = vpop.xlane.xlu0 %1619
    %1621 = vadd.xlane.f32.xlu0 %v1592
    %v1622 = vpop.xlane.xlu0 %1621
    %1623 = vadd.xlane.f32.xlu0 %v1593
    %v1624 = vpop.xlane.xlu0 %1623
    %1625 = vadd.xlane.f32.xlu0 %v1594
    %v1626 = vpop.xlane.xlu0 %1625
    %v1627 = vrcp.pop 128.0
    %v1628 = vmul.f32 %v1596, %v1627
    %v1629 = vmul.f32 %v1598, %v1627
    %v1630 = vmul.f32 %v1600, %v1627
    %v1631 = vmul.f32 %v1602, %v1627
    %v1632 = vmul.f32 %v1604, %v1627
    %v1633 = vmul.f32 %v1606, %v1627
    %v1634 = vmul.f32 %v1608, %v1627
    %v1635 = vmul.f32 %v1610, %v1627
    %v1636 = vmul.f32 %v1612, %v1627
    %v1637 = vmul.f32 %v1614, %v1627
    %v1638 = vmul.f32 %v1616, %v1627
    %v1639 = vmul.f32 %v1618, %v1627
    %v1640 = vmul.f32 %v1620, %v1627
    %v1641 = vmul.f32 %v1622, %v1627
    %v1642 = vmul.f32 %v1624, %v1627
    %v1643 = vmul.f32 %v1626, %v1627
    %v1644 = vadd.f32 %v1628, 1.1920929e-07
    %v1645 = vadd.f32 %v1629, 1.1920929e-07
    %v1646 = vadd.f32 %v1630, 1.1920929e-07
    %v1647 = vadd.f32 %v1631, 1.1920929e-07
    %v1648 = vadd.f32 %v1632, 1.1920929e-07
    %v1649 = vadd.f32 %v1633, 1.1920929e-07
    %v1650 = vadd.f32 %v1634, 1.1920929e-07
    %v1651 = vadd.f32 %v1635, 1.1920929e-07
    %v1652 = vadd.f32 %v1636, 1.1920929e-07
    %v1653 = vadd.f32 %v1637, 1.1920929e-07
    %v1654 = vadd.f32 %v1638, 1.1920929e-07
    %v1655 = vadd.f32 %v1639, 1.1920929e-07
    %v1656 = vadd.f32 %v1640, 1.1920929e-07
    %v1657 = vadd.f32 %v1641, 1.1920929e-07
    %v1658 = vadd.f32 %v1642, 1.1920929e-07
    %v1659 = vadd.f32 %v1643, 1.1920929e-07
    %v1660 = vrsqrt.pop %v1644
    %v1661 = vrsqrt.pop %v1645
    %v1662 = vrsqrt.pop %v1646
    %v1663 = vrsqrt.pop %v1647
    %v1664 = vrsqrt.pop %v1648
    %v1665 = vrsqrt.pop %v1649
    %v1666 = vrsqrt.pop %v1650
    %v1667 = vrsqrt.pop %v1651
    %v1668 = vrsqrt.pop %v1652
    %v1669 = vrsqrt.pop %v1653
    %v1670 = vrsqrt.pop %v1654
    %v1671 = vrsqrt.pop %v1655
    %v1672 = vrsqrt.pop %v1656
    %v1673 = vrsqrt.pop %v1657
    %v1674 = vrsqrt.pop %v1658
    %v1675 = vrsqrt.pop %v1659
    %v1676 = vmul.f32 %v1195, %v1660
    %v1677 = vmul.f32 %v1199, %v1661
    %v1678 = vmul.f32 %v1205, %v1662
    %v1679 = vmul.f32 %v1209, %v1663
    %v1680 = vmul.f32 %v1215, %v1664
    %v1681 = vmul.f32 %v1219, %v1665
    %v1682 = vmul.f32 %v1225, %v1666
    %v1683 = vmul.f32 %v1229, %v1667
    %v1684 = vmul.f32 %v1235, %v1668
    %v1685 = vmul.f32 %v1239, %v1669
    %v1686 = vmul.f32 %v1245, %v1670
    %v1687 = vmul.f32 %v1249, %v1671
    %v1688 = vmul.f32 %v1255, %v1672
    %v1689 = vmul.f32 %v1259, %v1673
    %v1690 = vmul.f32 %v1265, %v1674
    %v1691 = vmul.f32 %v1269, %v1675
    %v1692 = vmul.f32 %v1308, %v1308
    %v1693 = vmul.f32 %v1312, %v1312
    %v1694 = vmul.f32 %v1318, %v1318
    %v1695 = vmul.f32 %v1322, %v1322
    %v1696 = vmul.f32 %v1328, %v1328
    %v1697 = vmul.f32 %v1332, %v1332
    %v1698 = vmul.f32 %v1338, %v1338
    %v1699 = vmul.f32 %v1342, %v1342
    %v1700 = vmul.f32 %v1348, %v1348
    %v1701 = vmul.f32 %v1352, %v1352
    %v1702 = vmul.f32 %v1358, %v1358
    %v1703 = vmul.f32 %v1362, %v1362
    %v1704 = vmul.f32 %v1368, %v1368
    %v1705 = vmul.f32 %v1372, %v1372
    %v1706 = vmul.f32 %v1378, %v1378
    %v1707 = vmul.f32 %v1382, %v1382
    %1708 = vadd.xlane.f32.xlu0 %v1692
    %v1709 = vpop.xlane.xlu0 %1708
    %1710 = vadd.xlane.f32.xlu0 %v1693
    %v1711 = vpop.xlane.xlu0 %1710
    %1712 = vadd.xlane.f32.xlu0 %v1694
    %v1713 = vpop.xlane.xlu0 %1712
    %1714 = vadd.xlane.f32.xlu0 %v1695
    %v1715 = vpop.xlane.xlu0 %1714
    %1716 = vadd.xlane.f32.xlu0 %v1696
    %v1717 = vpop.xlane.xlu0 %1716
    %1718 = vadd.xlane.f32.xlu0 %v1697
    %v1719 = vpop.xlane.xlu0 %1718
    %1720 = vadd.xlane.f32.xlu0 %v1698
    %v1721 = vpop.xlane.xlu0 %1720
    %1722 = vadd.xlane.f32.xlu0 %v1699
    %v1723 = vpop.xlane.xlu0 %1722
    %1724 = vadd.xlane.f32.xlu0 %v1700
    %v1725 = vpop.xlane.xlu0 %1724
    %1726 = vadd.xlane.f32.xlu0 %v1701
    %v1727 = vpop.xlane.xlu0 %1726
    %1728 = vadd.xlane.f32.xlu0 %v1702
    %v1729 = vpop.xlane.xlu0 %1728
    %1730 = vadd.xlane.f32.xlu0 %v1703
    %v1731 = vpop.xlane.xlu0 %1730
    %1732 = vadd.xlane.f32.xlu0 %v1704
    %v1733 = vpop.xlane.xlu0 %1732
    %1734 = vadd.xlane.f32.xlu0 %v1705
    %v1735 = vpop.xlane.xlu0 %1734
    %1736 = vadd.xlane.f32.xlu0 %v1706
    %v1737 = vpop.xlane.xlu0 %1736
    %1738 = vadd.xlane.f32.xlu0 %v1707
    %v1739 = vpop.xlane.xlu0 %1738
    %v1740 = vmul.f32 %v1709, %v1627
    %v1741 = vmul.f32 %v1711, %v1627
    %v1742 = vmul.f32 %v1713, %v1627
    %v1743 = vmul.f32 %v1715, %v1627
    %v1744 = vmul.f32 %v1717, %v1627
    %v1745 = vmul.f32 %v1719, %v1627
    %v1746 = vmul.f32 %v1721, %v1627
    %v1747 = vmul.f32 %v1723, %v1627
    %v1748 = vmul.f32 %v1725, %v1627
    %v1749 = vmul.f32 %v1727, %v1627
    %v1750 = vmul.f32 %v1729, %v1627
    %v1751 = vmul.f32 %v1731, %v1627
    %v1752 = vmul.f32 %v1733, %v1627
    %v1753 = vmul.f32 %v1735, %v1627
    %v1754 = vmul.f32 %v1737, %v1627
    %v1755 = vmul.f32 %v1739, %v1627
    %v1756 = vadd.f32 %v1740, 1.1920929e-07
    %v1757 = vadd.f32 %v1741, 1.1920929e-07
    %v1758 = vadd.f32 %v1742, 1.1920929e-07
    %v1759 = vadd.f32 %v1743, 1.1920929e-07
    %v1760 = vadd.f32 %v1744, 1.1920929e-07
    %v1761 = vadd.f32 %v1745, 1.1920929e-07
    %v1762 = vadd.f32 %v1746, 1.1920929e-07
    %v1763 = vadd.f32 %v1747, 1.1920929e-07
    %v1764 = vadd.f32 %v1748, 1.1920929e-07
    %v1765 = vadd.f32 %v1749, 1.1920929e-07
    %v1766 = vadd.f32 %v1750, 1.1920929e-07
    %v1767 = vadd.f32 %v1751, 1.1920929e-07
    %v1768 = vadd.f32 %v1752, 1.1920929e-07
    %v1769 = vadd.f32 %v1753, 1.1920929e-07
    %v1770 = vadd.f32 %v1754, 1.1920929e-07
    %v1771 = vadd.f32 %v1755, 1.1920929e-07
    %v1772 = vrsqrt.pop %v1756
    %v1773 = vrsqrt.pop %v1757
    %v1774 = vrsqrt.pop %v1758
    %v1775 = vrsqrt.pop %v1759
    %v1776 = vrsqrt.pop %v1760
    %v1777 = vrsqrt.pop %v1761
    %v1778 = vrsqrt.pop %v1762
    %v1779 = vrsqrt.pop %v1763
    %v1780 = vrsqrt.pop %v1764
    %v1781 = vrsqrt.pop %v1765
    %v1782 = vrsqrt.pop %v1766
    %v1783 = vrsqrt.pop %v1767
    %v1784 = vrsqrt.pop %v1768
    %v1785 = vrsqrt.pop %v1769
    %v1786 = vrsqrt.pop %v1770
    %v1787 = vrsqrt.pop %v1771
    %v1788 = vmul.f32 %v1308, %v1772
    %v1789 = vmul.f32 %v1312, %v1773
    %v1790 = vmul.f32 %v1318, %v1774
    %v1791 = vmul.f32 %v1322, %v1775
    %v1792 = vmul.f32 %v1328, %v1776
    %v1793 = vmul.f32 %v1332, %v1777
    %v1794 = vmul.f32 %v1338, %v1778
    %v1795 = vmul.f32 %v1342, %v1779
    %v1796 = vmul.f32 %v1348, %v1780
    %v1797 = vmul.f32 %v1352, %v1781
    %v1798 = vmul.f32 %v1358, %v1782
    %v1799 = vmul.f32 %v1362, %v1783
    %v1800 = vmul.f32 %v1368, %v1784
    %v1801 = vmul.f32 %v1372, %v1785
    %v1802 = vmul.f32 %v1378, %v1786
    %v1803 = vmul.f32 %v1382, %v1787
    %v1804 = vmul.f32 %v1676, %v1499
    %v1805 = vmul.f32 %v1677, %v1500
    %v1806 = vmul.f32 %v1678, %v1501
    %v1807 = vmul.f32 %v1679, %v1502
    %v1808 = vmul.f32 %v1680, %v1503
    %v1809 = vmul.f32 %v1681, %v1504
    %v1810 = vmul.f32 %v1682, %v1505
    %v1811 = vmul.f32 %v1683, %v1506
    %v1812 = vmul.f32 %v1684, %v1507
    %v1813 = vmul.f32 %v1685, %v1508
    %v1814 = vmul.f32 %v1686, %v1509
    %v1815 = vmul.f32 %v1687, %v1510
    %v1816 = vmul.f32 %v1688, %v1511
    %v1817 = vmul.f32 %v1689, %v1512
    %v1818 = vmul.f32 %v1690, %v1513
    %v1819 = vmul.f32 %v1691, %v1514
    %1820 = vrot.lane.b32.xlu0 %v1676, 64
    %v1821 = vpop.permute.xlu0 %1820
    %1822 = vrot.lane.b32.xlu0 %v1677, 64
    %v1823 = vpop.permute.xlu0 %1822
    %1824 = vrot.lane.b32.xlu0 %v1678, 64
    %v1825 = vpop.permute.xlu0 %1824
    %1826 = vrot.lane.b32.xlu0 %v1679, 64
    %v1827 = vpop.permute.xlu0 %1826
    %1828 = vrot.lane.b32.xlu0 %v1680, 64
    %v1829 = vpop.permute.xlu0 %1828
    %1830 = vrot.lane.b32.xlu0 %v1681, 64
    %v1831 = vpop.permute.xlu0 %1830
    %1832 = vrot.lane.b32.xlu0 %v1682, 64
    %v1833 = vpop.permute.xlu0 %1832
    %1834 = vrot.lane.b32.xlu0 %v1683, 64
    %v1835 = vpop.permute.xlu0 %1834
    %1836 = vrot.lane.b32.xlu0 %v1684, 64
    %v1837 = vpop.permute.xlu0 %1836
    %1838 = vrot.lane.b32.xlu0 %v1685, 64
    %v1839 = vpop.permute.xlu0 %1838
    %1840 = vrot.lane.b32.xlu0 %v1686, 64
    %v1841 = vpop.permute.xlu0 %1840
    %1842 = vrot.lane.b32.xlu0 %v1687, 64
    %v1843 = vpop.permute.xlu0 %1842
    %1844 = vrot.lane.b32.xlu0 %v1688, 64
    %v1845 = vpop.permute.xlu0 %1844
    %1846 = vrot.lane.b32.xlu0 %v1689, 64
    %v1847 = vpop.permute.xlu0 %1846
    %1848 = vrot.lane.b32.xlu0 %v1690, 64
    %v1849 = vpop.permute.xlu0 %1848
    %1850 = vrot.lane.b32.xlu0 %v1691, 64
    %v1851 = vpop.permute.xlu0 %1850
    %v1852 = vmul.f32 %v1821, %v1515
    %v1853 = vmul.f32 %v1823, %v1516
    %v1854 = vmul.f32 %v1825, %v1517
    %v1855 = vmul.f32 %v1827, %v1518
    %v1856 = vmul.f32 %v1829, %v1519
    %v1857 = vmul.f32 %v1831, %v1520
    %v1858 = vmul.f32 %v1833, %v1521
    %v1859 = vmul.f32 %v1835, %v1522
    %v1860 = vmul.f32 %v1837, %v1523
    %v1861 = vmul.f32 %v1839, %v1524
    %v1862 = vmul.f32 %v1841, %v1525
    %v1863 = vmul.f32 %v1843, %v1526
    %v1864 = vmul.f32 %v1845, %v1527
    %v1865 = vmul.f32 %v1847, %v1528
    %v1866 = vmul.f32 %v1849, %v1529
    %v1867 = vmul.f32 %v1851, %v1530
    %v1868 = vadd.f32 %v1804, %v1852
    %v1869 = vadd.f32 %v1805, %v1853
    %v1870 = vadd.f32 %v1806, %v1854
    %v1871 = vadd.f32 %v1807, %v1855
    %v1872 = vadd.f32 %v1808, %v1856
    %v1873 = vadd.f32 %v1809, %v1857
    %v1874 = vadd.f32 %v1810, %v1858
    %v1875 = vadd.f32 %v1811, %v1859
    %v1876 = vadd.f32 %v1812, %v1860
    %v1877 = vadd.f32 %v1813, %v1861
    %v1878 = vadd.f32 %v1814, %v1862
    %v1879 = vadd.f32 %v1815, %v1863
    %v1880 = vadd.f32 %v1816, %v1864
    %v1881 = vadd.f32 %v1817, %v1865
    %v1882 = vadd.f32 %v1818, %v1866
    %v1883 = vadd.f32 %v1819, %v1867
    %v1884 = vmul.f32 %v1788, %v1499
    %v1885 = vmul.f32 %v1789, %v1500
    %v1886 = vmul.f32 %v1790, %v1501
    %v1887 = vmul.f32 %v1791, %v1502
    %v1888 = vmul.f32 %v1792, %v1503
    %v1889 = vmul.f32 %v1793, %v1504
    %v1890 = vmul.f32 %v1794, %v1505
    %v1891 = vmul.f32 %v1795, %v1506
    %v1892 = vmul.f32 %v1796, %v1507
    %v1893 = vmul.f32 %v1797, %v1508
    %v1894 = vmul.f32 %v1798, %v1509
    %v1895 = vmul.f32 %v1799, %v1510
    %v1896 = vmul.f32 %v1800, %v1511
    %v1897 = vmul.f32 %v1801, %v1512
    %v1898 = vmul.f32 %v1802, %v1513
    %v1899 = vmul.f32 %v1803, %v1514
    %1900 = vrot.lane.b32.xlu0 %v1788, 64
    %v1901 = vpop.permute.xlu0 %1900
    %1902 = vrot.lane.b32.xlu0 %v1789, 64
    %v1903 = vpop.permute.xlu0 %1902
    %1904 = vrot.lane.b32.xlu0 %v1790, 64
    %v1905 = vpop.permute.xlu0 %1904
    %1906 = vrot.lane.b32.xlu0 %v1791, 64
    %v1907 = vpop.permute.xlu0 %1906
    %1908 = vrot.lane.b32.xlu0 %v1792, 64
    %v1909 = vpop.permute.xlu0 %1908
    %1910 = vrot.lane.b32.xlu0 %v1793, 64
    %v1911 = vpop.permute.xlu0 %1910
    %1912 = vrot.lane.b32.xlu0 %v1794, 64
    %v1913 = vpop.permute.xlu0 %1912
    %1914 = vrot.lane.b32.xlu0 %v1795, 64
    %v1915 = vpop.permute.xlu0 %1914
    %1916 = vrot.lane.b32.xlu0 %v1796, 64
    %v1917 = vpop.permute.xlu0 %1916
    %1918 = vrot.lane.b32.xlu0 %v1797, 64
    %v1919 = vpop.permute.xlu0 %1918
    %1920 = vrot.lane.b32.xlu0 %v1798, 64
    %v1921 = vpop.permute.xlu0 %1920
    %1922 = vrot.lane.b32.xlu0 %v1799, 64
    %v1923 = vpop.permute.xlu0 %1922
    %1924 = vrot.lane.b32.xlu0 %v1800, 64
    %v1925 = vpop.permute.xlu0 %1924
    %1926 = vrot.lane.b32.xlu0 %v1801, 64
    %v1927 = vpop.permute.xlu0 %1926
    %1928 = vrot.lane.b32.xlu0 %v1802, 64
    %v1929 = vpop.permute.xlu0 %1928
    %1930 = vrot.lane.b32.xlu0 %v1803, 64
    %v1931 = vpop.permute.xlu0 %1930
    %v1932 = vmul.f32 %v1901, %v1515
    %v1933 = vmul.f32 %v1903, %v1516
    %v1934 = vmul.f32 %v1905, %v1517
    %v1935 = vmul.f32 %v1907, %v1518
    %v1936 = vmul.f32 %v1909, %v1519
    %v1937 = vmul.f32 %v1911, %v1520
    %v1938 = vmul.f32 %v1913, %v1521
    %v1939 = vmul.f32 %v1915, %v1522
    %v1940 = vmul.f32 %v1917, %v1523
    %v1941 = vmul.f32 %v1919, %v1524
    %v1942 = vmul.f32 %v1921, %v1525
    %v1943 = vmul.f32 %v1923, %v1526
    %v1944 = vmul.f32 %v1925, %v1527
    %v1945 = vmul.f32 %v1927, %v1528
    %v1946 = vmul.f32 %v1929, %v1529
    %v1947 = vmul.f32 %v1931, %v1530
    %v1948 = vadd.f32 %v1884, %v1932
    %v1949 = vadd.f32 %v1885, %v1933
    %v1950 = vadd.f32 %v1886, %v1934
    %v1951 = vadd.f32 %v1887, %v1935
    %v1952 = vadd.f32 %v1888, %v1936
    %v1953 = vadd.f32 %v1889, %v1937
    %v1954 = vadd.f32 %v1890, %v1938
    %v1955 = vadd.f32 %v1891, %v1939
    %v1956 = vadd.f32 %v1892, %v1940
    %v1957 = vadd.f32 %v1893, %v1941
    %v1958 = vadd.f32 %v1894, %v1942
    %v1959 = vadd.f32 %v1895, %v1943
    %v1960 = vadd.f32 %v1896, %v1944
    %v1961 = vadd.f32 %v1897, %v1945
    %v1962 = vadd.f32 %v1898, %v1946
    %v1963 = vadd.f32 %v1899, %v1947
    %v1964 = vld [vmem:[#allocation14] sm:$0xff]
    %v1965 = vld [vmem:[#allocation14 + $0x10] sm:$0xff]
    %v1966 = vld [vmem:[#allocation14 + $0x20] sm:$0xff]
    %v1967 = vld [vmem:[#allocation14 + $0x30] sm:$0xff]
    %v1968 = vld [vmem:[#allocation14 + $0x40] sm:$0xff]
    %v1969 = vld [vmem:[#allocation14 + $0x50] sm:$0xff]
    %v1970 = vld [vmem:[#allocation14 + $0x60] sm:$0xff]
    %v1971 = vld [vmem:[#allocation14 + $0x70] sm:$0xff]
    %v1972 = vld [vmem:[#allocation14 + $0x80] sm:$0xff]
    %v1973 = vld [vmem:[#allocation14 + $0x90] sm:$0xff]
    %v1974 = vld [vmem:[#allocation14 + $0xa0] sm:$0xff]
    %v1975 = vld [vmem:[#allocation14 + $0xb0] sm:$0xff]
    %v1976 = vld [vmem:[#allocation14 + $0xc0] sm:$0xff]
    %v1977 = vld [vmem:[#allocation14 + $0xd0] sm:$0xff]
    %v1978 = vld [vmem:[#allocation14 + $0xe0] sm:$0xff]
    %v1979 = vld [vmem:[#allocation14 + $0xf0] sm:$0xff]
    %v1980 = vstv %s243
    %v1981 = vmul.f32 %v1980, %v1421
    %v1982 = vmul.f32 %v1980, %v1425
    %v1983 = vmul.f32 %v1980, %v1431
    %v1984 = vmul.f32 %v1980, %v1435
    %v1985 = vmul.f32 %v1980, %v1441
    %v1986 = vmul.f32 %v1980, %v1445
    %v1987 = vmul.f32 %v1980, %v1451
    %v1988 = vmul.f32 %v1980, %v1455
    %v1989 = vmul.f32 %v1980, %v1461
    %v1990 = vmul.f32 %v1980, %v1465
    %v1991 = vmul.f32 %v1980, %v1471
    %v1992 = vmul.f32 %v1980, %v1475
    %v1993 = vmul.f32 %v1980, %v1481
    %v1994 = vmul.f32 %v1980, %v1485
    %v1995 = vmul.f32 %v1980, %v1491
    %v1996 = vmul.f32 %v1980, %v1495
    %v1997 = vstv %s244
    %v1998 = vmul.f32 %v1997, %v1964
    %v1999 = vmul.f32 %v1997, %v1965
    %v2000 = vmul.f32 %v1997, %v1966
    %v2001 = vmul.f32 %v1997, %v1967
    %v2002 = vmul.f32 %v1997, %v1968
    %v2003 = vmul.f32 %v1997, %v1969
    %v2004 = vmul.f32 %v1997, %v1970
    %v2005 = vmul.f32 %v1997, %v1971
    %v2006 = vmul.f32 %v1997, %v1972
    %v2007 = vmul.f32 %v1997, %v1973
    %v2008 = vmul.f32 %v1997, %v1974
    %v2009 = vmul.f32 %v1997, %v1975
    %v2010 = vmul.f32 %v1997, %v1976
    %v2011 = vmul.f32 %v1997, %v1977
    %v2012 = vmul.f32 %v1997, %v1978
    %v2013 = vmul.f32 %v1997, %v1979
    %v2014 = vadd.f32 %v1981, %v1998
    %v2015 = vadd.f32 %v1982, %v1999
    %v2016 = vadd.f32 %v1983, %v2000
    %v2017 = vadd.f32 %v1984, %v2001
    %v2018 = vadd.f32 %v1985, %v2002
    %v2019 = vadd.f32 %v1986, %v2003
    %v2020 = vadd.f32 %v1987, %v2004
    %v2021 = vadd.f32 %v1988, %v2005
    %v2022 = vadd.f32 %v1989, %v2006
    %v2023 = vadd.f32 %v1990, %v2007
    %v2024 = vadd.f32 %v1991, %v2008
    %v2025 = vadd.f32 %v1992, %v2009
    %v2026 = vadd.f32 %v1993, %v2010
    %v2027 = vadd.f32 %v1994, %v2011
    %v2028 = vadd.f32 %v1995, %v2012
    %v2029 = vadd.f32 %v1996, %v2013
    %v2030 = vpack.c.bf16 %v1869, %v1868
    %v2031 = vpack.c.bf16 %v1871, %v1870
    %v2032 = vpack.c.bf16 %v1873, %v1872
    %v2033 = vpack.c.bf16 %v1875, %v1874
    %v2034 = vpack.c.bf16 %v1877, %v1876
    %v2035 = vpack.c.bf16 %v1879, %v1878
    %v2036 = vpack.c.bf16 %v1881, %v1880
    %v2037 = vpack.c.bf16 %v1883, %v1882
    %v2038 = vpack.c.bf16 %v1949, %v1948
    %v2039 = vpack.c.bf16 %v1951, %v1950
    %v2040 = vpack.c.bf16 %v1953, %v1952
    %v2041 = vpack.c.bf16 %v1955, %v1954
    %v2042 = vpack.c.bf16 %v1957, %v1956
    %v2043 = vpack.c.bf16 %v1959, %v1958
    %v2044 = vpack.c.bf16 %v1961, %v1960
    %v2045 = vpack.c.bf16 %v1963, %v1962
    %2046 = vmatprep.subr.bf16.mxu0 0
    %2047 = vmatpush1.bf16.xpose.msra.mxu0 %v2038
    %2048 = vmatprep.subr.bf16.mxu0 0
    %2049 = vmatpush1.bf16.xpose.msra.mxu0 %v2039
    %2050 = vmatprep.subr.bf16.mxu0 0
    %2051 = vmatpush1.bf16.xpose.msra.mxu0 %v2040
    %2052 = vmatprep.subr.bf16.mxu0 0
    %2053 = vmatpush1.bf16.xpose.msra.mxu0 %v2041
    %2054 = vmatprep.subr.bf16.mxu0 0
    %2055 = vmatpush1.bf16.xpose.msra.mxu0 %v2042
    %2056 = vmatprep.subr.bf16.mxu0 0
    %2057 = vmatpush1.bf16.xpose.msra.mxu0 %v2043
    %2058 = vmatprep.subr.bf16.mxu0 0
    %2059 = vmatpush1.bf16.xpose.msra.mxu0 %v2044
    %2060 = vmatprep.subr.bf16.mxu0 0
    %2061 = vmatpush1.bf16.xpose.msra.mxu0 %v2045
    %2062 = vmatprep.subr.bf16.mxu0 0
    %2063 = vmatpush1.bf16.xpose.msra.mxu0 0
    %2064 = vmatprep.subr.bf16.mxu0 0
    %2065 = vmatpush1.bf16.xpose.msra.mxu0 0
    %2066 = vmatprep.subr.bf16.mxu0 0
    %2067 = vmatpush1.bf16.xpose.msra.mxu0 0
    %2068 = vmatprep.subr.bf16.mxu0 0
    %2069 = vmatpush1.bf16.xpose.msra.mxu0 0
    %2070 = vmatprep.subr.bf16.mxu0 0
    %2071 = vmatpush1.bf16.xpose.msra.mxu0 0
    %2072 = vmatprep.subr.bf16.mxu0 0
    %2073 = vmatpush1.bf16.xpose.msra.mxu0 0
    %2074 = vmatprep.subr.bf16.mxu0 0
    %2075 = vmatpush1.bf16.xpose.msra.mxu0 0
    %2076 = vmatprep.subr.bf16.mxu0 0
    %2077 = vmatpush1.bf16.xpose.msra.mxu0 0
    %2078 = vmatprep.mubr.bf16.mxu0 0
    %2079 = vmatmul.mubr.bf16.gmra.mrb[0].mxu0 %v2030
    %v2080 = vpop.f32.mrb[0].mxu0
    %v2081 = vadd.f32 0.0, %v2080
    %v2082 = vpop.f32.mrb[0].mxu0
    %v2083 = vpop.f32.mrb[0].mxu0
    %v2084 = vadd.f32 0.0, %v2083
    %v2085 = vpop.f32.mrb[0].mxu0
    %2086 = vmatprep.mubr.bf16.mxu0 0
    %2087 = vmatmul.mubr.bf16.gmra.mrb[0].mxu0 %v2031
    %v2088 = vpop.f32.mrb[0].mxu0
    %v2089 = vadd.f32 0.0, %v2088
    %v2090 = vpop.f32.mrb[0].mxu0
    %v2091 = vpop.f32.mrb[0].mxu0
    %v2092 = vadd.f32 0.0, %v2091
    %v2093 = vpop.f32.mrb[0].mxu0
    %2094 = vmatprep.mubr.bf16.mxu0 0
    %2095 = vmatmul.mubr.bf16.gmra.mrb[0].mxu0 %v2032
    %v2096 = vpop.f32.mrb[0].mxu0
    %v2097 = vadd.f32 0.0, %v2096
    %v2098 = vpop.f32.mrb[0].mxu0
    %v2099 = vpop.f32.mrb[0].mxu0
    %v2100 = vadd.f32 0.0, %v2099
    %v2101 = vpop.f32.mrb[0].mxu0
    %2102 = vmatprep.mubr.bf16.mxu0 0
    %2103 = vmatmul.mubr.bf16.gmra.mrb[0].mxu0 %v2033
    %v2104 = vpop.f32.mrb[0].mxu0
    %v2105 = vadd.f32 0.0, %v2104
    %v2106 = vpop.f32.mrb[0].mxu0
    %v2107 = vpop.f32.mrb[0].mxu0
    %v2108 = vadd.f32 0.0, %v2107
    %v2109 = vpop.f32.mrb[0].mxu0
    %2110 = vmatprep.mubr.bf16.mxu0 0
    %2111 = vmatmul.mubr.bf16.gmra.mrb[0].mxu0 %v2034
    %v2112 = vpop.f32.mrb[0].mxu0
    %v2113 = vadd.f32 0.0, %v2112
    %v2114 = vpop.f32.mrb[0].mxu0
    %v2115 = vpop.f32.mrb[0].mxu0
    %v2116 = vadd.f32 0.0, %v2115
    %v2117 = vpop.f32.mrb[0].mxu0
    %2118 = vmatprep.mubr.bf16.mxu0 0
    %2119 = vmatmul.mubr.bf16.gmra.mrb[0].mxu0 %v2035
    %v2120 = vpop.f32.mrb[0].mxu0
    %v2121 = vadd.f32 0.0, %v2120
    %v2122 = vpop.f32.mrb[0].mxu0
    %v2123 = vpop.f32.mrb[0].mxu0
    %v2124 = vadd.f32 0.0, %v2123
    %v2125 = vpop.f32.mrb[0].mxu0
    %2126 = vmatprep.mubr.bf16.mxu0 0
    %2127 = vmatmul.mubr.bf16.gmra.mrb[0].mxu0 %v2036
    %v2128 = vpop.f32.mrb[0].mxu0
    %v2129 = vadd.f32 0.0, %v2128
    %v2130 = vpop.f32.mrb[0].mxu0
    %v2131 = vpop.f32.mrb[0].mxu0
    %v2132 = vadd.f32 0.0, %v2131
    %v2133 = vpop.f32.mrb[0].mxu0
    %2134 = vmatprep.mubr.bf16.mxu0 0
    %2135 = vmatmul.mubr.bf16.gmra.mrb[0].mxu0 %v2037
    %v2136 = vpop.f32.mrb[0].mxu0
    %v2137 = vadd.f32 0.0, %v2136
    %v2138 = vpop.f32.mrb[0].mxu0
    %v2139 = vpop.f32.mrb[0].mxu0
    %v2140 = vadd.f32 0.0, %v2139
    %v2141 = vpop.f32.mrb[0].mxu0
    %2142 = vdwg.mxu0
    %v2143 = vmul.f32 %v2081, 0.12
    %v2144 = vmul.f32 %v2084, 0.12
    %v2145 = vmul.f32 %v2089, 0.12
    %v2146 = vmul.f32 %v2092, 0.12
    %v2147 = vmul.f32 %v2097, 0.12
    %v2148 = vmul.f32 %v2100, 0.12
    %v2149 = vmul.f32 %v2105, 0.12
    %v2150 = vmul.f32 %v2108, 0.12
    %v2151 = vmul.f32 %v2113, 0.12
    %v2152 = vmul.f32 %v2116, 0.12
    %v2153 = vmul.f32 %v2121, 0.12
    %v2154 = vmul.f32 %v2124, 0.12
    %v2155 = vmul.f32 %v2129, 0.12
    %v2156 = vmul.f32 %v2132, 0.12
    %v2157 = vmul.f32 %v2137, 0.12
    %v2158 = vmul.f32 %v2140, 0.12
    %v2159 = vadd.f32 %v2143, %v1531
    %v2160 = vadd.f32 %v2144, %v1532
    %v2161 = vadd.f32 %v2145, %v1533
    %v2162 = vadd.f32 %v2146, %v1534
    %v2163 = vadd.f32 %v2147, %v1535
    %v2164 = vadd.f32 %v2148, %v1536
    %v2165 = vadd.f32 %v2149, %v1537
    %v2166 = vadd.f32 %v2150, %v1538
    %v2167 = vadd.f32 %v2151, %v1539
    %v2168 = vadd.f32 %v2152, %v1540
    %v2169 = vadd.f32 %v2153, %v1541
    %v2170 = vadd.f32 %v2154, %v1542
    %v2171 = vadd.f32 %v2155, %v1543
    %v2172 = vadd.f32 %v2156, %v1544
    %v2173 = vadd.f32 %v2157, %v1545
    %v2174 = vadd.f32 %v2158, %v1546
    %2175 = vmax.xlane.f32.xlu0 %v2159
    %v2176 = vpop.xlane.xlu0 %2175
    %2177 = vmax.xlane.f32.xlu0 %v2160
    %v2178 = vpop.xlane.xlu0 %2177
    %2179 = vmax.xlane.f32.xlu0 %v2161
    %v2180 = vpop.xlane.xlu0 %2179
    %2181 = vmax.xlane.f32.xlu0 %v2162
    %v2182 = vpop.xlane.xlu0 %2181
    %2183 = vmax.xlane.f32.xlu0 %v2163
    %v2184 = vpop.xlane.xlu0 %2183
    %2185 = vmax.xlane.f32.xlu0 %v2164
    %v2186 = vpop.xlane.xlu0 %2185
    %2187 = vmax.xlane.f32.xlu0 %v2165
    %v2188 = vpop.xlane.xlu0 %2187
    %2189 = vmax.xlane.f32.xlu0 %v2166
    %v2190 = vpop.xlane.xlu0 %2189
    %2191 = vmax.xlane.f32.xlu0 %v2167
    %v2192 = vpop.xlane.xlu0 %2191
    %2193 = vmax.xlane.f32.xlu0 %v2168
    %v2194 = vpop.xlane.xlu0 %2193
    %2195 = vmax.xlane.f32.xlu0 %v2169
    %v2196 = vpop.xlane.xlu0 %2195
    %2197 = vmax.xlane.f32.xlu0 %v2170
    %v2198 = vpop.xlane.xlu0 %2197
    %2199 = vmax.xlane.f32.xlu0 %v2171
    %v2200 = vpop.xlane.xlu0 %2199
    %2201 = vmax.xlane.f32.xlu0 %v2172
    %v2202 = vpop.xlane.xlu0 %2201
    %2203 = vmax.xlane.f32.xlu0 %v2173
    %v2204 = vpop.xlane.xlu0 %2203
    %2205 = vmax.xlane.f32.xlu0 %v2174
    %v2206 = vpop.xlane.xlu0 %2205
    %v2207 = vsub.f32 %v2159, %v2176
    %v2208 = vsub.f32 %v2160, %v2178
    %v2209 = vsub.f32 %v2161, %v2180
    %v2210 = vsub.f32 %v2162, %v2182
    %v2211 = vsub.f32 %v2163, %v2184
    %v2212 = vsub.f32 %v2164, %v2186
    %v2213 = vsub.f32 %v2165, %v2188
    %v2214 = vsub.f32 %v2166, %v2190
    %v2215 = vsub.f32 %v2167, %v2192
    %v2216 = vsub.f32 %v2168, %v2194
    %v2217 = vsub.f32 %v2169, %v2196
    %v2218 = vsub.f32 %v2170, %v2198
    %v2219 = vsub.f32 %v2171, %v2200
    %v2220 = vsub.f32 %v2172, %v2202
    %v2221 = vsub.f32 %v2173, %v2204
    %v2222 = vsub.f32 %v2174, %v2206
    %v2223 = vmul.f32 %v2207, 1.442695
    %v2224 = vpow.pop %v2223
    %v2225 = vmul.f32 %v2208, 1.442695
    %v2226 = vpow.pop %v2225
    %v2227 = vmul.f32 %v2209, 1.442695
    %v2228 = vpow.pop %v2227
    %v2229 = vmul.f32 %v2210, 1.442695
    %v2230 = vpow.pop %v2229
    %v2231 = vmul.f32 %v2211, 1.442695
    %v2232 = vpow.pop %v2231
    %v2233 = vmul.f32 %v2212, 1.442695
    %v2234 = vpow.pop %v2233
    %v2235 = vmul.f32 %v2213, 1.442695
    %v2236 = vpow.pop %v2235
    %v2237 = vmul.f32 %v2214, 1.442695
    %v2238 = vpow.pop %v2237
    %v2239 = vmul.f32 %v2215, 1.442695
    %v2240 = vpow.pop %v2239
    %v2241 = vmul.f32 %v2216, 1.442695
    %v2242 = vpow.pop %v2241
    %v2243 = vmul.f32 %v2217, 1.442695
    %v2244 = vpow.pop %v2243
    %v2245 = vmul.f32 %v2218, 1.442695
    %v2246 = vpow.pop %v2245
    %v2247 = vmul.f32 %v2219, 1.442695
    %v2248 = vpow.pop %v2247
    %v2249 = vmul.f32 %v2220, 1.442695
    %v2250 = vpow.pop %v2249
    %v2251 = vmul.f32 %v2221, 1.442695
    %v2252 = vpow.pop %v2251
    %v2253 = vmul.f32 %v2222, 1.442695
    %v2254 = vpow.pop %v2253
    %2255 = vadd.xlane.f32.xlu0 %v2224
    %v2256 = vpop.xlane.xlu0 %2255
    %2257 = vadd.xlane.f32.xlu0 %v2226
    %v2258 = vpop.xlane.xlu0 %2257
    %2259 = vadd.xlane.f32.xlu0 %v2228
    %v2260 = vpop.xlane.xlu0 %2259
    %2261 = vadd.xlane.f32.xlu0 %v2230
    %v2262 = vpop.xlane.xlu0 %2261
    %2263 = vadd.xlane.f32.xlu0 %v2232
    %v2264 = vpop.xlane.xlu0 %2263
    %2265 = vadd.xlane.f32.xlu0 %v2234
    %v2266 = vpop.xlane.xlu0 %2265
    %2267 = vadd.xlane.f32.xlu0 %v2236
    %v2268 = vpop.xlane.xlu0 %2267
    %2269 = vadd.xlane.f32.xlu0 %v2238
    %v2270 = vpop.xlane.xlu0 %2269
    %2271 = vadd.xlane.f32.xlu0 %v2240
    %v2272 = vpop.xlane.xlu0 %2271
    %2273 = vadd.xlane.f32.xlu0 %v2242
    %v2274 = vpop.xlane.xlu0 %2273
    %2275 = vadd.xlane.f32.xlu0 %v2244
    %v2276 = vpop.xlane.xlu0 %2275
    %2277 = vadd.xlane.f32.xlu0 %v2246
    %v2278 = vpop.xlane.xlu0 %2277
    %2279 = vadd.xlane.f32.xlu0 %v2248
    %v2280 = vpop.xlane.xlu0 %2279
    %2281 = vadd.xlane.f32.xlu0 %v2250
    %v2282 = vpop.xlane.xlu0 %2281
    %2283 = vadd.xlane.f32.xlu0 %v2252
    %v2284 = vpop.xlane.xlu0 %2283
    %2285 = vadd.xlane.f32.xlu0 %v2254
    %v2286 = vpop.xlane.xlu0 %2285
    %v2287 = vrcp.pop %v2256
    %v2288 = vrcp.pop %v2258
    %v2289 = vrcp.pop %v2260
    %v2290 = vrcp.pop %v2262
    %v2291 = vrcp.pop %v2264
    %v2292 = vrcp.pop %v2266
    %v2293 = vrcp.pop %v2268
    %v2294 = vrcp.pop %v2270
    %v2295 = vrcp.pop %v2272
    %v2296 = vrcp.pop %v2274
    %v2297 = vrcp.pop %v2276
    %v2298 = vrcp.pop %v2278
    %v2299 = vrcp.pop %v2280
    %v2300 = vrcp.pop %v2282
    %v2301 = vrcp.pop %v2284
    %v2302 = vrcp.pop %v2286
    %v2303 = vmul.f32 %v2224, %v2287
    %v2304 = vmul.f32 %v2226, %v2288
    %v2305 = vmul.f32 %v2228, %v2289
    %v2306 = vmul.f32 %v2230, %v2290
    %v2307 = vmul.f32 %v2232, %v2291
    %v2308 = vmul.f32 %v2234, %v2292
    %v2309 = vmul.f32 %v2236, %v2293
    %v2310 = vmul.f32 %v2238, %v2294
    %v2311 = vmul.f32 %v2240, %v2295
    %v2312 = vmul.f32 %v2242, %v2296
    %v2313 = vmul.f32 %v2244, %v2297
    %v2314 = vmul.f32 %v2246, %v2298
    %v2315 = vmul.f32 %v2248, %v2299
    %v2316 = vmul.f32 %v2250, %v2300
    %v2317 = vmul.f32 %v2252, %v2301
    %v2318 = vmul.f32 %v2254, %v2302
    %v2319 = vpack.c.bf16 %v2304, %v2303
    %v2320 = vpack.c.bf16 %v2306, %v2305
    %v2321 = vpack.c.bf16 %v2308, %v2307
    %v2322 = vpack.c.bf16 %v2310, %v2309
    %v2323 = vpack.c.bf16 %v2312, %v2311
    %v2324 = vpack.c.bf16 %v2314, %v2313
    %v2325 = vpack.c.bf16 %v2316, %v2315
    %v2326 = vpack.c.bf16 %v2318, %v2317
    %v2327 = vpack.c.bf16 %v2015, %v2014
    %v2328 = vpack.c.bf16 %v2017, %v2016
    %v2329 = vpack.c.bf16 %v2019, %v2018
    %v2330 = vpack.c.bf16 %v2021, %v2020
    %v2331 = vpack.c.bf16 %v2023, %v2022
    %v2332 = vpack.c.bf16 %v2025, %v2024
    %v2333 = vpack.c.bf16 %v2027, %v2026
    %v2334 = vpack.c.bf16 %v2029, %v2028
    %2335 = vmatprep.subr.bf16.mxu0 0
    %2336 = vmatpush1.bf16.msra.mxu0 %v2327
    %2337 = vmatprep.subr.bf16.mxu0 0
    %2338 = vmatpush1.bf16.msra.mxu0 %v2328
    %2339 = vmatprep.subr.bf16.mxu0 0
    %2340 = vmatpush1.bf16.msra.mxu0 %v2329
    %2341 = vmatprep.subr.bf16.mxu0 0
    %2342 = vmatpush1.bf16.msra.mxu0 %v2330
    %2343 = vmatprep.subr.bf16.mxu0 0
    %2344 = vmatpush1.bf16.msra.mxu0 %v2331
    %2345 = vmatprep.subr.bf16.mxu0 0
    %2346 = vmatpush1.bf16.msra.mxu0 %v2332
    %2347 = vmatprep.subr.bf16.mxu0 0
    %2348 = vmatpush1.bf16.msra.mxu0 %v2333
    %2349 = vmatprep.subr.bf16.mxu0 0
    %2350 = vmatpush1.bf16.msra.mxu0 %v2334
    %2351 = vmatprep.subr.bf16.mxu0 0
    %2352 = vmatpush1.bf16.msra.mxu0 0
    %2353 = vmatprep.subr.bf16.mxu0 0
    %2354 = vmatpush1.bf16.msra.mxu0 0
    %2355 = vmatprep.subr.bf16.mxu0 0
    %2356 = vmatpush1.bf16.msra.mxu0 0
    %2357 = vmatprep.subr.bf16.mxu0 0
    %2358 = vmatpush1.bf16.msra.mxu0 0
    %2359 = vmatprep.subr.bf16.mxu0 0
    %2360 = vmatpush1.bf16.msra.mxu0 0
    %2361 = vmatprep.subr.bf16.mxu0 0
    %2362 = vmatpush1.bf16.msra.mxu0 0
    %2363 = vmatprep.subr.bf16.mxu0 0
    %2364 = vmatpush1.bf16.msra.mxu0 0
    %2365 = vmatprep.subr.bf16.mxu0 0
    %2366 = vmatpush1.bf16.msra.mxu0 0
    %2367 = vmatprep.mubr.bf16.mxu0 0
    %2368 = vmatmul.mubr.bf16.gmra.mrb[0].mxu0 %v2319
    %v2369 = vpop.f32.mrb[0].mxu0
    %v2370 = vadd.f32 0.0, %v2369
    %v2371 = vpop.f32.mrb[0].mxu0
    %v2372 = vpop.f32.mrb[0].mxu0
    %v2373 = vadd.f32 0.0, %v2372
    %v2374 = vpop.f32.mrb[0].mxu0
    %2375 = vmatprep.mubr.bf16.mxu0 0
    %2376 = vmatmul.mubr.bf16.gmra.mrb[0].mxu0 %v2320
    %v2377 = vpop.f32.mrb[0].mxu0
    %v2378 = vadd.f32 0.0, %v2377
    %v2379 = vpop.f32.mrb[0].mxu0
    %v2380 = vpop.f32.mrb[0].mxu0
    %v2381 = vadd.f32 0.0, %v2380
    %v2382 = vpop.f32.mrb[0].mxu0
    %2383 = vmatprep.mubr.bf16.mxu0 0
    %2384 = vmatmul.mubr.bf16.gmra.mrb[0].mxu0 %v2321
    %v2385 = vpop.f32.mrb[0].mxu0
    %v2386 = vadd.f32 0.0, %v2385
    %v2387 = vpop.f32.mrb[0].mxu0
    %v2388 = vpop.f32.mrb[0].mxu0
    %v2389 = vadd.f32 0.0, %v2388
    %v2390 = vpop.f32.mrb[0].mxu0
    %2391 = vmatprep.mubr.bf16.mxu0 0
    %2392 = vmatmul.mubr.bf16.gmra.mrb[0].mxu0 %v2322
    %v2393 = vpop.f32.mrb[0].mxu0
    %v2394 = vadd.f32 0.0, %v2393
    %v2395 = vpop.f32.mrb[0].mxu0
    %v2396 = vpop.f32.mrb[0].mxu0
    %v2397 = vadd.f32 0.0, %v2396
    %v2398 = vpop.f32.mrb[0].mxu0
    %2399 = vmatprep.mubr.bf16.mxu0 0
    %2400 = vmatmul.mubr.bf16.gmra.mrb[0].mxu0 %v2323
    %v2401 = vpop.f32.mrb[0].mxu0
    %v2402 = vadd.f32 0.0, %v2401
    %v2403 = vpop.f32.mrb[0].mxu0
    %v2404 = vpop.f32.mrb[0].mxu0
    %v2405 = vadd.f32 0.0, %v2404
    %v2406 = vpop.f32.mrb[0].mxu0
    %2407 = vmatprep.mubr.bf16.mxu0 0
    %2408 = vmatmul.mubr.bf16.gmra.mrb[0].mxu0 %v2324
    %v2409 = vpop.f32.mrb[0].mxu0
    %v2410 = vadd.f32 0.0, %v2409
    %v2411 = vpop.f32.mrb[0].mxu0
    %v2412 = vpop.f32.mrb[0].mxu0
    %v2413 = vadd.f32 0.0, %v2412
    %v2414 = vpop.f32.mrb[0].mxu0
    %2415 = vmatprep.mubr.bf16.mxu0 0
    %2416 = vmatmul.mubr.bf16.gmra.mrb[0].mxu0 %v2325
    %v2417 = vpop.f32.mrb[0].mxu0
    %v2418 = vadd.f32 0.0, %v2417
    %v2419 = vpop.f32.mrb[0].mxu0
    %v2420 = vpop.f32.mrb[0].mxu0
    %v2421 = vadd.f32 0.0, %v2420
    %v2422 = vpop.f32.mrb[0].mxu0
    %2423 = vmatprep.mubr.bf16.mxu0 0
    %2424 = vmatmul.mubr.bf16.gmra.mrb[0].mxu0 %v2326
    %v2425 = vpop.f32.mrb[0].mxu0
    %v2426 = vadd.f32 0.0, %v2425
    %v2427 = vpop.f32.mrb[0].mxu0
    %v2428 = vpop.f32.mrb[0].mxu0
    %v2429 = vadd.f32 0.0, %v2428
    %v2430 = vpop.f32.mrb[0].mxu0
    %2431 = vdwg.mxu0
    %v2432 = vpack.c.bf16 %v2373, %v2370
    %v2433 = vpack.c.bf16 %v2381, %v2378
    %v2434 = vpack.c.bf16 %v2389, %v2386
    %v2435 = vpack.c.bf16 %v2397, %v2394
    %v2436 = vpack.c.bf16 %v2405, %v2402
    %v2437 = vpack.c.bf16 %v2413, %v2410
    %v2438 = vpack.c.bf16 %v2421, %v2418
    %v2439 = vpack.c.bf16 %v2429, %v2426
    %v2440 = vmul.f32 %v1197, %v1197
    %v2441 = vmul.f32 %v1201, %v1201
    %v2442 = vmul.f32 %v1207, %v1207
    %v2443 = vmul.f32 %v1211, %v1211
    %v2444 = vmul.f32 %v1217, %v1217
    %v2445 = vmul.f32 %v1221, %v1221
    %v2446 = vmul.f32 %v1227, %v1227
    %v2447 = vmul.f32 %v1231, %v1231
    %v2448 = vmul.f32 %v1237, %v1237
    %v2449 = vmul.f32 %v1241, %v1241
    %v2450 = vmul.f32 %v1247, %v1247
    %v2451 = vmul.f32 %v1251, %v1251
    %v2452 = vmul.f32 %v1257, %v1257
    %v2453 = vmul.f32 %v1261, %v1261
    %v2454 = vmul.f32 %v1267, %v1267
    %v2455 = vmul.f32 %v1271, %v1271
    %2456 = vadd.xlane.f32.xlu0 %v2440
    %v2457 = vpop.xlane.xlu0 %2456
    %2458 = vadd.xlane.f32.xlu0 %v2441
    %v2459 = vpop.xlane.xlu0 %2458
    %2460 = vadd.xlane.f32.xlu0 %v2442
    %v2461 = vpop.xlane.xlu0 %2460
    %2462 = vadd.xlane.f32.xlu0 %v2443
    %v2463 = vpop.xlane.xlu0 %2462
    %2464 = vadd.xlane.f32.xlu0 %v2444
    %v2465 = vpop.xlane.xlu0 %2464
    %2466 = vadd.xlane.f32.xlu0 %v2445
    %v2467 = vpop.xlane.xlu0 %2466
    %2468 = vadd.xlane.f32.xlu0 %v2446
    %v2469 = vpop.xlane.xlu0 %2468
    %2470 = vadd.xlane.f32.xlu0 %v2447
    %v2471 = vpop.xlane.xlu0 %2470
    %2472 = vadd.xlane.f32.xlu0 %v2448
    %v2473 = vpop.xlane.xlu0 %2472
    %2474 = vadd.xlane.f32.xlu0 %v2449
    %v2475 = vpop.xlane.xlu0 %2474
    %2476 = vadd.xlane.f32.xlu0 %v2450
    %v2477 = vpop.xlane.xlu0 %2476
    %2478 = vadd.xlane.f32.xlu0 %v2451
    %v2479 = vpop.xlane.xlu0 %2478
    %2480 = vadd.xlane.f32.xlu0 %v2452
    %v2481 = vpop.xlane.xlu0 %2480
    %2482 = vadd.xlane.f32.xlu0 %v2453
    %v2483 = vpop.xlane.xlu0 %2482
    %2484 = vadd.xlane.f32.xlu0 %v2454
    %v2485 = vpop.xlane.xlu0 %2484
    %2486 = vadd.xlane.f32.xlu0 %v2455
    %v2487 = vpop.xlane.xlu0 %2486
    %v2488 = vmul.f32 %v2457, %v1627
    %v2489 = vmul.f32 %v2459, %v1627
    %v2490 = vmul.f32 %v2461, %v1627
    %v2491 = vmul.f32 %v2463, %v1627
    %v2492 = vmul.f32 %v2465, %v1627
    %v2493 = vmul.f32 %v2467, %v1627
    %v2494 = vmul.f32 %v2469, %v1627
    %v2495 = vmul.f32 %v2471, %v1627
    %v2496 = vmul.f32 %v2473, %v1627
    %v2497 = vmul.f32 %v2475, %v1627
    %v2498 = vmul.f32 %v2477, %v1627
    %v2499 = vmul.f32 %v2479, %v1627
    %v2500 = vmul.f32 %v2481, %v1627
    %v2501 = vmul.f32 %v2483, %v1627
    %v2502 = vmul.f32 %v2485, %v1627
    %v2503 = vmul.f32 %v2487, %v1627
    %v2504 = vadd.f32 %v2488, 1.1920929e-07
    %v2505 = vadd.f32 %v2489, 1.1920929e-07
    %v2506 = vadd.f32 %v2490, 1.1920929e-07
    %v2507 = vadd.f32 %v2491, 1.1920929e-07
    %v2508 = vadd.f32 %v2492, 1.1920929e-07
    %v2509 = vadd.f32 %v2493, 1.1920929e-07
    %v2510 = vadd.f32 %v2494, 1.1920929e-07
    %v2511 = vadd.f32 %v2495, 1.1920929e-07
    %v2512 = vadd.f32 %v2496, 1.1920929e-07
    %v2513 = vadd.f32 %v2497, 1.1920929e-07
    %v2514 = vadd.f32 %v2498, 1.1920929e-07
    %v2515 = vadd.f32 %v2499, 1.1920929e-07
    %v2516 = vadd.f32 %v2500, 1.1920929e-07
    %v2517 = vadd.f32 %v2501, 1.1920929e-07
    %v2518 = vadd.f32 %v2502, 1.1920929e-07
    %v2519 = vadd.f32 %v2503, 1.1920929e-07
    %v2520 = vrsqrt.pop %v2504
    %v2521 = vrsqrt.pop %v2505
    %v2522 = vrsqrt.pop %v2506
    %v2523 = vrsqrt.pop %v2507
    %v2524 = vrsqrt.pop %v2508
    %v2525 = vrsqrt.pop %v2509
    %v2526 = vrsqrt.pop %v2510
    %v2527 = vrsqrt.pop %v2511
    %v2528 = vrsqrt.pop %v2512
    %v2529 = vrsqrt.pop %v2513
    %v2530 = vrsqrt.pop %v2514
    %v2531 = vrsqrt.pop %v2515
    %v2532 = vrsqrt.pop %v2516
    %v2533 = vrsqrt.pop %v2517
    %v2534 = vrsqrt.pop %v2518
    %v2535 = vrsqrt.pop %v2519
    %v2536 = vmul.f32 %v1197, %v2520
    %v2537 = vmul.f32 %v1201, %v2521
    %v2538 = vmul.f32 %v1207, %v2522
    %v2539 = vmul.f32 %v1211, %v2523
    %v2540 = vmul.f32 %v1217, %v2524
    %v2541 = vmul.f32 %v1221, %v2525
    %v2542 = vmul.f32 %v1227, %v2526
    %v2543 = vmul.f32 %v1231, %v2527
    %v2544 = vmul.f32 %v1237, %v2528
    %v2545 = vmul.f32 %v1241, %v2529
    %v2546 = vmul.f32 %v1247, %v2530
    %v2547 = vmul.f32 %v1251, %v2531
    %v2548 = vmul.f32 %v1257, %v2532
    %v2549 = vmul.f32 %v1261, %v2533
    %v2550 = vmul.f32 %v1267, %v2534
    %v2551 = vmul.f32 %v1271, %v2535
    %v2552 = vmul.f32 %v1310, %v1310
    %v2553 = vmul.f32 %v1314, %v1314
    %v2554 = vmul.f32 %v1320, %v1320
    %v2555 = vmul.f32 %v1324, %v1324
    %v2556 = vmul.f32 %v1330, %v1330
    %v2557 = vmul.f32 %v1334, %v1334
    %v2558 = vmul.f32 %v1340, %v1340
    %v2559 = vmul.f32 %v1344, %v1344
    %v2560 = vmul.f32 %v1350, %v1350
    %v2561 = vmul.f32 %v1354, %v1354
    %v2562 = vmul.f32 %v1360, %v1360
    %v2563 = vmul.f32 %v1364, %v1364
    %v2564 = vmul.f32 %v1370, %v1370
    %v2565 = vmul.f32 %v1374, %v1374
    %v2566 = vmul.f32 %v1380, %v1380
    %v2567 = vmul.f32 %v1384, %v1384
    %2568 = vadd.xlane.f32.xlu0 %v2552
    %v2569 = vpop.xlane.xlu0 %2568
    %2570 = vadd.xlane.f32.xlu0 %v2553
    %v2571 = vpop.xlane.xlu0 %2570
    %2572 = vadd.xlane.f32.xlu0 %v2554
    %v2573 = vpop.xlane.xlu0 %2572
    %2574 = vadd.xlane.f32.xlu0 %v2555
    %v2575 = vpop.xlane.xlu0 %2574
    %2576 = vadd.xlane.f32.xlu0 %v2556
    %v2577 = vpop.xlane.xlu0 %2576
    %2578 = vadd.xlane.f32.xlu0 %v2557
    %v2579 = vpop.xlane.xlu0 %2578
    %2580 = vadd.xlane.f32.xlu0 %v2558
    %v2581 = vpop.xlane.xlu0 %2580
    %2582 = vadd.xlane.f32.xlu0 %v2559
    %v2583 = vpop.xlane.xlu0 %2582
    %2584 = vadd.xlane.f32.xlu0 %v2560
    %v2585 = vpop.xlane.xlu0 %2584
    %2586 = vadd.xlane.f32.xlu0 %v2561
    %v2587 = vpop.xlane.xlu0 %2586
    %2588 = vadd.xlane.f32.xlu0 %v2562
    %v2589 = vpop.xlane.xlu0 %2588
    %2590 = vadd.xlane.f32.xlu0 %v2563
    %v2591 = vpop.xlane.xlu0 %2590
    %2592 = vadd.xlane.f32.xlu0 %v2564
    %v2593 = vpop.xlane.xlu0 %2592
    %2594 = vadd.xlane.f32.xlu0 %v2565
    %v2595 = vpop.xlane.xlu0 %2594
    %2596 = vadd.xlane.f32.xlu0 %v2566
    %v2597 = vpop.xlane.xlu0 %2596
    %2598 = vadd.xlane.f32.xlu0 %v2567
    %v2599 = vpop.xlane.xlu0 %2598
    %v2600 = vmul.f32 %v2569, %v1627
    %v2601 = vmul.f32 %v2571, %v1627
    %v2602 = vmul.f32 %v2573, %v1627
    %v2603 = vmul.f32 %v2575, %v1627
    %v2604 = vmul.f32 %v2577, %v1627
    %v2605 = vmul.f32 %v2579, %v1627
    %v2606 = vmul.f32 %v2581, %v1627
    %v2607 = vmul.f32 %v2583, %v1627
    %v2608 = vmul.f32 %v2585, %v1627
    %v2609 = vmul.f32 %v2587, %v1627
    %v2610 = vmul.f32 %v2589, %v1627
    %v2611 = vmul.f32 %v2591, %v1627
    %v2612 = vmul.f32 %v2593, %v1627
    %v2613 = vmul.f32 %v2595, %v1627
    %v2614 = vmul.f32 %v2597, %v1627
    %v2615 = vmul.f32 %v2599, %v1627
    %v2616 = vadd.f32 %v2600, 1.1920929e-07
    %v2617 = vadd.f32 %v2601, 1.1920929e-07
    %v2618 = vadd.f32 %v2602, 1.1920929e-07
    %v2619 = vadd.f32 %v2603, 1.1920929e-07
    %v2620 = vadd.f32 %v2604, 1.1920929e-07
    %v2621 = vadd.f32 %v2605, 1.1920929e-07
    %v2622 = vadd.f32 %v2606, 1.1920929e-07
    %v2623 = vadd.f32 %v2607, 1.1920929e-07
    %v2624 = vadd.f32 %v2608, 1.1920929e-07
    %v2625 = vadd.f32 %v2609, 1.1920929e-07
    %v2626 = vadd.f32 %v2610, 1.1920929e-07
    %v2627 = vadd.f32 %v2611, 1.1920929e-07
    %v2628 = vadd.f32 %v2612, 1.1920929e-07
    %v2629 = vadd.f32 %v2613, 1.1920929e-07
    %v2630 = vadd.f32 %v2614, 1.1920929e-07
    %v2631 = vadd.f32 %v2615, 1.1920929e-07
    %v2632 = vrsqrt.pop %v2616
    %v2633 = vrsqrt.pop %v2617
    %v2634 = vrsqrt.pop %v2618
    %v2635 = vrsqrt.pop %v2619
    %v2636 = vrsqrt.pop %v2620
    %v2637 = vrsqrt.pop %v2621
    %v2638 = vrsqrt.pop %v2622
    %v2639 = vrsqrt.pop %v2623
    %v2640 = vrsqrt.pop %v2624
    %v2641 = vrsqrt.pop %v2625
    %v2642 = vrsqrt.pop %v2626
    %v2643 = vrsqrt.pop %v2627
    %v2644 = vrsqrt.pop %v2628
    %v2645 = vrsqrt.pop %v2629
    %v2646 = vrsqrt.pop %v2630
    %v2647 = vrsqrt.pop %v2631
    %v2648 = vmul.f32 %v1310, %v2632
    %v2649 = vmul.f32 %v1314, %v2633
    %v2650 = vmul.f32 %v1320, %v2634
    %v2651 = vmul.f32 %v1324, %v2635
    %v2652 = vmul.f32 %v1330, %v2636
    %v2653 = vmul.f32 %v1334, %v2637
    %v2654 = vmul.f32 %v1340, %v2638
    %v2655 = vmul.f32 %v1344, %v2639
    %v2656 = vmul.f32 %v1350, %v2640
    %v2657 = vmul.f32 %v1354, %v2641
    %v2658 = vmul.f32 %v1360, %v2642
    %v2659 = vmul.f32 %v1364, %v2643
    %v2660 = vmul.f32 %v1370, %v2644
    %v2661 = vmul.f32 %v1374, %v2645
    %v2662 = vmul.f32 %v1380, %v2646
    %v2663 = vmul.f32 %v1384, %v2647
    %v2664 = vmul.f32 %v2536, %v1499
    %v2665 = vmul.f32 %v2537, %v1500
    %v2666 = vmul.f32 %v2538, %v1501
    %v2667 = vmul.f32 %v2539, %v1502
    %v2668 = vmul.f32 %v2540, %v1503
    %v2669 = vmul.f32 %v2541, %v1504
    %v2670 = vmul.f32 %v2542, %v1505
    %v2671 = vmul.f32 %v2543, %v1506
    %v2672 = vmul.f32 %v2544, %v1507
    %v2673 = vmul.f32 %v2545, %v1508
    %v2674 = vmul.f32 %v2546, %v1509
    %v2675 = vmul.f32 %v2547, %v1510
    %v2676 = vmul.f32 %v2548, %v1511
    %v2677 = vmul.f32 %v2549, %v1512
    %v2678 = vmul.f32 %v2550, %v1513
    %v2679 = vmul.f32 %v2551, %v1514
    %2680 = vrot.lane.b32.xlu0 %v2536, 64
    %v2681 = vpop.permute.xlu0 %2680
    %2682 = vrot.lane.b32.xlu0 %v2537, 64
    %v2683 = vpop.permute.xlu0 %2682
    %2684 = vrot.lane.b32.xlu0 %v2538, 64
    %v2685 = vpop.permute.xlu0 %2684
    %2686 = vrot.lane.b32.xlu0 %v2539, 64
    %v2687 = vpop.permute.xlu0 %2686
    %2688 = vrot.lane.b32.xlu0 %v2540, 64
    %v2689 = vpop.permute.xlu0 %2688
    %2690 = vrot.lane.b32.xlu0 %v2541, 64
    %v2691 = vpop.permute.xlu0 %2690
    %2692 = vrot.lane.b32.xlu0 %v2542, 64
    %v2693 = vpop.permute.xlu0 %2692
    %2694 = vrot.lane.b32.xlu0 %v2543, 64
    %v2695 = vpop.permute.xlu0 %2694
    %2696 = vrot.lane.b32.xlu0 %v2544, 64
    %v2697 = vpop.permute.xlu0 %2696
    %2698 = vrot.lane.b32.xlu0 %v2545, 64
    %v2699 = vpop.permute.xlu0 %2698
    %2700 = vrot.lane.b32.xlu0 %v2546, 64
    %v2701 = vpop.permute.xlu0 %2700
    %2702 = vrot.lane.b32.xlu0 %v2547, 64
    %v2703 = vpop.permute.xlu0 %2702
    %2704 = vrot.lane.b32.xlu0 %v2548, 64
    %v2705 = vpop.permute.xlu0 %2704
    %2706 = vrot.lane.b32.xlu0 %v2549, 64
    %v2707 = vpop.permute.xlu0 %2706
    %2708 = vrot.lane.b32.xlu0 %v2550, 64
    %v2709 = vpop.permute.xlu0 %2708
    %2710 = vrot.lane.b32.xlu0 %v2551, 64
    %v2711 = vpop.permute.xlu0 %2710
    %v2712 = vmul.f32 %v2681, %v1515
    %v2713 = vmul.f32 %v2683, %v1516
    %v2714 = vmul.f32 %v2685, %v1517
    %v2715 = vmul.f32 %v2687, %v1518
    %v2716 = vmul.f32 %v2689, %v1519
    %v2717 = vmul.f32 %v2691, %v1520
    %v2718 = vmul.f32 %v2693, %v1521
    %v2719 = vmul.f32 %v2695, %v1522
    %v2720 = vmul.f32 %v2697, %v1523
    %v2721 = vmul.f32 %v2699, %v1524
    %v2722 = vmul.f32 %v2701, %v1525
    %v2723 = vmul.f32 %v2703, %v1526
    %v2724 = vmul.f32 %v2705, %v1527
    %v2725 = vmul.f32 %v2707, %v1528
    %v2726 = vmul.f32 %v2709, %v1529
    %v2727 = vmul.f32 %v2711, %v1530
    %v2728 = vadd.f32 %v2664, %v2712
    %v2729 = vadd.f32 %v2665, %v2713
    %v2730 = vadd.f32 %v2666, %v2714
    %v2731 = vadd.f32 %v2667, %v2715
    %v2732 = vadd.f32 %v2668, %v2716
    %v2733 = vadd.f32 %v2669, %v2717
    %v2734 = vadd.f32 %v2670, %v2718
    %v2735 = vadd.f32 %v2671, %v2719
    %v2736 = vadd.f32 %v2672, %v2720
    %v2737 = vadd.f32 %v2673, %v2721
    %v2738 = vadd.f32 %v2674, %v2722
    %v2739 = vadd.f32 %v2675, %v2723
    %v2740 = vadd.f32 %v2676, %v2724
    %v2741 = vadd.f32 %v2677, %v2725
    %v2742 = vadd.f32 %v2678, %v2726
    %v2743 = vadd.f32 %v2679, %v2727
    %v2744 = vmul.f32 %v2648, %v1499
    %v2745 = vmul.f32 %v2649, %v1500
    %v2746 = vmul.f32 %v2650, %v1501
    %v2747 = vmul.f32 %v2651, %v1502
    %v2748 = vmul.f32 %v2652, %v1503
    %v2749 = vmul.f32 %v2653, %v1504
    %v2750 = vmul.f32 %v2654, %v1505
    %v2751 = vmul.f32 %v2655, %v1506
    %v2752 = vmul.f32 %v2656, %v1507
    %v2753 = vmul.f32 %v2657, %v1508
    %v2754 = vmul.f32 %v2658, %v1509
    %v2755 = vmul.f32 %v2659, %v1510
    %v2756 = vmul.f32 %v2660, %v1511
    %v2757 = vmul.f32 %v2661, %v1512
    %v2758 = vmul.f32 %v2662, %v1513
    %v2759 = vmul.f32 %v2663, %v1514
    %2760 = vrot.lane.b32.xlu0 %v2648, 64
    %v2761 = vpop.permute.xlu0 %2760
    %2762 = vrot.lane.b32.xlu0 %v2649, 64
    %v2763 = vpop.permute.xlu0 %2762
    %2764 = vrot.lane.b32.xlu0 %v2650, 64
    %v2765 = vpop.permute.xlu0 %2764
    %2766 = vrot.lane.b32.xlu0 %v2651, 64
    %v2767 = vpop.permute.xlu0 %2766
    %2768 = vrot.lane.b32.xlu0 %v2652, 64
    %v2769 = vpop.permute.xlu0 %2768
    %2770 = vrot.lane.b32.xlu0 %v2653, 64
    %v2771 = vpop.permute.xlu0 %2770
    %2772 = vrot.lane.b32.xlu0 %v2654, 64
    %v2773 = vpop.permute.xlu0 %2772
    %2774 = vrot.lane.b32.xlu0 %v2655, 64
    %v2775 = vpop.permute.xlu0 %2774
    %2776 = vrot.lane.b32.xlu0 %v2656, 64
    %v2777 = vpop.permute.xlu0 %2776
    %2778 = vrot.lane.b32.xlu0 %v2657, 64
    %v2779 = vpop.permute.xlu0 %2778
    %2780 = vrot.lane.b32.xlu0 %v2658, 64
    %v2781 = vpop.permute.xlu0 %2780
    %2782 = vrot.lane.b32.xlu0 %v2659, 64
    %v2783 = vpop.permute.xlu0 %2782
    %2784 = vrot.lane.b32.xlu0 %v2660, 64
    %v2785 = vpop.permute.xlu0 %2784
    %2786 = vrot.lane.b32.xlu0 %v2661, 64
    %v2787 = vpop.permute.xlu0 %2786
    %2788 = vrot.lane.b32.xlu0 %v2662, 64
    %v2789 = vpop.permute.xlu0 %2788
    %2790 = vrot.lane.b32.xlu0 %v2663, 64
    %v2791 = vpop.permute.xlu0 %2790
    %v2792 = vmul.f32 %v2761, %v1515
    %v2793 = vmul.f32 %v2763, %v1516
    %v2794 = vmul.f32 %v2765, %v1517
    %v2795 = vmul.f32 %v2767, %v1518
    %v2796 = vmul.f32 %v2769, %v1519
    %v2797 = vmul.f32 %v2771, %v1520
    %v2798 = vmul.f32 %v2773, %v1521
    %v2799 = vmul.f32 %v2775, %v1522
    %v2800 = vmul.f32 %v2777, %v1523
    %v2801 = vmul.f32 %v2779, %v1524
    %v2802 = vmul.f32 %v2781, %v1525
    %v2803 = vmul.f32 %v2783, %v1526
    %v2804 = vmul.f32 %v2785, %v1527
    %v2805 = vmul.f32 %v2787, %v1528
    %v2806 = vmul.f32 %v2789, %v1529
    %v2807 = vmul.f32 %v2791, %v1530
    %v2808 = vadd.f32 %v2744, %v2792
    %v2809 = vadd.f32 %v2745, %v2793
    %v2810 = vadd.f32 %v2746, %v2794
    %v2811 = vadd.f32 %v2747, %v2795
    %v2812 = vadd.f32 %v2748, %v2796
    %v2813 = vadd.f32 %v2749, %v2797
    %v2814 = vadd.f32 %v2750, %v2798
    %v2815 = vadd.f32 %v2751, %v2799
    %v2816 = vadd.f32 %v2752, %v2800
    %v2817 = vadd.f32 %v2753, %v2801
    %v2818 = vadd.f32 %v2754, %v2802
    %v2819 = vadd.f32 %v2755, %v2803
    %v2820 = vadd.f32 %v2756, %v2804
    %v2821 = vadd.f32 %v2757, %v2805
    %v2822 = vadd.f32 %v2758, %v2806
    %v2823 = vadd.f32 %v2759, %v2807
    %v2824 = vld [vmem:[#allocation14 + $0x8] sm:$0xff]
    %v2825 = vld [vmem:[#allocation14 + $0x18] sm:$0xff]
    %v2826 = vld [vmem:[#allocation14 + $0x28] sm:$0xff]
    %v2827 = vld [vmem:[#allocation14 + $0x38] sm:$0xff]
    %v2828 = vld [vmem:[#allocation14 + $0x48] sm:$0xff]
    %v2829 = vld [vmem:[#allocation14 + $0x58] sm:$0xff]
    %v2830 = vld [vmem:[#allocation14 + $0x68] sm:$0xff]
    %v2831 = vld [vmem:[#allocation14 + $0x78] sm:$0xff]
    %v2832 = vld [vmem:[#allocation14 + $0x88] sm:$0xff]
    %v2833 = vld [vmem:[#allocation14 + $0x98] sm:$0xff]
    %v2834 = vld [vmem:[#allocation14 + $0xa8] sm:$0xff]
    %v2835 = vld [vmem:[#allocation14 + $0xb8] sm:$0xff]
    %v2836 = vld [vmem:[#allocation14 + $0xc8] sm:$0xff]
    %v2837 = vld [vmem:[#allocation14 + $0xd8] sm:$0xff]
    %v2838 = vld [vmem:[#allocation14 + $0xe8] sm:$0xff]
    %v2839 = vld [vmem:[#allocation14 + $0xf8] sm:$0xff]
    %v2840 = vmul.f32 %v1980, %v1423
    %v2841 = vmul.f32 %v1980, %v1427
    %v2842 = vmul.f32 %v1980, %v1433
    %v2843 = vmul.f32 %v1980, %v1437
    %v2844 = vmul.f32 %v1980, %v1443
    %v2845 = vmul.f32 %v1980, %v1447
    %v2846 = vmul.f32 %v1980, %v1453
    %v2847 = vmul.f32 %v1980, %v1457
    %v2848 = vmul.f32 %v1980, %v1463
    %v2849 = vmul.f32 %v1980, %v1467
    %v2850 = vmul.f32 %v1980, %v1473
    %v2851 = vmul.f32 %v1980, %v1477
    %v2852 = vmul.f32 %v1980, %v1483
    %v2853 = vmul.f32 %v1980, %v1487
    %v2854 = vmul.f32 %v1980, %v1493
    %v2855 = vmul.f32 %v1980, %v1497
    %v2856 = vmul.f32 %v1997, %v2824
    %v2857 = vmul.f32 %v1997, %v2825
    %v2858 = vmul.f32 %v1997, %v2826
    %v2859 = vmul.f32 %v1997, %v2827
    %v2860 = vmul.f32 %v1997, %v2828
    %v2861 = vmul.f32 %v1997, %v2829
    %v2862 = vmul.f32 %v1997, %v2830
    %v2863 = vmul.f32 %v1997, %v2831
    %v2864 = vmul.f32 %v1997, %v2832
    %v2865 = vmul.f32 %v1997, %v2833
    %v2866 = vmul.f32 %v1997, %v2834
    %v2867 = vmul.f32 %v1997, %v2835
    %v2868 = vmul.f32 %v1997, %v2836
    %v2869 = vmul.f32 %v1997, %v2837
    %v2870 = vmul.f32 %v1997, %v2838
    %v2871 = vmul.f32 %v1997, %v2839
    %v2872 = vadd.f32 %v2840, %v2856
    %v2873 = vadd.f32 %v2841, %v2857
    %v2874 = vadd.f32 %v2842, %v2858
    %v2875 = vadd.f32 %v2843, %v2859
    %v2876 = vadd.f32 %v2844, %v2860
    %v2877 = vadd.f32 %v2845, %v2861
    %v2878 = vadd.f32 %v2846, %v2862
    %v2879 = vadd.f32 %v2847, %v2863
    %v2880 = vadd.f32 %v2848, %v2864
    %v2881 = vadd.f32 %v2849, %v2865
    %v2882 = vadd.f32 %v2850, %v2866
    %v2883 = vadd.f32 %v2851, %v2867
    %v2884 = vadd.f32 %v2852, %v2868
    %v2885 = vadd.f32 %v2853, %v2869
    %v2886 = vadd.f32 %v2854, %v2870
    %v2887 = vadd.f32 %v2855, %v2871
    %v2888 = vpack.c.bf16 %v2729, %v2728
    %v2889 = vpack.c.bf16 %v2731, %v2730
    %v2890 = vpack.c.bf16 %v2733, %v2732
    %v2891 = vpack.c.bf16 %v2735, %v2734
    %v2892 = vpack.c.bf16 %v2737, %v2736
    %v2893 = vpack.c.bf16 %v2739, %v2738
    %v2894 = vpack.c.bf16 %v2741, %v2740
    %v2895 = vpack.c.bf16 %v2743, %v2742
    %v2896 = vpack.c.bf16 %v2809, %v2808
    %v2897 = vpack.c.bf16 %v2811, %v2810
    %v2898 = vpack.c.bf16 %v2813, %v2812
    %v2899 = vpack.c.bf16 %v2815, %v2814
    %v2900 = vpack.c.bf16 %v2817, %v2816
    %v2901 = vpack.c.bf16 %v2819, %v2818
    %v2902 = vpack.c.bf16 %v2821, %v2820
    %v2903 = vpack.c.bf16 %v2823, %v2822
    %2904 = vmatprep.subr.bf16.mxu0 0
    %2905 = vmatpush1.bf16.xpose.msra.mxu0 %v2896
    %2906 = vmatprep.subr.bf16.mxu0 0
    %2907 = vmatpush1.bf16.xpose.msra.mxu0 %v2897
    %2908 = vmatprep.subr.bf16.mxu0 0
    %2909 = vmatpush1.bf16.xpose.msra.mxu0 %v2898
    %2910 = vmatprep.subr.bf16.mxu0 0
    %2911 = vmatpush1.bf16.xpose.msra.mxu0 %v2899
    %2912 = vmatprep.subr.bf16.mxu0 0
    %2913 = vmatpush1.bf16.xpose.msra.mxu0 %v2900
    %2914 = vmatprep.subr.bf16.mxu0 0
    %2915 = vmatpush1.bf16.xpose.msra.mxu0 %v2901
    %2916 = vmatprep.subr.bf16.mxu0 0
    %2917 = vmatpush1.bf16.xpose.msra.mxu0 %v2902
    %2918 = vmatprep.subr.bf16.mxu0 0
    %2919 = vmatpush1.bf16.xpose.msra.mxu0 %v2903
    %2920 = vmatprep.subr.bf16.mxu0 0
    %2921 = vmatpush1.bf16.xpose.msra.mxu0 0
    %2922 = vmatprep.subr.bf16.mxu0 0
    %2923 = vmatpush1.bf16.xpose.msra.mxu0 0
    %2924 = vmatprep.subr.bf16.mxu0 0
    %2925 = vmatpush1.bf16.xpose.msra.mxu0 0
    %2926 = vmatprep.subr.bf16.mxu0 0
    %2927 = vmatpush1.bf16.xpose.msra.mxu0 0
    %2928 = vmatprep.subr.bf16.mxu0 0
    %2929 = vmatpush1.bf16.xpose.msra.mxu0 0
    %2930 = vmatprep.subr.bf16.mxu0 0
    %2931 = vmatpush1.bf16.xpose.msra.mxu0 0
    %2932 = vmatprep.subr.bf16.mxu0 0
    %2933 = vmatpush1.bf16.xpose.msra.mxu0 0
    %2934 = vmatprep.subr.bf16.mxu0 0
    %2935 = vmatpush1.bf16.xpose.msra.mxu0 0
    %2936 = vmatprep.mubr.bf16.mxu0 0
    %2937 = vmatmul.mubr.bf16.gmra.mrb[0].mxu0 %v2888
    %v2938 = vpop.f32.mrb[0].mxu0
    %v2939 = vadd.f32 0.0, %v2938
    %v2940 = vpop.f32.mrb[0].mxu0
    %v2941 = vpop.f32.mrb[0].mxu0
    %v2942 = vadd.f32 0.0, %v2941
    %v2943 = vpop.f32.mrb[0].mxu0
    %2944 = vmatprep.mubr.bf16.mxu0 0
    %2945 = vmatmul.mubr.bf16.gmra.mrb[0].mxu0 %v2889
    %v2946 = vpop.f32.mrb[0].mxu0
    %v2947 = vadd.f32 0.0, %v2946
    %v2948 = vpop.f32.mrb[0].mxu0
    %v2949 = vpop.f32.mrb[0].mxu0
    %v2950 = vadd.f32 0.0, %v2949
    %v2951 = vpop.f32.mrb[0].mxu0
    %2952 = vmatprep.mubr.bf16.mxu0 0
    %2953 = vmatmul.mubr.bf16.gmra.mrb[0].mxu0 %v2890
    %v2954 = vpop.f32.mrb[0].mxu0
    %v2955 = vadd.f32 0.0, %v2954
    %v2956 = vpop.f32.mrb[0].mxu0
    %v2957 = vpop.f32.mrb[0].mxu0
    %v2958 = vadd.f32 0.0, %v2957
    %v2959 = vpop.f32.mrb[0].mxu0
    %2960 = vmatprep.mubr.bf16.mxu0 0
    %2961 = vmatmul.mubr.bf16.gmra.mrb[0].mxu0 %v2891
    %v2962 = vpop.f32.mrb[0].mxu0
    %v2963 = vadd.f32 0.0, %v2962
    %v2964 = vpop.f32.mrb[0].mxu0
    %v2965 = vpop.f32.mrb[0].mxu0
    %v2966 = vadd.f32 0.0, %v2965
    %v2967 = vpop.f32.mrb[0].mxu0
    %2968 = vmatprep.mubr.bf16.mxu0 0
    %2969 = vmatmul.mubr.bf16.gmra.mrb[0].mxu0 %v2892
    %v2970 = vpop.f32.mrb[0].mxu0
    %v2971 = vadd.f32 0.0, %v2970
    %v2972 = vpop.f32.mrb[0].mxu0
    %v2973 = vpop.f32.mrb[0].mxu0
    %v2974 = vadd.f32 0.0, %v2973
    %v2975 = vpop.f32.mrb[0].mxu0
    %2976 = vmatprep.mubr.bf16.mxu0 0
    %2977 = vmatmul.mubr.bf16.gmra.mrb[0].mxu0 %v2893
    %v2978 = vpop.f32.mrb[0].mxu0
    %v2979 = vadd.f32 0.0, %v2978
    %v2980 = vpop.f32.mrb[0].mxu0
    %v2981 = vpop.f32.mrb[0].mxu0
    %v2982 = vadd.f32 0.0, %v2981
    %v2983 = vpop.f32.mrb[0].mxu0
    %2984 = vmatprep.mubr.bf16.mxu0 0
    %2985 = vmatmul.mubr.bf16.gmra.mrb[0].mxu0 %v2894
    %v2986 = vpop.f32.mrb[0].mxu0
    %v2987 = vadd.f32 0.0, %v2986
    %v2988 = vpop.f32.mrb[0].mxu0
    %v2989 = vpop.f32.mrb[0].mxu0
    %v2990 = vadd.f32 0.0, %v2989
    %v2991 = vpop.f32.mrb[0].mxu0
    %2992 = vmatprep.mubr.bf16.mxu0 0
    %2993 = vmatmul.mubr.bf16.gmra.mrb[0].mxu0 %v2895
    %v2994 = vpop.f32.mrb[0].mxu0
    %v2995 = vadd.f32 0.0, %v2994
    %v2996 = vpop.f32.mrb[0].mxu0
    %v2997 = vpop.f32.mrb[0].mxu0
    %v2998 = vadd.f32 0.0, %v2997
    %v2999 = vpop.f32.mrb[0].mxu0
    %3000 = vdwg.mxu0
    %v3001 = vmul.f32 %v2939, 0.12
    %v3002 = vmul.f32 %v2942, 0.12
    %v3003 = vmul.f32 %v2947, 0.12
    %v3004 = vmul.f32 %v2950, 0.12
    %v3005 = vmul.f32 %v2955, 0.12
    %v3006 = vmul.f32 %v2958, 0.12
    %v3007 = vmul.f32 %v2963, 0.12
    %v3008 = vmul.f32 %v2966, 0.12
    %v3009 = vmul.f32 %v2971, 0.12
    %v3010 = vmul.f32 %v2974, 0.12
    %v3011 = vmul.f32 %v2979, 0.12
    %v3012 = vmul.f32 %v2982, 0.12
    %v3013 = vmul.f32 %v2987, 0.12
    %v3014 = vmul.f32 %v2990, 0.12
    %v3015 = vmul.f32 %v2995, 0.12
    %v3016 = vmul.f32 %v2998, 0.12
    %v3017 = vadd.f32 %v3001, %v1531
    %v3018 = vadd.f32 %v3002, %v1532
    %v3019 = vadd.f32 %v3003, %v1533
    %v3020 = vadd.f32 %v3004, %v1534
    %v3021 = vadd.f32 %v3005, %v1535
    %v3022 = vadd.f32 %v3006, %v1536
    %v3023 = vadd.f32 %v3007, %v1537
    %v3024 = vadd.f32 %v3008, %v1538
    %v3025 = vadd.f32 %v3009, %v1539
    %v3026 = vadd.f32 %v3010, %v1540
    %v3027 = vadd.f32 %v3011, %v1541
    %v3028 = vadd.f32 %v3012, %v1542
    %v3029 = vadd.f32 %v3013, %v1543
    %v3030 = vadd.f32 %v3014, %v1544
    %v3031 = vadd.f32 %v3015, %v1545
    %v3032 = vadd.f32 %v3016, %v1546
    %3033 = vmax.xlane.f32.xlu0 %v3017
    %v3034 = vpop.xlane.xlu0 %3033
    %3035 = vmax.xlane.f32.xlu0 %v3018
    %v3036 = vpop.xlane.xlu0 %3035
    %3037 = vmax.xlane.f32.xlu0 %v3019
    %v3038 = vpop.xlane.xlu0 %3037
    %3039 = vmax.xlane.f32.xlu0 %v3020
    %v3040 = vpop.xlane.xlu0 %3039
    %3041 = vmax.xlane.f32.xlu0 %v3021
    %v3042 = vpop.xlane.xlu0 %3041
    %3043 = vmax.xlane.f32.xlu0 %v3022
    %v3044 = vpop.xlane.xlu0 %3043
    %3045 = vmax.xlane.f32.xlu0 %v3023
    %v3046 = vpop.xlane.xlu0 %3045
    %3047 = vmax.xlane.f32.xlu0 %v3024
    %v3048 = vpop.xlane.xlu0 %3047
    %3049 = vmax.xlane.f32.xlu0 %v3025
    %v3050 = vpop.xlane.xlu0 %3049
    %3051 = vmax.xlane.f32.xlu0 %v3026
    %v3052 = vpop.xlane.xlu0 %3051
    %3053 = vmax.xlane.f32.xlu0 %v3027
    %v3054 = vpop.xlane.xlu0 %3053
    %3055 = vmax.xlane.f32.xlu0 %v3028
    %v3056 = vpop.xlane.xlu0 %3055
    %3057 = vmax.xlane.f32.xlu0 %v3029
    %v3058 = vpop.xlane.xlu0 %3057
    %3059 = vmax.xlane.f32.xlu0 %v3030
    %v3060 = vpop.xlane.xlu0 %3059
    %3061 = vmax.xlane.f32.xlu0 %v3031
    %v3062 = vpop.xlane.xlu0 %3061
    %3063 = vmax.xlane.f32.xlu0 %v3032
    %v3064 = vpop.xlane.xlu0 %3063
    %v3065 = vsub.f32 %v3017, %v3034
    %v3066 = vsub.f32 %v3018, %v3036
    %v3067 = vsub.f32 %v3019, %v3038
    %v3068 = vsub.f32 %v3020, %v3040
    %v3069 = vsub.f32 %v3021, %v3042
    %v3070 = vsub.f32 %v3022, %v3044
    %v3071 = vsub.f32 %v3023, %v3046
    %v3072 = vsub.f32 %v3024, %v3048
    %v3073 = vsub.f32 %v3025, %v3050
    %v3074 = vsub.f32 %v3026, %v3052
    %v3075 = vsub.f32 %v3027, %v3054
    %v3076 = vsub.f32 %v3028, %v3056
    %v3077 = vsub.f32 %v3029, %v3058
    %v3078 = vsub.f32 %v3030, %v3060
    %v3079 = vsub.f32 %v3031, %v3062
    %v3080 = vsub.f32 %v3032, %v3064
    %v3081 = vmul.f32 %v3065, 1.442695
    %v3082 = vpow.pop %v3081
    %v3083 = vmul.f32 %v3066, 1.442695
    %v3084 = vpow.pop %v3083
    %v3085 = vmul.f32 %v3067, 1.442695
    %v3086 = vpow.pop %v3085
    %v3087 = vmul.f32 %v3068, 1.442695
    %v3088 = vpow.pop %v3087
    %v3089 = vmul.f32 %v3069, 1.442695
    %v3090 = vpow.pop %v3089
    %v3091 = vmul.f32 %v3070, 1.442695
    %v3092 = vpow.pop %v3091
    %v3093 = vmul.f32 %v3071, 1.442695
    %v3094 = vpow.pop %v3093
    %v3095 = vmul.f32 %v3072, 1.442695
    %v3096 = vpow.pop %v3095
    %v3097 = vmul.f32 %v3073, 1.442695
    %v3098 = vpow.pop %v3097
    %v3099 = vmul.f32 %v3074, 1.442695
    %v3100 = vpow.pop %v3099
    %v3101 = vmul.f32 %v3075, 1.442695
    %v3102 = vpow.pop %v3101
    %v3103 = vmul.f32 %v3076, 1.442695
    %v3104 = vpow.pop %v3103
    %v3105 = vmul.f32 %v3077, 1.442695
    %v3106 = vpow.pop %v3105
    %v3107 = vmul.f32 %v3078, 1.442695
    %v3108 = vpow.pop %v3107
    %v3109 = vmul.f32 %v3079, 1.442695
    %v3110 = vpow.pop %v3109
    %v3111 = vmul.f32 %v3080, 1.442695
    %v3112 = vpow.pop %v3111
    %3113 = vadd.xlane.f32.xlu0 %v3082
    %v3114 = vpop.xlane.xlu0 %3113
    %3115 = vadd.xlane.f32.xlu0 %v3084
    %v3116 = vpop.xlane.xlu0 %3115
    %3117 = vadd.xlane.f32.xlu0 %v3086
    %v3118 = vpop.xlane.xlu0 %3117
    %3119 = vadd.xlane.f32.xlu0 %v3088
    %v3120 = vpop.xlane.xlu0 %3119
    %3121 = vadd.xlane.f32.xlu0 %v3090
    %v3122 = vpop.xlane.xlu0 %3121
    %3123 = vadd.xlane.f32.xlu0 %v3092
    %v3124 = vpop.xlane.xlu0 %3123
    %3125 = vadd.xlane.f32.xlu0 %v3094
    %v3126 = vpop.xlane.xlu0 %3125
    %3127 = vadd.xlane.f32.xlu0 %v3096
    %v3128 = vpop.xlane.xlu0 %3127
    %3129 = vadd.xlane.f32.xlu0 %v3098
    %v3130 = vpop.xlane.xlu0 %3129
    %3131 = vadd.xlane.f32.xlu0 %v3100
    %v3132 = vpop.xlane.xlu0 %3131
    %3133 = vadd.xlane.f32.xlu0 %v3102
    %v3134 = vpop.xlane.xlu0 %3133
    %3135 = vadd.xlane.f32.xlu0 %v3104
    %v3136 = vpop.xlane.xlu0 %3135
    %3137 = vadd.xlane.f32.xlu0 %v3106
    %v3138 = vpop.xlane.xlu0 %3137
    %3139 = vadd.xlane.f32.xlu0 %v3108
    %v3140 = vpop.xlane.xlu0 %3139
    %3141 = vadd.xlane.f32.xlu0 %v3110
    %v3142 = vpop.xlane.xlu0 %3141
    %3143 = vadd.xlane.f32.xlu0 %v3112
    %v3144 = vpop.xlane.xlu0 %3143
    %v3145 = vrcp.pop %v3114
    %v3146 = vrcp.pop %v3116
    %v3147 = vrcp.pop %v3118
    %v3148 = vrcp.pop %v3120
    %v3149 = vrcp.pop %v3122
    %v3150 = vrcp.pop %v3124
    %v3151 = vrcp.pop %v3126
    %v3152 = vrcp.pop %v3128
    %v3153 = vrcp.pop %v3130
    %v3154 = vrcp.pop %v3132
    %v3155 = vrcp.pop %v3134
    %v3156 = vrcp.pop %v3136
    %v3157 = vrcp.pop %v3138
    %v3158 = vrcp.pop %v3140
    %v3159 = vrcp.pop %v3142
    %v3160 = vrcp.pop %v3144
    %v3161 = vmul.f32 %v3082, %v3145
    %v3162 = vmul.f32 %v3084, %v3146
    %v3163 = vmul.f32 %v3086, %v3147
    %v3164 = vmul.f32 %v3088, %v3148
    %v3165 = vmul.f32 %v3090, %v3149
    %v3166 = vmul.f32 %v3092, %v3150
    %v3167 = vmul.f32 %v3094, %v3151
    %v3168 = vmul.f32 %v3096, %v3152
    %v3169 = vmul.f32 %v3098, %v3153
    %v3170 = vmul.f32 %v3100, %v3154
    %v3171 = vmul.f32 %v3102, %v3155
    %v3172 = vmul.f32 %v3104, %v3156
    %v3173 = vmul.f32 %v3106, %v3157
    %v3174 = vmul.f32 %v3108, %v3158
    %v3175 = vmul.f32 %v3110, %v3159
    %v3176 = vmul.f32 %v3112, %v3160
    %v3177 = vpack.c.bf16 %v3162, %v3161
    %v3178 = vpack.c.bf16 %v3164, %v3163
    %v3179 = vpack.c.bf16 %v3166, %v3165
    %v3180 = vpack.c.bf16 %v3168, %v3167
    %v3181 = vpack.c.bf16 %v3170, %v3169
    %v3182 = vpack.c.bf16 %v3172, %v3171
    %v3183 = vpack.c.bf16 %v3174, %v3173
    %v3184 = vpack.c.bf16 %v3176, %v3175
    %v3185 = vpack.c.bf16 %v2873, %v2872
    %v3186 = vpack.c.bf16 %v2875, %v2874
    %v3187 = vpack.c.bf16 %v2877, %v2876
    %v3188 = vpack.c.bf16 %v2879, %v2878
    %v3189 = vpack.c.bf16 %v2881, %v2880
    %v3190 = vpack.c.bf16 %v2883, %v2882
    %v3191 = vpack.c.bf16 %v2885, %v2884
    %v3192 = vpack.c.bf16 %v2887, %v2886
    %3193 = vmatprep.subr.bf16.mxu0 0
    %3194 = vmatpush1.bf16.msra.mxu0 %v3185
    %3195 = vmatprep.subr.bf16.mxu0 0
    %3196 = vmatpush1.bf16.msra.mxu0 %v3186
    %3197 = vmatprep.subr.bf16.mxu0 0
    %3198 = vmatpush1.bf16.msra.mxu0 %v3187
    %3199 = vmatprep.subr.bf16.mxu0 0
    %3200 = vmatpush1.bf16.msra.mxu0 %v3188
    %3201 = vmatprep.subr.bf16.mxu0 0
    %3202 = vmatpush1.bf16.msra.mxu0 %v3189
    %3203 = vmatprep.subr.bf16.mxu0 0
    %3204 = vmatpush1.bf16.msra.mxu0 %v3190
    %3205 = vmatprep.subr.bf16.mxu0 0
    %3206 = vmatpush1.bf16.msra.mxu0 %v3191
    %3207 = vmatprep.subr.bf16.mxu0 0
    %3208 = vmatpush1.bf16.msra.mxu0 %v3192
    %3209 = vmatprep.subr.bf16.mxu0 0
    %3210 = vmatpush1.bf16.msra.mxu0 0
    %3211 = vmatprep.subr.bf16.mxu0 0
    %3212 = vmatpush1.bf16.msra.mxu0 0
    %3213 = vmatprep.subr.bf16.mxu0 0
    %3214 = vmatpush1.bf16.msra.mxu0 0
    %3215 = vmatprep.subr.bf16.mxu0 0
    %3216 = vmatpush1.bf16.msra.mxu0 0
    %3217 = vmatprep.subr.bf16.mxu0 0
    %3218 = vmatpush1.bf16.msra.mxu0 0
    %3219 = vmatprep.subr.bf16.mxu0 0
    %3220 = vmatpush1.bf16.msra.mxu0 0
    %3221 = vmatprep.subr.bf16.mxu0 0
    %3222 = vmatpush1.bf16.msra.mxu0 0
    %3223 = vmatprep.subr.bf16.mxu0 0
    %3224 = vmatpush1.bf16.msra.mxu0 0
    %3225 = vmatprep.mubr.bf16.mxu0 0
    %3226 = vmatmul.mubr.bf16.gmra.mrb[0].mxu0 %v3177
    %v3227 = vpop.f32.mrb[0].mxu0
    %v3228 = vadd.f32 0.0, %v3227
    %v3229 = vpop.f32.mrb[0].mxu0
    %v3230 = vpop.f32.mrb[0].mxu0
    %v3231 = vadd.f32 0.0, %v3230
    %v3232 = vpop.f32.mrb[0].mxu0
    %3233 = vmatprep.mubr.bf16.mxu0 0
    %3234 = vmatmul.mubr.bf16.gmra.mrb[0].mxu0 %v3178
    %v3235 = vpop.f32.mrb[0].mxu0
    %v3236 = vadd.f32 0.0, %v3235
    %v3237 = vpop.f32.mrb[0].mxu0
    %v3238 = vpop.f32.mrb[0].mxu0
    %v3239 = vadd.f32 0.0, %v3238
    %v3240 = vpop.f32.mrb[0].mxu0
    %3241 = vmatprep.mubr.bf16.mxu0 0
    %3242 = vmatmul.mubr.bf16.gmra.mrb[0].mxu0 %v3179
    %v3243 = vpop.f32.mrb[0].mxu0
    %v3244 = vadd.f32 0.0, %v3243
    %v3245 = vpop.f32.mrb[0].mxu0
    %v3246 = vpop.f32.mrb[0].mxu0
    %v3247 = vadd.f32 0.0, %v3246
    %v3248 = vpop.f32.mrb[0].mxu0
    %3249 = vmatprep.mubr.bf16.mxu0 0
    %3250 = vmatmul.mubr.bf16.gmra.mrb[0].mxu0 %v3180
    %v3251 = vpop.f32.mrb[0].mxu0
    %v3252 = vadd.f32 0.0, %v3251
    %v3253 = vpop.f32.mrb[0].mxu0
    %v3254 = vpop.f32.mrb[0].mxu0
    %v3255 = vadd.f32 0.0, %v3254
    %v3256 = vpop.f32.mrb[0].mxu0
    %3257 = vmatprep.mubr.bf16.mxu0 0
    %3258 = vmatmul.mubr.bf16.gmra.mrb[0].mxu0 %v3181
    %v3259 = vpop.f32.mrb[0].mxu0
    %v3260 = vadd.f32 0.0, %v3259
    %v3261 = vpop.f32.mrb[0].mxu0
    %v3262 = vpop.f32.mrb[0].mxu0
    %v3263 = vadd.f32 0.0, %v3262
    %v3264 = vpop.f32.mrb[0].mxu0
    %3265 = vmatprep.mubr.bf16.mxu0 0
    %3266 = vmatmul.mubr.bf16.gmra.mrb[0].mxu0 %v3182
    %v3267 = vpop.f32.mrb[0].mxu0
    %v3268 = vadd.f32 0.0, %v3267
    %v3269 = vpop.f32.mrb[0].mxu0
    %v3270 = vpop.f32.mrb[0].mxu0
    %v3271 = vadd.f32 0.0, %v3270
    %v3272 = vpop.f32.mrb[0].mxu0
    %3273 = vmatprep.mubr.bf16.mxu0 0
    %3274 = vmatmul.mubr.bf16.gmra.mrb[0].mxu0 %v3183
    %v3275 = vpop.f32.mrb[0].mxu0
    %v3276 = vadd.f32 0.0, %v3275
    %v3277 = vpop.f32.mrb[0].mxu0
    %v3278 = vpop.f32.mrb[0].mxu0
    %v3279 = vadd.f32 0.0, %v3278
    %v3280 = vpop.f32.mrb[0].mxu0
    %3281 = vmatprep.mubr.bf16.mxu0 0
    %3282 = vmatmul.mubr.bf16.gmra.mrb[0].mxu0 %v3184
    %v3283 = vpop.f32.mrb[0].mxu0
    %v3284 = vadd.f32 0.0, %v3283
    %v3285 = vpop.f32.mrb[0].mxu0
    %v3286 = vpop.f32.mrb[0].mxu0
    %v3287 = vadd.f32 0.0, %v3286
    %v3288 = vpop.f32.mrb[0].mxu0
    %3289 = vdwg.mxu0
    %v3290 = vpack.c.bf16 %v3231, %v3228
    %v3291 = vpack.c.bf16 %v3239, %v3236
    %v3292 = vpack.c.bf16 %v3247, %v3244
    %v3293 = vpack.c.bf16 %v3255, %v3252
    %v3294 = vpack.c.bf16 %v3263, %v3260
    %v3295 = vpack.c.bf16 %v3271, %v3268
    %v3296 = vpack.c.bf16 %v3279, %v3276
    %v3297 = vpack.c.bf16 %v3287, %v3284
    %v3314 = vunpack.c.l.b16 %v1563
    %v3315 = vunpack.c.h.b16 %v1563
    %v3316 = vunpack.c.l.b16 %v1564
    %v3317 = vunpack.c.h.b16 %v1564
    %v3318 = vunpack.c.l.b16 %v1565
    %v3319 = vunpack.c.h.b16 %v1565
    %v3320 = vunpack.c.l.b16 %v1566
    %v3321 = vunpack.c.h.b16 %v1566
    %v3322 = vunpack.c.l.b16 %v1567
    %v3323 = vunpack.c.h.b16 %v1567
    %v3324 = vunpack.c.l.b16 %v1568
    %v3325 = vunpack.c.h.b16 %v1568
    %v3326 = vunpack.c.l.b16 %v1569
    %v3327 = vunpack.c.h.b16 %v1569
    %v3328 = vunpack.c.l.b16 %v1570
    %v3329 = vunpack.c.h.b16 %v1570
    %v3330 = vunpack.c.l.b16 %v1571
    %v3331 = vunpack.c.h.b16 %v1571
    %v3332 = vunpack.c.l.b16 %v1572
    %v3333 = vunpack.c.h.b16 %v1572
    %v3334 = vunpack.c.l.b16 %v1573
    %v3335 = vunpack.c.h.b16 %v1573
    %v3336 = vunpack.c.l.b16 %v1574
    %v3337 = vunpack.c.h.b16 %v1574
    %v3338 = vunpack.c.l.b16 %v1575
    %v3339 = vunpack.c.h.b16 %v1575
    %v3340 = vunpack.c.l.b16 %v1576
    %v3341 = vunpack.c.h.b16 %v1576
    %v3342 = vunpack.c.l.b16 %v1577
    %v3343 = vunpack.c.h.b16 %v1577
    %v3344 = vunpack.c.l.b16 %v1578
    %v3345 = vunpack.c.h.b16 %v1578
    %v3346 = vpack.c.b16 %v3316, %v3314
    %v3347 = vpack.c.b16 %v3317, %v3315
    %v3348 = vpack.c.b16 %v3320, %v3318
    %v3349 = vpack.c.b16 %v3321, %v3319
    %v3350 = vpack.c.b16 %v3324, %v3322
    %v3351 = vpack.c.b16 %v3325, %v3323
    %v3352 = vpack.c.b16 %v3328, %v3326
    %v3353 = vpack.c.b16 %v3329, %v3327
    %v3354 = vpack.c.b16 %v3332, %v3330
    %v3355 = vpack.c.b16 %v3333, %v3331
    %v3356 = vpack.c.b16 %v3336, %v3334
    %v3357 = vpack.c.b16 %v3337, %v3335
    %v3358 = vpack.c.b16 %v3340, %v3338
    %v3359 = vpack.c.b16 %v3341, %v3339
    %v3360 = vpack.c.b16 %v3344, %v3342
    %v3361 = vpack.c.b16 %v3345, %v3343
    %3378 = vmatprep.subr.bf16.mxu0 %v3347
    %3379 = vmatpush1.bf16.msra.mxu0 %v3346
    %3380 = vmatprep.subr.bf16.mxu0 %v3349
    %3381 = vmatpush1.bf16.msra.mxu0 %v3348
    %3382 = vmatprep.subr.bf16.mxu0 %v3351
    %3383 = vmatpush1.bf16.msra.mxu0 %v3350
    %3384 = vmatprep.subr.bf16.mxu0 %v3353
    %3385 = vmatpush1.bf16.msra.mxu0 %v3352
    %3386 = vmatprep.subr.bf16.mxu0 %v3355
    %3387 = vmatpush1.bf16.msra.mxu0 %v3354
    %3388 = vmatprep.subr.bf16.mxu0 %v3357
    %3389 = vmatpush1.bf16.msra.mxu0 %v3356
    %3390 = vmatprep.subr.bf16.mxu0 %v3359
    %3391 = vmatpush1.bf16.msra.mxu0 %v3358
    %3392 = vmatprep.subr.bf16.mxu0 %v3361
    %3393 = vmatpush1.bf16.msra.mxu0 %v3360
    %3394 = vmatprep.subr.bf16.mxu0 0
    %3395 = vmatpush1.bf16.msra.mxu0 0
    %3396 = vmatprep.subr.bf16.mxu0 0
    %3397 = vmatpush1.bf16.msra.mxu0 0
    %3398 = vmatprep.subr.bf16.mxu0 0
    %3399 = vmatpush1.bf16.msra.mxu0 0
    %3400 = vmatprep.subr.bf16.mxu0 0
    %3401 = vmatpush1.bf16.msra.mxu0 0
    %3402 = vmatprep.subr.bf16.mxu0 0
    %3403 = vmatpush1.bf16.msra.mxu0 0
    %3404 = vmatprep.subr.bf16.mxu0 0
    %3405 = vmatpush1.bf16.msra.mxu0 0
    %3406 = vmatprep.subr.bf16.mxu0 0
    %3407 = vmatpush1.bf16.msra.mxu0 0
    %3408 = vmatprep.subr.bf16.mxu0 0
    %3409 = vmatpush1.bf16.msra.mxu0 0
    %3410 = vmatprep.mubr.bf16.mxu0 0
    %3411 = vmatmul.mubr.bf16.gmra.mrb[0].mxu0 %v3290
    %v3412 = vpop.f32.mrb[0].mxu0
    %v3413 = vadd.f32 0.0, %v3412
    %v3414 = vpop.f32.mrb[0].mxu0
    %v3415 = vadd.f32 0.0, %v3414
    %v3416 = vpop.f32.mrb[0].mxu0
    %v3417 = vadd.f32 0.0, %v3416
    %v3418 = vpop.f32.mrb[0].mxu0
    %v3419 = vadd.f32 0.0, %v3418
    %3420 = vmatprep.mubr.bf16.mxu0 0
    %3421 = vmatmul.mubr.bf16.gmra.mrb[0].mxu0 %v3291
    %v3422 = vpop.f32.mrb[0].mxu0
    %v3423 = vadd.f32 0.0, %v3422
    %v3424 = vpop.f32.mrb[0].mxu0
    %v3425 = vadd.f32 0.0, %v3424
    %v3426 = vpop.f32.mrb[0].mxu0
    %v3427 = vadd.f32 0.0, %v3426
    %v3428 = vpop.f32.mrb[0].mxu0
    %v3429 = vadd.f32 0.0, %v3428
    %3430 = vmatprep.mubr.bf16.mxu0 0
    %3431 = vmatmul.mubr.bf16.gmra.mrb[0].mxu0 %v3292
    %v3432 = vpop.f32.mrb[0].mxu0
    %v3433 = vadd.f32 0.0, %v3432
    %v3434 = vpop.f32.mrb[0].mxu0
    %v3435 = vadd.f32 0.0, %v3434
    %v3436 = vpop.f32.mrb[0].mxu0
    %v3437 = vadd.f32 0.0, %v3436
    %v3438 = vpop.f32.mrb[0].mxu0
    %v3439 = vadd.f32 0.0, %v3438
    %3440 = vmatprep.mubr.bf16.mxu0 0
    %3441 = vmatmul.mubr.bf16.gmra.mrb[0].mxu0 %v3293
    %v3442 = vpop.f32.mrb[0].mxu0
    %v3443 = vadd.f32 0.0, %v3442
    %v3444 = vpop.f32.mrb[0].mxu0
    %v3445 = vadd.f32 0.0, %v3444
    %v3446 = vpop.f32.mrb[0].mxu0
    %v3447 = vadd.f32 0.0, %v3446
    %v3448 = vpop.f32.mrb[0].mxu0
    %v3449 = vadd.f32 0.0, %v3448
    %3450 = vmatprep.mubr.bf16.mxu0 0
    %3451 = vmatmul.mubr.bf16.gmra.mrb[0].mxu0 %v3294
    %v3452 = vpop.f32.mrb[0].mxu0
    %v3453 = vadd.f32 0.0, %v3452
    %v3454 = vpop.f32.mrb[0].mxu0
    %v3455 = vadd.f32 0.0, %v3454
    %v3456 = vpop.f32.mrb[0].mxu0
    %v3457 = vadd.f32 0.0, %v3456
    %v3458 = vpop.f32.mrb[0].mxu0
    %v3459 = vadd.f32 0.0, %v3458
    %3460 = vmatprep.mubr.bf16.mxu0 0
    %3461 = vmatmul.mubr.bf16.gmra.mrb[0].mxu0 %v3295
    %v3462 = vpop.f32.mrb[0].mxu0
    %v3463 = vadd.f32 0.0, %v3462
    %v3464 = vpop.f32.mrb[0].mxu0
    %v3465 = vadd.f32 0.0, %v3464
    %v3466 = vpop.f32.mrb[0].mxu0
    %v3467 = vadd.f32 0.0, %v3466
    %v3468 = vpop.f32.mrb[0].mxu0
    %v3469 = vadd.f32 0.0, %v3468
    %3470 = vmatprep.mubr.bf16.mxu0 0
    %3471 = vmatmul.mubr.bf16.gmra.mrb[0].mxu0 %v3296
    %v3472 = vpop.f32.mrb[0].mxu0
    %v3473 = vadd.f32 0.0, %v3472
    %v3474 = vpop.f32.mrb[0].mxu0
    %v3475 = vadd.f32 0.0, %v3474
    %v3476 = vpop.f32.mrb[0].mxu0
    %v3477 = vadd.f32 0.0, %v3476
    %v3478 = vpop.f32.mrb[0].mxu0
    %v3479 = vadd.f32 0.0, %v3478
    %3480 = vmatprep.mubr.bf16.mxu0 0
    %3481 = vmatmul.mubr.bf16.gmra.mrb[0].mxu0 %v3297
    %v3482 = vpop.f32.mrb[0].mxu0
    %v3483 = vadd.f32 0.0, %v3482
    %v3484 = vpop.f32.mrb[0].mxu0
    %v3485 = vadd.f32 0.0, %v3484
    %v3486 = vpop.f32.mrb[0].mxu0
    %v3487 = vadd.f32 0.0, %v3486
    %v3488 = vpop.f32.mrb[0].mxu0
    %v3489 = vadd.f32 0.0, %v3488
    %3490 = vdwg.mxu0
    %v3507 = vunpack.c.l.b16 %v1547
    %v3508 = vunpack.c.h.b16 %v1547
    %v3509 = vunpack.c.l.b16 %v1548
    %v3510 = vunpack.c.h.b16 %v1548
    %v3511 = vunpack.c.l.b16 %v1549
    %v3512 = vunpack.c.h.b16 %v1549
    %v3513 = vunpack.c.l.b16 %v1550
    %v3514 = vunpack.c.h.b16 %v1550
    %v3515 = vunpack.c.l.b16 %v1551
    %v3516 = vunpack.c.h.b16 %v1551
    %v3517 = vunpack.c.l.b16 %v1552
    %v3518 = vunpack.c.h.b16 %v1552
    %v3519 = vunpack.c.l.b16 %v1553
    %v3520 = vunpack.c.h.b16 %v1553
    %v3521 = vunpack.c.l.b16 %v1554
    %v3522 = vunpack.c.h.b16 %v1554
    %v3523 = vunpack.c.l.b16 %v1555
    %v3524 = vunpack.c.h.b16 %v1555
    %v3525 = vunpack.c.l.b16 %v1556
    %v3526 = vunpack.c.h.b16 %v1556
    %v3527 = vunpack.c.l.b16 %v1557
    %v3528 = vunpack.c.h.b16 %v1557
    %v3529 = vunpack.c.l.b16 %v1558
    %v3530 = vunpack.c.h.b16 %v1558
    %v3531 = vunpack.c.l.b16 %v1559
    %v3532 = vunpack.c.h.b16 %v1559
    %v3533 = vunpack.c.l.b16 %v1560
    %v3534 = vunpack.c.h.b16 %v1560
    %v3535 = vunpack.c.l.b16 %v1561
    %v3536 = vunpack.c.h.b16 %v1561
    %v3537 = vunpack.c.l.b16 %v1562
    %v3538 = vunpack.c.h.b16 %v1562
    %v3539 = vpack.c.b16 %v3509, %v3507
    %v3540 = vpack.c.b16 %v3510, %v3508
    %v3541 = vpack.c.b16 %v3513, %v3511
    %v3542 = vpack.c.b16 %v3514, %v3512
    %v3543 = vpack.c.b16 %v3517, %v3515
    %v3544 = vpack.c.b16 %v3518, %v3516
    %v3545 = vpack.c.b16 %v3521, %v3519
    %v3546 = vpack.c.b16 %v3522, %v3520
    %v3547 = vpack.c.b16 %v3525, %v3523
    %v3548 = vpack.c.b16 %v3526, %v3524
    %v3549 = vpack.c.b16 %v3529, %v3527
    %v3550 = vpack.c.b16 %v3530, %v3528
    %v3551 = vpack.c.b16 %v3533, %v3531
    %v3552 = vpack.c.b16 %v3534, %v3532
    %v3553 = vpack.c.b16 %v3537, %v3535
    %v3554 = vpack.c.b16 %v3538, %v3536
    %3571 = vmatprep.subr.bf16.mxu0 %v3540
    %3572 = vmatpush1.bf16.msra.mxu0 %v3539
    %3573 = vmatprep.subr.bf16.mxu0 %v3542
    %3574 = vmatpush1.bf16.msra.mxu0 %v3541
    %3575 = vmatprep.subr.bf16.mxu0 %v3544
    %3576 = vmatpush1.bf16.msra.mxu0 %v3543
    %3577 = vmatprep.subr.bf16.mxu0 %v3546
    %3578 = vmatpush1.bf16.msra.mxu0 %v3545
    %3579 = vmatprep.subr.bf16.mxu0 %v3548
    %3580 = vmatpush1.bf16.msra.mxu0 %v3547
    %3581 = vmatprep.subr.bf16.mxu0 %v3550
    %3582 = vmatpush1.bf16.msra.mxu0 %v3549
    %3583 = vmatprep.subr.bf16.mxu0 %v3552
    %3584 = vmatpush1.bf16.msra.mxu0 %v3551
    %3585 = vmatprep.subr.bf16.mxu0 %v3554
    %3586 = vmatpush1.bf16.msra.mxu0 %v3553
    %3587 = vmatprep.subr.bf16.mxu0 0
    %3588 = vmatpush1.bf16.msra.mxu0 0
    %3589 = vmatprep.subr.bf16.mxu0 0
    %3590 = vmatpush1.bf16.msra.mxu0 0
    %3591 = vmatprep.subr.bf16.mxu0 0
    %3592 = vmatpush1.bf16.msra.mxu0 0
    %3593 = vmatprep.subr.bf16.mxu0 0
    %3594 = vmatpush1.bf16.msra.mxu0 0
    %3595 = vmatprep.subr.bf16.mxu0 0
    %3596 = vmatpush1.bf16.msra.mxu0 0
    %3597 = vmatprep.subr.bf16.mxu0 0
    %3598 = vmatpush1.bf16.msra.mxu0 0
    %3599 = vmatprep.subr.bf16.mxu0 0
    %3600 = vmatpush1.bf16.msra.mxu0 0
    %3601 = vmatprep.subr.bf16.mxu0 0
    %3602 = vmatpush1.bf16.msra.mxu0 0
    %3603 = vmatprep.mubr.bf16.mxu0 0
    %3604 = vmatmul.mubr.bf16.gmra.mrb[0].mxu0 %v2432
    %v3605 = vpop.f32.mrb[0].mxu0
    %v3606 = vadd.f32 %v3413, %v3605
    %v3607 = vpop.f32.mrb[0].mxu0
    %v3608 = vadd.f32 %v3415, %v3607
    %v3609 = vpop.f32.mrb[0].mxu0
    %v3610 = vadd.f32 %v3417, %v3609
    %v3611 = vpop.f32.mrb[0].mxu0
    %v3612 = vadd.f32 %v3419, %v3611
    %3613 = vmatprep.mubr.bf16.mxu0 0
    %3614 = vmatmul.mubr.bf16.gmra.mrb[0].mxu0 %v2433
    %v3615 = vpop.f32.mrb[0].mxu0
    %v3616 = vadd.f32 %v3423, %v3615
    %v3617 = vpop.f32.mrb[0].mxu0
    %v3618 = vadd.f32 %v3425, %v3617
    %v3619 = vpop.f32.mrb[0].mxu0
    %v3620 = vadd.f32 %v3427, %v3619
    %v3621 = vpop.f32.mrb[0].mxu0
    %v3622 = vadd.f32 %v3429, %v3621
    %3623 = vmatprep.mubr.bf16.mxu0 0
    %3624 = vmatmul.mubr.bf16.gmra.mrb[0].mxu0 %v2434
    %v3625 = vpop.f32.mrb[0].mxu0
    %v3626 = vadd.f32 %v3433, %v3625
    %v3627 = vpop.f32.mrb[0].mxu0
    %v3628 = vadd.f32 %v3435, %v3627
    %v3629 = vpop.f32.mrb[0].mxu0
    %v3630 = vadd.f32 %v3437, %v3629
    %v3631 = vpop.f32.mrb[0].mxu0
    %v3632 = vadd.f32 %v3439, %v3631
    %3633 = vmatprep.mubr.bf16.mxu0 0
    %3634 = vmatmul.mubr.bf16.gmra.mrb[0].mxu0 %v2435
    %v3635 = vpop.f32.mrb[0].mxu0
    %v3636 = vadd.f32 %v3443, %v3635
    %v3637 = vpop.f32.mrb[0].mxu0
    %v3638 = vadd.f32 %v3445, %v3637
    %v3639 = vpop.f32.mrb[0].mxu0
    %v3640 = vadd.f32 %v3447, %v3639
    %v3641 = vpop.f32.mrb[0].mxu0
    %v3642 = vadd.f32 %v3449, %v3641
    %3643 = vmatprep.mubr.bf16.mxu0 0
    %3644 = vmatmul.mubr.bf16.gmra.mrb[0].mxu0 %v2436
    %v3645 = vpop.f32.mrb[0].mxu0
    %v3646 = vadd.f32 %v3453, %v3645
    %v3647 = vpop.f32.mrb[0].mxu0
    %v3648 = vadd.f32 %v3455, %v3647
    %v3649 = vpop.f32.mrb[0].mxu0
    %v3650 = vadd.f32 %v3457, %v3649
    %v3651 = vpop.f32.mrb[0].mxu0
    %v3652 = vadd.f32 %v3459, %v3651
    %3653 = vmatprep.mubr.bf16.mxu0 0
    %3654 = vmatmul.mubr.bf16.gmra.mrb[0].mxu0 %v2437
    %v3655 = vpop.f32.mrb[0].mxu0
    %v3656 = vadd.f32 %v3463, %v3655
    %v3657 = vpop.f32.mrb[0].mxu0
    %v3658 = vadd.f32 %v3465, %v3657
    %v3659 = vpop.f32.mrb[0].mxu0
    %v3660 = vadd.f32 %v3467, %v3659
    %v3661 = vpop.f32.mrb[0].mxu0
    %v3662 = vadd.f32 %v3469, %v3661
    %3663 = vmatprep.mubr.bf16.mxu0 0
    %3664 = vmatmul.mubr.bf16.gmra.mrb[0].mxu0 %v2438
    %v3665 = vpop.f32.mrb[0].mxu0
    %v3666 = vadd.f32 %v3473, %v3665
    %v3667 = vpop.f32.mrb[0].mxu0
    %v3668 = vadd.f32 %v3475, %v3667
    %v3669 = vpop.f32.mrb[0].mxu0
    %v3670 = vadd.f32 %v3477, %v3669
    %v3671 = vpop.f32.mrb[0].mxu0
    %v3672 = vadd.f32 %v3479, %v3671
    %3673 = vmatprep.mubr.bf16.mxu0 0
    %3674 = vmatmul.mubr.bf16.gmra.mrb[0].mxu0 %v2439
    %v3675 = vpop.f32.mrb[0].mxu0
    %v3676 = vadd.f32 %v3483, %v3675
    %v3677 = vpop.f32.mrb[0].mxu0
    %v3678 = vadd.f32 %v3485, %v3677
    %v3679 = vpop.f32.mrb[0].mxu0
    %v3680 = vadd.f32 %v3487, %v3679
    %v3681 = vpop.f32.mrb[0].mxu0
    %v3682 = vadd.f32 %v3489, %v3681
    %3683 = vdwg.mxu0
    %v3684 = vadd.f32 %v375, %v3606
    %v3685 = vadd.f32 %v376, %v3608
    %v3686 = vadd.f32 %v377, %v3610
    %v3687 = vadd.f32 %v378, %v3612
    %v3688 = vadd.f32 %v379, %v3616
    %v3689 = vadd.f32 %v380, %v3618
    %v3690 = vadd.f32 %v381, %v3620
    %v3691 = vadd.f32 %v382, %v3622
    %v3692 = vadd.f32 %v383, %v3626
    %v3693 = vadd.f32 %v384, %v3628
    %v3694 = vadd.f32 %v385, %v3630
    %v3695 = vadd.f32 %v386, %v3632
    %v3696 = vadd.f32 %v387, %v3636
    %v3697 = vadd.f32 %v388, %v3638
    %v3698 = vadd.f32 %v389, %v3640
    %v3699 = vadd.f32 %v390, %v3642
    %v3700 = vadd.f32 %v391, %v3646
    %v3701 = vadd.f32 %v392, %v3648
    %v3702 = vadd.f32 %v393, %v3650
    %v3703 = vadd.f32 %v394, %v3652
    %v3704 = vadd.f32 %v395, %v3656
    %v3705 = vadd.f32 %v396, %v3658
    %v3706 = vadd.f32 %v397, %v3660
    %v3707 = vadd.f32 %v398, %v3662
    %v3708 = vadd.f32 %v399, %v3666
    %v3709 = vadd.f32 %v400, %v3668
    %v3710 = vadd.f32 %v401, %v3670
    %v3711 = vadd.f32 %v402, %v3672
    %v3712 = vadd.f32 %v403, %v3676
    %v3713 = vadd.f32 %v404, %v3678
    %v3714 = vadd.f32 %v405, %v3680
    %v3715 = vadd.f32 %v406, %v3682
    %s3716 = smul.u32 4, 32
    %s3717 = smul.u32 %s3716, 8
    %s3718 = sshll.u32 %s3717, 4
    %3719 = dma.done [#allocation4], %s3718
    %s3720 = smul.u32 4, 128
    %s3721 = smul.u32 %s3720, 2
    %s3722 = sshll.u32 %s3721, 4
    %3723 = dma.done %s206, %s3722
    %v3724 = vmul.f32 %v3684, %v3684
    %v3725 = vmul.f32 %v3685, %v3685
    %v3726 = vmul.f32 %v3686, %v3686
    %v3727 = vmul.f32 %v3687, %v3687
    %v3728 = vmul.f32 %v3688, %v3688
    %v3729 = vmul.f32 %v3689, %v3689
    %v3730 = vmul.f32 %v3690, %v3690
    %v3731 = vmul.f32 %v3691, %v3691
    %v3732 = vmul.f32 %v3692, %v3692
    %v3733 = vmul.f32 %v3693, %v3693
    %v3734 = vmul.f32 %v3694, %v3694
    %v3735 = vmul.f32 %v3695, %v3695
    %v3736 = vmul.f32 %v3696, %v3696
    %v3737 = vmul.f32 %v3697, %v3697
    %v3738 = vmul.f32 %v3698, %v3698
    %v3739 = vmul.f32 %v3699, %v3699
    %v3740 = vmul.f32 %v3700, %v3700
    %v3741 = vmul.f32 %v3701, %v3701
    %v3742 = vmul.f32 %v3702, %v3702
    %v3743 = vmul.f32 %v3703, %v3703
    %v3744 = vmul.f32 %v3704, %v3704
    %v3745 = vmul.f32 %v3705, %v3705
    %v3746 = vmul.f32 %v3706, %v3706
    %v3747 = vmul.f32 %v3707, %v3707
    %v3748 = vmul.f32 %v3708, %v3708
    %v3749 = vmul.f32 %v3709, %v3709
    %v3750 = vmul.f32 %v3710, %v3710
    %v3751 = vmul.f32 %v3711, %v3711
    %v3752 = vmul.f32 %v3712, %v3712
    %v3753 = vmul.f32 %v3713, %v3713
    %v3754 = vmul.f32 %v3714, %v3714
    %v3755 = vmul.f32 %v3715, %v3715
    %v3756 = vadd.f32 %v3724, %v3725
    %3757 = vadd.xlane.f32.xlu0 %v3756
    %v3758 = vpop.xlane.xlu0 %3757
    %v3759 = vadd.f32 %v3726, %v3727
    %3760 = vadd.xlane.f32.xlu0 %v3759
    %v3761 = vpop.xlane.xlu0 %3760
    %v3762 = vadd.f32 %v3728, %v3729
    %3763 = vadd.xlane.f32.xlu0 %v3762
    %v3764 = vpop.xlane.xlu0 %3763
    %v3765 = vadd.f32 %v3730, %v3731
    %3766 = vadd.xlane.f32.xlu0 %v3765
    %v3767 = vpop.xlane.xlu0 %3766
    %v3768 = vadd.f32 %v3732, %v3733
    %3769 = vadd.xlane.f32.xlu0 %v3768
    %v3770 = vpop.xlane.xlu0 %3769
    %v3771 = vadd.f32 %v3734, %v3735
    %3772 = vadd.xlane.f32.xlu0 %v3771
    %v3773 = vpop.xlane.xlu0 %3772
    %v3774 = vadd.f32 %v3736, %v3737
    %3775 = vadd.xlane.f32.xlu0 %v3774
    %v3776 = vpop.xlane.xlu0 %3775
    %v3777 = vadd.f32 %v3738, %v3739
    %3778 = vadd.xlane.f32.xlu0 %v3777
    %v3779 = vpop.xlane.xlu0 %3778
    %v3780 = vadd.f32 %v3740, %v3741
    %3781 = vadd.xlane.f32.xlu0 %v3780
    %v3782 = vpop.xlane.xlu0 %3781
    %v3783 = vadd.f32 %v3742, %v3743
    %3784 = vadd.xlane.f32.xlu0 %v3783
    %v3785 = vpop.xlane.xlu0 %3784
    %v3786 = vadd.f32 %v3744, %v3745
    %3787 = vadd.xlane.f32.xlu0 %v3786
    %v3788 = vpop.xlane.xlu0 %3787
    %v3789 = vadd.f32 %v3746, %v3747
    %3790 = vadd.xlane.f32.xlu0 %v3789
    %v3791 = vpop.xlane.xlu0 %3790
    %v3792 = vadd.f32 %v3748, %v3749
    %3793 = vadd.xlane.f32.xlu0 %v3792
    %v3794 = vpop.xlane.xlu0 %3793
    %v3795 = vadd.f32 %v3750, %v3751
    %3796 = vadd.xlane.f32.xlu0 %v3795
    %v3797 = vpop.xlane.xlu0 %3796
    %v3798 = vadd.f32 %v3752, %v3753
    %3799 = vadd.xlane.f32.xlu0 %v3798
    %v3800 = vpop.xlane.xlu0 %3799
    %v3801 = vadd.f32 %v3754, %v3755
    %3802 = vadd.xlane.f32.xlu0 %v3801
    %v3803 = vpop.xlane.xlu0 %3802
    %v3804 = vmul.f32 %v3758, %v487
    %v3805 = vmul.f32 %v3761, %v487
    %v3806 = vmul.f32 %v3764, %v487
    %v3807 = vmul.f32 %v3767, %v487
    %v3808 = vmul.f32 %v3770, %v487
    %v3809 = vmul.f32 %v3773, %v487
    %v3810 = vmul.f32 %v3776, %v487
    %v3811 = vmul.f32 %v3779, %v487
    %v3812 = vmul.f32 %v3782, %v487
    %v3813 = vmul.f32 %v3785, %v487
    %v3814 = vmul.f32 %v3788, %v487
    %v3815 = vmul.f32 %v3791, %v487
    %v3816 = vmul.f32 %v3794, %v487
    %v3817 = vmul.f32 %v3797, %v487
    %v3818 = vmul.f32 %v3800, %v487
    %v3819 = vmul.f32 %v3803, %v487
    %v3820 = vadd.f32 %v3804, 1.1920929e-07
    %v3821 = vadd.f32 %v3805, 1.1920929e-07
    %v3822 = vadd.f32 %v3806, 1.1920929e-07
    %v3823 = vadd.f32 %v3807, 1.1920929e-07
    %v3824 = vadd.f32 %v3808, 1.1920929e-07
    %v3825 = vadd.f32 %v3809, 1.1920929e-07
    %v3826 = vadd.f32 %v3810, 1.1920929e-07
    %v3827 = vadd.f32 %v3811, 1.1920929e-07
    %v3828 = vadd.f32 %v3812, 1.1920929e-07
    %v3829 = vadd.f32 %v3813, 1.1920929e-07
    %v3830 = vadd.f32 %v3814, 1.1920929e-07
    %v3831 = vadd.f32 %v3815, 1.1920929e-07
    %v3832 = vadd.f32 %v3816, 1.1920929e-07
    %v3833 = vadd.f32 %v3817, 1.1920929e-07
    %v3834 = vadd.f32 %v3818, 1.1920929e-07
    %v3835 = vadd.f32 %v3819, 1.1920929e-07
    %v3836 = vrsqrt.pop %v3820
    %v3837 = vrsqrt.pop %v3821
    %v3838 = vrsqrt.pop %v3822
    %v3839 = vrsqrt.pop %v3823
    %v3840 = vrsqrt.pop %v3824
    %v3841 = vrsqrt.pop %v3825
    %v3842 = vrsqrt.pop %v3826
    %v3843 = vrsqrt.pop %v3827
    %v3844 = vrsqrt.pop %v3828
    %v3845 = vrsqrt.pop %v3829
    %v3846 = vrsqrt.pop %v3830
    %v3847 = vrsqrt.pop %v3831
    %v3848 = vrsqrt.pop %v3832
    %v3849 = vrsqrt.pop %v3833
    %v3850 = vrsqrt.pop %v3834
    %v3851 = vrsqrt.pop %v3835
    %v3852 = vmul.f32 %v3684, %v3836
    %v3853 = vmul.f32 %v3685, %v3836
    %v3854 = vmul.f32 %v3686, %v3837
    %v3855 = vmul.f32 %v3687, %v3837
    %v3856 = vmul.f32 %v3688, %v3838
    %v3857 = vmul.f32 %v3689, %v3838
    %v3858 = vmul.f32 %v3690, %v3839
    %v3859 = vmul.f32 %v3691, %v3839
    %v3860 = vmul.f32 %v3692, %v3840
    %v3861 = vmul.f32 %v3693, %v3840
    %v3862 = vmul.f32 %v3694, %v3841
    %v3863 = vmul.f32 %v3695, %v3841
    %v3864 = vmul.f32 %v3696, %v3842
    %v3865 = vmul.f32 %v3697, %v3842
    %v3866 = vmul.f32 %v3698, %v3843
    %v3867 = vmul.f32 %v3699, %v3843
    %v3868 = vmul.f32 %v3700, %v3844
    %v3869 = vmul.f32 %v3701, %v3844
    %v3870 = vmul.f32 %v3702, %v3845
    %v3871 = vmul.f32 %v3703, %v3845
    %v3872 = vmul.f32 %v3704, %v3846
    %v3873 = vmul.f32 %v3705, %v3846
    %v3874 = vmul.f32 %v3706, %v3847
    %v3875 = vmul.f32 %v3707, %v3847
    %v3876 = vmul.f32 %v3708, %v3848
    %v3877 = vmul.f32 %v3709, %v3848
    %v3878 = vmul.f32 %v3710, %v3849
    %v3879 = vmul.f32 %v3711, %v3849
    %v3880 = vmul.f32 %v3712, %v3850
    %v3881 = vmul.f32 %v3713, %v3850
    %v3882 = vmul.f32 %v3714, %v3851
    %v3883 = vmul.f32 %v3715, %v3851
    %v3884 = vpack.c.bf16 %v3854, %v3852
    %v3885 = vpack.c.bf16 %v3855, %v3853
    %v3886 = vpack.c.bf16 %v3858, %v3856
    %v3887 = vpack.c.bf16 %v3859, %v3857
    %v3888 = vpack.c.bf16 %v3862, %v3860
    %v3889 = vpack.c.bf16 %v3863, %v3861
    %v3890 = vpack.c.bf16 %v3866, %v3864
    %v3891 = vpack.c.bf16 %v3867, %v3865
    %v3892 = vpack.c.bf16 %v3870, %v3868
    %v3893 = vpack.c.bf16 %v3871, %v3869
    %v3894 = vpack.c.bf16 %v3874, %v3872
    %v3895 = vpack.c.bf16 %v3875, %v3873
    %v3896 = vpack.c.bf16 %v3878, %v3876
    %v3897 = vpack.c.bf16 %v3879, %v3877
    %v3898 = vpack.c.bf16 %v3882, %v3880
    %v3899 = vpack.c.bf16 %v3883, %v3881
    %v3900 = vld [vmem:[#allocation2] sm:$0xff]
    %v3901 = vld [vmem:[#allocation2 + $0x8] sm:$0xff]
    %v3902 = vld [vmem:[#allocation2 + $0x10] sm:$0xff]
    %v3903 = vld [vmem:[#allocation2 + $0x18] sm:$0xff]
    %v3904 = vld [vmem:[#allocation2 + $0x20] sm:$0xff]
    %v3905 = vld [vmem:[#allocation2 + $0x28] sm:$0xff]
    %v3906 = vld [vmem:[#allocation2 + $0x30] sm:$0xff]
    %v3907 = vld [vmem:[#allocation2 + $0x38] sm:$0xff]
    %v3908 = vld [vmem:[#allocation2 + $0x40] sm:$0xff]
    %v3909 = vld [vmem:[#allocation2 + $0x48] sm:$0xff]
    %v3910 = vld [vmem:[#allocation2 + $0x50] sm:$0xff]
    %v3911 = vld [vmem:[#allocation2 + $0x58] sm:$0xff]
    %v3912 = vld [vmem:[#allocation2 + $0x60] sm:$0xff]
    %v3913 = vld [vmem:[#allocation2 + $0x68] sm:$0xff]
    %v3914 = vld [vmem:[#allocation2 + $0x70] sm:$0xff]
    %v3915 = vld [vmem:[#allocation2 + $0x78] sm:$0xff]
    %v3916 = vld [vmem:[#allocation2 + $0x80] sm:$0xff]
    %v3917 = vld [vmem:[#allocation2 + $0x88] sm:$0xff]
    %v3918 = vld [vmem:[#allocation2 + $0x90] sm:$0xff]
    %v3919 = vld [vmem:[#allocation2 + $0x98] sm:$0xff]
    %v3920 = vld [vmem:[#allocation2 + $0xa0] sm:$0xff]
    %v3921 = vld [vmem:[#allocation2 + $0xa8] sm:$0xff]
    %v3922 = vld [vmem:[#allocation2 + $0xb0] sm:$0xff]
    %v3923 = vld [vmem:[#allocation2 + $0xb8] sm:$0xff]
    %v3924 = vld [vmem:[#allocation2 + $0xc0] sm:$0xff]
    %v3925 = vld [vmem:[#allocation2 + $0xc8] sm:$0xff]
    %v3926 = vld [vmem:[#allocation2 + $0xd0] sm:$0xff]
    %v3927 = vld [vmem:[#allocation2 + $0xd8] sm:$0xff]
    %v3928 = vld [vmem:[#allocation2 + $0xe0] sm:$0xff]
    %v3929 = vld [vmem:[#allocation2 + $0xe8] sm:$0xff]
    %v3930 = vld [vmem:[#allocation2 + $0xf0] sm:$0xff]
    %v3931 = vld [vmem:[#allocation2 + $0xf8] sm:$0xff]
    %v3932 = vld [vmem:[#allocation2 + $0x100] sm:$0xff]
    %v3933 = vld [vmem:[#allocation2 + $0x108] sm:$0xff]
    %v3934 = vld [vmem:[#allocation2 + $0x110] sm:$0xff]
    %v3935 = vld [vmem:[#allocation2 + $0x118] sm:$0xff]
    %v3936 = vld [vmem:[#allocation2 + $0x120] sm:$0xff]
    %v3937 = vld [vmem:[#allocation2 + $0x128] sm:$0xff]
    %v3938 = vld [vmem:[#allocation2 + $0x130] sm:$0xff]
    %v3939 = vld [vmem:[#allocation2 + $0x138] sm:$0xff]
    %v3940 = vld [vmem:[#allocation2 + $0x140] sm:$0xff]
    %v3941 = vld [vmem:[#allocation2 + $0x148] sm:$0xff]
    %v3942 = vld [vmem:[#allocation2 + $0x150] sm:$0xff]
    %v3943 = vld [vmem:[#allocation2 + $0x158] sm:$0xff]
    %v3944 = vld [vmem:[#allocation2 + $0x160] sm:$0xff]
    %v3945 = vld [vmem:[#allocation2 + $0x168] sm:$0xff]
    %v3946 = vld [vmem:[#allocation2 + $0x170] sm:$0xff]
    %v3947 = vld [vmem:[#allocation2 + $0x178] sm:$0xff]
    %v3948 = vld [vmem:[#allocation2 + $0x180] sm:$0xff]
    %v3949 = vld [vmem:[#allocation2 + $0x188] sm:$0xff]
    %v3950 = vld [vmem:[#allocation2 + $0x190] sm:$0xff]
    %v3951 = vld [vmem:[#allocation2 + $0x198] sm:$0xff]
    %v3952 = vld [vmem:[#allocation2 + $0x1a0] sm:$0xff]
    %v3953 = vld [vmem:[#allocation2 + $0x1a8] sm:$0xff]
    %v3954 = vld [vmem:[#allocation2 + $0x1b0] sm:$0xff]
    %v3955 = vld [vmem:[#allocation2 + $0x1b8] sm:$0xff]
    %v3956 = vld [vmem:[#allocation2 + $0x1c0] sm:$0xff]
    %v3957 = vld [vmem:[#allocation2 + $0x1c8] sm:$0xff]
    %v3958 = vld [vmem:[#allocation2 + $0x1d0] sm:$0xff]
    %v3959 = vld [vmem:[#allocation2 + $0x1d8] sm:$0xff]
    %v3960 = vld [vmem:[#allocation2 + $0x1e0] sm:$0xff]
    %v3961 = vld [vmem:[#allocation2 + $0x1e8] sm:$0xff]
    %v3962 = vld [vmem:[#allocation2 + $0x1f0] sm:$0xff]
    %v3963 = vld [vmem:[#allocation2 + $0x1f8] sm:$0xff]
    %v3964 = vld [vmem:[#allocation2 + $0x200] sm:$0xff]
    %v3965 = vld [vmem:[#allocation2 + $0x208] sm:$0xff]
    %v3966 = vld [vmem:[#allocation2 + $0x210] sm:$0xff]
    %v3967 = vld [vmem:[#allocation2 + $0x218] sm:$0xff]
    %v3968 = vld [vmem:[#allocation2 + $0x220] sm:$0xff]
    %v3969 = vld [vmem:[#allocation2 + $0x228] sm:$0xff]
    %v3970 = vld [vmem:[#allocation2 + $0x230] sm:$0xff]
    %v3971 = vld [vmem:[#allocation2 + $0x238] sm:$0xff]
    %v3972 = vld [vmem:[#allocation2 + $0x240] sm:$0xff]
    %v3973 = vld [vmem:[#allocation2 + $0x248] sm:$0xff]
    %v3974 = vld [vmem:[#allocation2 + $0x250] sm:$0xff]
    %v3975 = vld [vmem:[#allocation2 + $0x258] sm:$0xff]
    %v3976 = vld [vmem:[#allocation2 + $0x260] sm:$0xff]
    %v3977 = vld [vmem:[#allocation2 + $0x268] sm:$0xff]
    %v3978 = vld [vmem:[#allocation2 + $0x270] sm:$0xff]
    %v3979 = vld [vmem:[#allocation2 + $0x278] sm:$0xff]
    %v3980 = vld [vmem:[#allocation2 + $0x280] sm:$0xff]
    %v3981 = vld [vmem:[#allocation2 + $0x288] sm:$0xff]
    %v3982 = vld [vmem:[#allocation2 + $0x290] sm:$0xff]
    %v3983 = vld [vmem:[#allocation2 + $0x298] sm:$0xff]
    %v3984 = vld [vmem:[#allocation2 + $0x2a0] sm:$0xff]
    %v3985 = vld [vmem:[#allocation2 + $0x2a8] sm:$0xff]
    %v3986 = vld [vmem:[#allocation2 + $0x2b0] sm:$0xff]
    %v3987 = vld [vmem:[#allocation2 + $0x2b8] sm:$0xff]
    %v3988 = vld [vmem:[#allocation2 + $0x2c0] sm:$0xff]
    %v3989 = vld [vmem:[#allocation2 + $0x2c8] sm:$0xff]
    %v3990 = vld [vmem:[#allocation2 + $0x2d0] sm:$0xff]
    %v3991 = vld [vmem:[#allocation2 + $0x2d8] sm:$0xff]
    %v3992 = vld [vmem:[#allocation2 + $0x2e0] sm:$0xff]
    %v3993 = vld [vmem:[#allocation2 + $0x2e8] sm:$0xff]
    %v3994 = vld [vmem:[#allocation2 + $0x2f0] sm:$0xff]
    %v3995 = vld [vmem:[#allocation2 + $0x2f8] sm:$0xff]
    %v3996 = vld [vmem:[#allocation2 + $0x300] sm:$0xff]
    %v3997 = vld [vmem:[#allocation2 + $0x308] sm:$0xff]
    %v3998 = vld [vmem:[#allocation2 + $0x310] sm:$0xff]
    %v3999 = vld [vmem:[#allocation2 + $0x318] sm:$0xff]
    %v4000 = vld [vmem:[#allocation2 + $0x320] sm:$0xff]
    %v4001 = vld [vmem:[#allocation2 + $0x328] sm:$0xff]
    %v4002 = vld [vmem:[#allocation2 + $0x330] sm:$0xff]
    %v4003 = vld [vmem:[#allocation2 + $0x338] sm:$0xff]
    %v4004 = vld [vmem:[#allocation2 + $0x340] sm:$0xff]
    %v4005 = vld [vmem:[#allocation2 + $0x348] sm:$0xff]
    %v4006 = vld [vmem:[#allocation2 + $0x350] sm:$0xff]
    %v4007 = vld [vmem:[#allocation2 + $0x358] sm:$0xff]
    %v4008 = vld [vmem:[#allocation2 + $0x360] sm:$0xff]
    %v4009 = vld [vmem:[#allocation2 + $0x368] sm:$0xff]
    %v4010 = vld [vmem:[#allocation2 + $0x370] sm:$0xff]
    %v4011 = vld [vmem:[#allocation2 + $0x378] sm:$0xff]
    %v4012 = vld [vmem:[#allocation2 + $0x380] sm:$0xff]
    %v4013 = vld [vmem:[#allocation2 + $0x388] sm:$0xff]
    %v4014 = vld [vmem:[#allocation2 + $0x390] sm:$0xff]
    %v4015 = vld [vmem:[#allocation2 + $0x398] sm:$0xff]
    %v4016 = vld [vmem:[#allocation2 + $0x3a0] sm:$0xff]
    %v4017 = vld [vmem:[#allocation2 + $0x3a8] sm:$0xff]
    %v4018 = vld [vmem:[#allocation2 + $0x3b0] sm:$0xff]
    %v4019 = vld [vmem:[#allocation2 + $0x3b8] sm:$0xff]
    %v4020 = vld [vmem:[#allocation2 + $0x3c0] sm:$0xff]
    %v4021 = vld [vmem:[#allocation2 + $0x3c8] sm:$0xff]
    %v4022 = vld [vmem:[#allocation2 + $0x3d0] sm:$0xff]
    %v4023 = vld [vmem:[#allocation2 + $0x3d8] sm:$0xff]
    %v4024 = vld [vmem:[#allocation2 + $0x3e0] sm:$0xff]
    %v4025 = vld [vmem:[#allocation2 + $0x3e8] sm:$0xff]
    %v4026 = vld [vmem:[#allocation2 + $0x3f0] sm:$0xff]
    %v4027 = vld [vmem:[#allocation2 + $0x3f8] sm:$0xff]
    %4028 = vmatprep.subr.bf16.mxu0 %v3901
    %4029 = vmatpush1.bf16.msra.mxu0 %v3900
    %4030 = vmatprep.subr.bf16.mxu0 %v3909
    %4031 = vmatpush1.bf16.msra.mxu0 %v3908
    %4032 = vmatprep.subr.bf16.mxu0 %v3917
    %4033 = vmatpush1.bf16.msra.mxu0 %v3916
    %4034 = vmatprep.subr.bf16.mxu0 %v3925
    %4035 = vmatpush1.bf16.msra.mxu0 %v3924
    %4036 = vmatprep.subr.bf16.mxu0 %v3933
    %4037 = vmatpush1.bf16.msra.mxu0 %v3932
    %4038 = vmatprep.subr.bf16.mxu0 %v3941
    %4039 = vmatpush1.bf16.msra.mxu0 %v3940
    %4040 = vmatprep.subr.bf16.mxu0 %v3949
    %4041 = vmatpush1.bf16.msra.mxu0 %v3948
    %4042 = vmatprep.subr.bf16.mxu0 %v3957
    %4043 = vmatpush1.bf16.msra.mxu0 %v3956
    %4044 = vmatprep.subr.bf16.mxu0 %v3965
    %4045 = vmatpush1.bf16.msra.mxu0 %v3964
    %4046 = vmatprep.subr.bf16.mxu0 %v3973
    %4047 = vmatpush1.bf16.msra.mxu0 %v3972
    %4048 = vmatprep.subr.bf16.mxu0 %v3981
    %4049 = vmatpush1.bf16.msra.mxu0 %v3980
    %4050 = vmatprep.subr.bf16.mxu0 %v3989
    %4051 = vmatpush1.bf16.msra.mxu0 %v3988
    %4052 = vmatprep.subr.bf16.mxu0 %v3997
    %4053 = vmatpush1.bf16.msra.mxu0 %v3996
    %4054 = vmatprep.subr.bf16.mxu0 %v4005
    %4055 = vmatpush1.bf16.msra.mxu0 %v4004
    %4056 = vmatprep.subr.bf16.mxu0 %v4013
    %4057 = vmatpush1.bf16.msra.mxu0 %v4012
    %4058 = vmatprep.subr.bf16.mxu0 %v4021
    %4059 = vmatpush1.bf16.msra.mxu0 %v4020
    %4060 = vmatprep.mubr.bf16.mxu0 %v3885
    %4061 = vmatmul.mubr.bf16.gmra.mrb[0].mxu0 %v3884
    %v4062 = vpop.f32.mrb[0].mxu0
    %v4063 = vadd.f32 0.0, %v4062
    %v4064 = vpop.f32.mrb[0].mxu0
    %v4065 = vadd.f32 0.0, %v4064
    %v4066 = vpop.f32.mrb[0].mxu0
    %v4067 = vadd.f32 0.0, %v4066
    %v4068 = vpop.f32.mrb[0].mxu0
    %v4069 = vadd.f32 0.0, %v4068
    %4070 = vmatprep.mubr.bf16.mxu0 %v3887
    %4071 = vmatmul.mubr.bf16.gmra.mrb[0].mxu0 %v3886
    %v4072 = vpop.f32.mrb[0].mxu0
    %v4073 = vadd.f32 0.0, %v4072
    %v4074 = vpop.f32.mrb[0].mxu0
    %v4075 = vadd.f32 0.0, %v4074
    %v4076 = vpop.f32.mrb[0].mxu0
    %v4077 = vadd.f32 0.0, %v4076
    %v4078 = vpop.f32.mrb[0].mxu0
    %v4079 = vadd.f32 0.0, %v4078
    %4080 = vmatprep.mubr.bf16.mxu0 %v3889
    %4081 = vmatmul.mubr.bf16.gmra.mrb[0].mxu0 %v3888
    %v4082 = vpop.f32.mrb[0].mxu0
    %v4083 = vadd.f32 0.0, %v4082
    %v4084 = vpop.f32.mrb[0].mxu0
    %v4085 = vadd.f32 0.0, %v4084
    %v4086 = vpop.f32.mrb[0].mxu0
    %v4087 = vadd.f32 0.0, %v4086
    %v4088 = vpop.f32.mrb[0].mxu0
    %v4089 = vadd.f32 0.0, %v4088
    %4090 = vmatprep.mubr.bf16.mxu0 %v3891
    %4091 = vmatmul.mubr.bf16.gmra.mrb[0].mxu0 %v3890
    %v4092 = vpop.f32.mrb[0].mxu0
    %v4093 = vadd.f32 0.0, %v4092
    %v4094 = vpop.f32.mrb[0].mxu0
    %v4095 = vadd.f32 0.0, %v4094
    %v4096 = vpop.f32.mrb[0].mxu0
    %v4097 = vadd.f32 0.0, %v4096
    %v4098 = vpop.f32.mrb[0].mxu0
    %v4099 = vadd.f32 0.0, %v4098
    %4100 = vmatprep.mubr.bf16.mxu0 %v3893
    %4101 = vmatmul.mubr.bf16.gmra.mrb[0].mxu0 %v3892
    %v4102 = vpop.f32.mrb[0].mxu0
    %v4103 = vadd.f32 0.0, %v4102
    %v4104 = vpop.f32.mrb[0].mxu0
    %v4105 = vadd.f32 0.0, %v4104
    %v4106 = vpop.f32.mrb[0].mxu0
    %v4107 = vadd.f32 0.0, %v4106
    %v4108 = vpop.f32.mrb[0].mxu0
    %v4109 = vadd.f32 0.0, %v4108
    %4110 = vmatprep.mubr.bf16.mxu0 %v3895
    %4111 = vmatmul.mubr.bf16.gmra.mrb[0].mxu0 %v3894
    %v4112 = vpop.f32.mrb[0].mxu0
    %v4113 = vadd.f32 0.0, %v4112
    %v4114 = vpop.f32.mrb[0].mxu0
    %v4115 = vadd.f32 0.0, %v4114
    %v4116 = vpop.f32.mrb[0].mxu0
    %v4117 = vadd.f32 0.0, %v4116
    %v4118 = vpop.f32.mrb[0].mxu0
    %v4119 = vadd.f32 0.0, %v4118
    %4120 = vmatprep.mubr.bf16.mxu0 %v3897
    %4121 = vmatmul.mubr.bf16.gmra.mrb[0].mxu0 %v3896
    %v4122 = vpop.f32.mrb[0].mxu0
    %v4123 = vadd.f32 0.0, %v4122
    %v4124 = vpop.f32.mrb[0].mxu0
    %v4125 = vadd.f32 0.0, %v4124
    %v4126 = vpop.f32.mrb[0].mxu0
    %v4127 = vadd.f32 0.0, %v4126
    %v4128 = vpop.f32.mrb[0].mxu0
    %v4129 = vadd.f32 0.0, %v4128
    %4130 = vmatprep.mubr.bf16.mxu0 %v3899
    %4131 = vmatmul.mubr.bf16.gmra.mrb[0].mxu0 %v3898
    %v4132 = vpop.f32.mrb[0].mxu0
    %v4133 = vadd.f32 0.0, %v4132
    %v4134 = vpop.f32.mrb[0].mxu0
    %v4135 = vadd.f32 0.0, %v4134
    %v4136 = vpop.f32.mrb[0].mxu0
    %v4137 = vadd.f32 0.0, %v4136
    %v4138 = vpop.f32.mrb[0].mxu0
    %v4139 = vadd.f32 0.0, %v4138
    %4140 = vdwg.mxu0
    %4141 = vmatprep.subr.bf16.mxu0 %v3903
    %4142 = vmatpush1.bf16.msra.mxu0 %v3902
    %4143 = vmatprep.subr.bf16.mxu0 %v3911
    %4144 = vmatpush1.bf16.msra.mxu0 %v3910
    %4145 = vmatprep.subr.bf16.mxu0 %v3919
    %4146 = vmatpush1.bf16.msra.mxu0 %v3918
    %4147 = vmatprep.subr.bf16.mxu0 %v3927
    %4148 = vmatpush1.bf16.msra.mxu0 %v3926
    %4149 = vmatprep.subr.bf16.mxu0 %v3935
    %4150 = vmatpush1.bf16.msra.mxu0 %v3934
    %4151 = vmatprep.subr.bf16.mxu0 %v3943
    %4152 = vmatpush1.bf16.msra.mxu0 %v3942
    %4153 = vmatprep.subr.bf16.mxu0 %v3951
    %4154 = vmatpush1.bf16.msra.mxu0 %v3950
    %4155 = vmatprep.subr.bf16.mxu0 %v3959
    %4156 = vmatpush1.bf16.msra.mxu0 %v3958
    %4157 = vmatprep.subr.bf16.mxu0 %v3967
    %4158 = vmatpush1.bf16.msra.mxu0 %v3966
    %4159 = vmatprep.subr.bf16.mxu0 %v3975
    %4160 = vmatpush1.bf16.msra.mxu0 %v3974
    %4161 = vmatprep.subr.bf16.mxu0 %v3983
    %4162 = vmatpush1.bf16.msra.mxu0 %v3982
    %4163 = vmatprep.subr.bf16.mxu0 %v3991
    %4164 = vmatpush1.bf16.msra.mxu0 %v3990
    %4165 = vmatprep.subr.bf16.mxu0 %v3999
    %4166 = vmatpush1.bf16.msra.mxu0 %v3998
    %4167 = vmatprep.subr.bf16.mxu0 %v4007
    %4168 = vmatpush1.bf16.msra.mxu0 %v4006
    %4169 = vmatprep.subr.bf16.mxu0 %v4015
    %4170 = vmatpush1.bf16.msra.mxu0 %v4014
    %4171 = vmatprep.subr.bf16.mxu0 %v4023
    %4172 = vmatpush1.bf16.msra.mxu0 %v4022
    %4173 = vmatprep.mubr.bf16.mxu0 %v3885
    %4174 = vmatmul.mubr.bf16.gmra.mrb[0].mxu0 %v3884
    %v4175 = vpop.f32.mrb[0].mxu0
    %v4176 = vadd.f32 0.0, %v4175
    %v4177 = vpop.f32.mrb[0].mxu0
    %v4178 = vadd.f32 0.0, %v4177
    %v4179 = vpop.f32.mrb[0].mxu0
    %v4180 = vadd.f32 0.0, %v4179
    %v4181 = vpop.f32.mrb[0].mxu0
    %v4182 = vadd.f32 0.0, %v4181
    %4183 = vmatprep.mubr.bf16.mxu0 %v3887
    %4184 = vmatmul.mubr.bf16.gmra.mrb[0].mxu0 %v3886
    %v4185 = vpop.f32.mrb[0].mxu0
    %v4186 = vadd.f32 0.0, %v4185
    %v4187 = vpop.f32.mrb[0].mxu0
    %v4188 = vadd.f32 0.0, %v4187
    %v4189 = vpop.f32.mrb[0].mxu0
    %v4190 = vadd.f32 0.0, %v4189
    %v4191 = vpop.f32.mrb[0].mxu0
    %v4192 = vadd.f32 0.0, %v4191
    %4193 = vmatprep.mubr.bf16.mxu0 %v3889
    %4194 = vmatmul.mubr.bf16.gmra.mrb[0].mxu0 %v3888
    %v4195 = vpop.f32.mrb[0].mxu0
    %v4196 = vadd.f32 0.0, %v4195
    %v4197 = vpop.f32.mrb[0].mxu0
    %v4198 = vadd.f32 0.0, %v4197
    %v4199 = vpop.f32.mrb[0].mxu0
    %v4200 = vadd.f32 0.0, %v4199
    %v4201 = vpop.f32.mrb[0].mxu0
    %v4202 = vadd.f32 0.0, %v4201
    %4203 = vmatprep.mubr.bf16.mxu0 %v3891
    %4204 = vmatmul.mubr.bf16.gmra.mrb[0].mxu0 %v3890
    %v4205 = vpop.f32.mrb[0].mxu0
    %v4206 = vadd.f32 0.0, %v4205
    %v4207 = vpop.f32.mrb[0].mxu0
    %v4208 = vadd.f32 0.0, %v4207
    %v4209 = vpop.f32.mrb[0].mxu0
    %v4210 = vadd.f32 0.0, %v4209
    %v4211 = vpop.f32.mrb[0].mxu0
    %v4212 = vadd.f32 0.0, %v4211
    %4213 = vmatprep.mubr.bf16.mxu0 %v3893
    %4214 = vmatmul.mubr.bf16.gmra.mrb[0].mxu0 %v3892
    %v4215 = vpop.f32.mrb[0].mxu0
    %v4216 = vadd.f32 0.0, %v4215
    %v4217 = vpop.f32.mrb[0].mxu0
    %v4218 = vadd.f32 0.0, %v4217
    %v4219 = vpop.f32.mrb[0].mxu0
    %v4220 = vadd.f32 0.0, %v4219
    %v4221 = vpop.f32.mrb[0].mxu0
    %v4222 = vadd.f32 0.0, %v4221
    %4223 = vmatprep.mubr.bf16.mxu0 %v3895
    %4224 = vmatmul.mubr.bf16.gmra.mrb[0].mxu0 %v3894
    %v4225 = vpop.f32.mrb[0].mxu0
    %v4226 = vadd.f32 0.0, %v4225
    %v4227 = vpop.f32.mrb[0].mxu0
    %v4228 = vadd.f32 0.0, %v4227
    %v4229 = vpop.f32.mrb[0].mxu0
    %v4230 = vadd.f32 0.0, %v4229
    %v4231 = vpop.f32.mrb[0].mxu0
    %v4232 = vadd.f32 0.0, %v4231
    %4233 = vmatprep.mubr.bf16.mxu0 %v3897
    %4234 = vmatmul.mubr.bf16.gmra.mrb[0].mxu0 %v3896
    %v4235 = vpop.f32.mrb[0].mxu0
    %v4236 = vadd.f32 0.0, %v4235
    %v4237 = vpop.f32.mrb[0].mxu0
    %v4238 = vadd.f32 0.0, %v4237
    %v4239 = vpop.f32.mrb[0].mxu0
    %v4240 = vadd.f32 0.0, %v4239
    %v4241 = vpop.f32.mrb[0].mxu0
    %v4242 = vadd.f32 0.0, %v4241
    %4243 = vmatprep.mubr.bf16.mxu0 %v3899
    %4244 = vmatmul.mubr.bf16.gmra.mrb[0].mxu0 %v3898
    %v4245 = vpop.f32.mrb[0].mxu0
    %v4246 = vadd.f32 0.0, %v4245
    %v4247 = vpop.f32.mrb[0].mxu0
    %v4248 = vadd.f32 0.0, %v4247
    %v4249 = vpop.f32.mrb[0].mxu0
    %v4250 = vadd.f32 0.0, %v4249
    %v4251 = vpop.f32.mrb[0].mxu0
    %v4252 = vadd.f32 0.0, %v4251
    %4253 = vdwg.mxu0
    %4254 = vmatprep.subr.bf16.mxu0 %v3905
    %4255 = vmatpush1.bf16.msra.mxu0 %v3904
    %4256 = vmatprep.subr.bf16.mxu0 %v3913
    %4257 = vmatpush1.bf16.msra.mxu0 %v3912
    %4258 = vmatprep.subr.bf16.mxu0 %v3921
    %4259 = vmatpush1.bf16.msra.mxu0 %v3920
    %4260 = vmatprep.subr.bf16.mxu0 %v3929
    %4261 = vmatpush1.bf16.msra.mxu0 %v3928
    %4262 = vmatprep.subr.bf16.mxu0 %v3937
    %4263 = vmatpush1.bf16.msra.mxu0 %v3936
    %4264 = vmatprep.subr.bf16.mxu0 %v3945
    %4265 = vmatpush1.bf16.msra.mxu0 %v3944
    %4266 = vmatprep.subr.bf16.mxu0 %v3953
    %4267 = vmatpush1.bf16.msra.mxu0 %v3952
    %4268 = vmatprep.subr.bf16.mxu0 %v3961
    %4269 = vmatpush1.bf16.msra.mxu0 %v3960
    %4270 = vmatprep.subr.bf16.mxu0 %v3969
    %4271 = vmatpush1.bf16.msra.mxu0 %v3968
    %4272 = vmatprep.subr.bf16.mxu0 %v3977
    %4273 = vmatpush1.bf16.msra.mxu0 %v3976
    %4274 = vmatprep.subr.bf16.mxu0 %v3985
    %4275 = vmatpush1.bf16.msra.mxu0 %v3984
    %4276 = vmatprep.subr.bf16.mxu0 %v3993
    %4277 = vmatpush1.bf16.msra.mxu0 %v3992
    %4278 = vmatprep.subr.bf16.mxu0 %v4001
    %4279 = vmatpush1.bf16.msra.mxu0 %v4000
    %4280 = vmatprep.subr.bf16.mxu0 %v4009
    %4281 = vmatpush1.bf16.msra.mxu0 %v4008
    %4282 = vmatprep.subr.bf16.mxu0 %v4017
    %4283 = vmatpush1.bf16.msra.mxu0 %v4016
    %4284 = vmatprep.subr.bf16.mxu0 %v4025
    %4285 = vmatpush1.bf16.msra.mxu0 %v4024
    %4286 = vmatprep.mubr.bf16.mxu0 %v3885
    %4287 = vmatmul.mubr.bf16.gmra.mrb[0].mxu0 %v3884
    %v4288 = vpop.f32.mrb[0].mxu0
    %v4289 = vadd.f32 0.0, %v4288
    %v4290 = vpop.f32.mrb[0].mxu0
    %v4291 = vadd.f32 0.0, %v4290
    %v4292 = vpop.f32.mrb[0].mxu0
    %v4293 = vadd.f32 0.0, %v4292
    %v4294 = vpop.f32.mrb[0].mxu0
    %v4295 = vadd.f32 0.0, %v4294
    %4296 = vmatprep.mubr.bf16.mxu0 %v3887
    %4297 = vmatmul.mubr.bf16.gmra.mrb[0].mxu0 %v3886
    %v4298 = vpop.f32.mrb[0].mxu0
    %v4299 = vadd.f32 0.0, %v4298
    %v4300 = vpop.f32.mrb[0].mxu0
    %v4301 = vadd.f32 0.0, %v4300
    %v4302 = vpop.f32.mrb[0].mxu0
    %v4303 = vadd.f32 0.0, %v4302
    %v4304 = vpop.f32.mrb[0].mxu0
    %v4305 = vadd.f32 0.0, %v4304
    %4306 = vmatprep.mubr.bf16.mxu0 %v3889
    %4307 = vmatmul.mubr.bf16.gmra.mrb[0].mxu0 %v3888
    %v4308 = vpop.f32.mrb[0].mxu0
    %v4309 = vadd.f32 0.0, %v4308
    %v4310 = vpop.f32.mrb[0].mxu0
    %v4311 = vadd.f32 0.0, %v4310
    %v4312 = vpop.f32.mrb[0].mxu0
    %v4313 = vadd.f32 0.0, %v4312
    %v4314 = vpop.f32.mrb[0].mxu0
    %v4315 = vadd.f32 0.0, %v4314
    %4316 = vmatprep.mubr.bf16.mxu0 %v3891
    %4317 = vmatmul.mubr.bf16.gmra.mrb[0].mxu0 %v3890
    %v4318 = vpop.f32.mrb[0].mxu0
    %v4319 = vadd.f32 0.0, %v4318
    %v4320 = vpop.f32.mrb[0].mxu0
    %v4321 = vadd.f32 0.0, %v4320
    %v4322 = vpop.f32.mrb[0].mxu0
    %v4323 = vadd.f32 0.0, %v4322
    %v4324 = vpop.f32.mrb[0].mxu0
    %v4325 = vadd.f32 0.0, %v4324
    %4326 = vmatprep.mubr.bf16.mxu0 %v3893
    %4327 = vmatmul.mubr.bf16.gmra.mrb[0].mxu0 %v3892
    %v4328 = vpop.f32.mrb[0].mxu0
    %v4329 = vadd.f32 0.0, %v4328
    %v4330 = vpop.f32.mrb[0].mxu0
    %v4331 = vadd.f32 0.0, %v4330
    %v4332 = vpop.f32.mrb[0].mxu0
    %v4333 = vadd.f32 0.0, %v4332
    %v4334 = vpop.f32.mrb[0].mxu0
    %v4335 = vadd.f32 0.0, %v4334
    %4336 = vmatprep.mubr.bf16.mxu0 %v3895
    %4337 = vmatmul.mubr.bf16.gmra.mrb[0].mxu0 %v3894
    %v4338 = vpop.f32.mrb[0].mxu0
    %v4339 = vadd.f32 0.0, %v4338
    %v4340 = vpop.f32.mrb[0].mxu0
    %v4341 = vadd.f32 0.0, %v4340
    %v4342 = vpop.f32.mrb[0].mxu0
    %v4343 = vadd.f32 0.0, %v4342
    %v4344 = vpop.f32.mrb[0].mxu0
    %v4345 = vadd.f32 0.0, %v4344
    %4346 = vmatprep.mubr.bf16.mxu0 %v3897
    %4347 = vmatmul.mubr.bf16.gmra.mrb[0].mxu0 %v3896
    %v4348 = vpop.f32.mrb[0].mxu0
    %v4349 = vadd.f32 0.0, %v4348
    %v4350 = vpop.f32.mrb[0].mxu0
    %v4351 = vadd.f32 0.0, %v4350
    %v4352 = vpop.f32.mrb[0].mxu0
    %v4353 = vadd.f32 0.0, %v4352
    %v4354 = vpop.f32.mrb[0].mxu0
    %v4355 = vadd.f32 0.0, %v4354
    %4356 = vmatprep.mubr.bf16.mxu0 %v3899
    %4357 = vmatmul.mubr.bf16.gmra.mrb[0].mxu0 %v3898
    %v4358 = vpop.f32.mrb[0].mxu0
    %v4359 = vadd.f32 0.0, %v4358
    %v4360 = vpop.f32.mrb[0].mxu0
    %v4361 = vadd.f32 0.0, %v4360
    %v4362 = vpop.f32.mrb[0].mxu0
    %v4363 = vadd.f32 0.0, %v4362
    %v4364 = vpop.f32.mrb[0].mxu0
    %v4365 = vadd.f32 0.0, %v4364
    %4366 = vdwg.mxu0
    %4367 = vmatprep.subr.bf16.mxu0 %v3907
    %4368 = vmatpush1.bf16.msra.mxu0 %v3906
    %4369 = vmatprep.subr.bf16.mxu0 %v3915
    %4370 = vmatpush1.bf16.msra.mxu0 %v3914
    %4371 = vmatprep.subr.bf16.mxu0 %v3923
    %4372 = vmatpush1.bf16.msra.mxu0 %v3922
    %4373 = vmatprep.subr.bf16.mxu0 %v3931
    %4374 = vmatpush1.bf16.msra.mxu0 %v3930
    %4375 = vmatprep.subr.bf16.mxu0 %v3939
    %4376 = vmatpush1.bf16.msra.mxu0 %v3938
    %4377 = vmatprep.subr.bf16.mxu0 %v3947
    %4378 = vmatpush1.bf16.msra.mxu0 %v3946
    %4379 = vmatprep.subr.bf16.mxu0 %v3955
    %4380 = vmatpush1.bf16.msra.mxu0 %v3954
    %4381 = vmatprep.subr.bf16.mxu0 %v3963
    %4382 = vmatpush1.bf16.msra.mxu0 %v3962
    %4383 = vmatprep.subr.bf16.mxu0 %v3971
    %4384 = vmatpush1.bf16.msra.mxu0 %v3970
    %4385 = vmatprep.subr.bf16.mxu0 %v3979
    %4386 = vmatpush1.bf16.msra.mxu0 %v3978
    %4387 = vmatprep.subr.bf16.mxu0 %v3987
    %4388 = vmatpush1.bf16.msra.mxu0 %v3986
    %4389 = vmatprep.subr.bf16.mxu0 %v3995
    %4390 = vmatpush1.bf16.msra.mxu0 %v3994
    %4391 = vmatprep.subr.bf16.mxu0 %v4003
    %4392 = vmatpush1.bf16.msra.mxu0 %v4002
    %4393 = vmatprep.subr.bf16.mxu0 %v4011
    %4394 = vmatpush1.bf16.msra.mxu0 %v4010
    %4395 = vmatprep.subr.bf16.mxu0 %v4019
    %4396 = vmatpush1.bf16.msra.mxu0 %v4018
    %4397 = vmatprep.subr.bf16.mxu0 %v4027
    %4398 = vmatpush1.bf16.msra.mxu0 %v4026
    %4399 = vmatprep.mubr.bf16.mxu0 %v3885
    %4400 = vmatmul.mubr.bf16.gmra.mrb[0].mxu0 %v3884
    %v4401 = vpop.f32.mrb[0].mxu0
    %v4402 = vadd.f32 0.0, %v4401
    %v4403 = vpop.f32.mrb[0].mxu0
    %v4404 = vadd.f32 0.0, %v4403
    %v4405 = vpop.f32.mrb[0].mxu0
    %v4406 = vadd.f32 0.0, %v4405
    %v4407 = vpop.f32.mrb[0].mxu0
    %v4408 = vadd.f32 0.0, %v4407
    %4409 = vmatprep.mubr.bf16.mxu0 %v3887
    %4410 = vmatmul.mubr.bf16.gmra.mrb[0].mxu0 %v3886
    %v4411 = vpop.f32.mrb[0].mxu0
    %v4412 = vadd.f32 0.0, %v4411
    %v4413 = vpop.f32.mrb[0].mxu0
    %v4414 = vadd.f32 0.0, %v4413
    %v4415 = vpop.f32.mrb[0].mxu0
    %v4416 = vadd.f32 0.0, %v4415
    %v4417 = vpop.f32.mrb[0].mxu0
    %v4418 = vadd.f32 0.0, %v4417
    %4419 = vmatprep.mubr.bf16.mxu0 %v3889
    %4420 = vmatmul.mubr.bf16.gmra.mrb[0].mxu0 %v3888
    %v4421 = vpop.f32.mrb[0].mxu0
    %v4422 = vadd.f32 0.0, %v4421
    %v4423 = vpop.f32.mrb[0].mxu0
    %v4424 = vadd.f32 0.0, %v4423
    %v4425 = vpop.f32.mrb[0].mxu0
    %v4426 = vadd.f32 0.0, %v4425
    %v4427 = vpop.f32.mrb[0].mxu0
    %v4428 = vadd.f32 0.0, %v4427
    %4429 = vmatprep.mubr.bf16.mxu0 %v3891
    %4430 = vmatmul.mubr.bf16.gmra.mrb[0].mxu0 %v3890
    %v4431 = vpop.f32.mrb[0].mxu0
    %v4432 = vadd.f32 0.0, %v4431
    %v4433 = vpop.f32.mrb[0].mxu0
    %v4434 = vadd.f32 0.0, %v4433
    %v4435 = vpop.f32.mrb[0].mxu0
    %v4436 = vadd.f32 0.0, %v4435
    %v4437 = vpop.f32.mrb[0].mxu0
    %v4438 = vadd.f32 0.0, %v4437
    %4439 = vmatprep.mubr.bf16.mxu0 %v3893
    %4440 = vmatmul.mubr.bf16.gmra.mrb[0].mxu0 %v3892
    %v4441 = vpop.f32.mrb[0].mxu0
    %v4442 = vadd.f32 0.0, %v4441
    %v4443 = vpop.f32.mrb[0].mxu0
    %v4444 = vadd.f32 0.0, %v4443
    %v4445 = vpop.f32.mrb[0].mxu0
    %v4446 = vadd.f32 0.0, %v4445
    %v4447 = vpop.f32.mrb[0].mxu0
    %v4448 = vadd.f32 0.0, %v4447
    %4449 = vmatprep.mubr.bf16.mxu0 %v3895
    %4450 = vmatmul.mubr.bf16.gmra.mrb[0].mxu0 %v3894
    %v4451 = vpop.f32.mrb[0].mxu0
    %v4452 = vadd.f32 0.0, %v4451
    %v4453 = vpop.f32.mrb[0].mxu0
    %v4454 = vadd.f32 0.0, %v4453
    %v4455 = vpop.f32.mrb[0].mxu0
    %v4456 = vadd.f32 0.0, %v4455
    %v4457 = vpop.f32.mrb[0].mxu0
    %v4458 = vadd.f32 0.0, %v4457
    %4459 = vmatprep.mubr.bf16.mxu0 %v3897
    %4460 = vmatmul.mubr.bf16.gmra.mrb[0].mxu0 %v3896
    %v4461 = vpop.f32.mrb[0].mxu0
    %v4462 = vadd.f32 0.0, %v4461
    %v4463 = vpop.f32.mrb[0].mxu0
    %v4464 = vadd.f32 0.0, %v4463
    %v4465 = vpop.f32.mrb[0].mxu0
    %v4466 = vadd.f32 0.0, %v4465
    %v4467 = vpop.f32.mrb[0].mxu0
    %v4468 = vadd.f32 0.0, %v4467
    %4469 = vmatprep.mubr.bf16.mxu0 %v3899
    %4470 = vmatmul.mubr.bf16.gmra.mrb[0].mxu0 %v3898
    %v4471 = vpop.f32.mrb[0].mxu0
    %v4472 = vadd.f32 0.0, %v4471
    %v4473 = vpop.f32.mrb[0].mxu0
    %v4474 = vadd.f32 0.0, %v4473
    %v4475 = vpop.f32.mrb[0].mxu0
    %v4476 = vadd.f32 0.0, %v4475
    %v4477 = vpop.f32.mrb[0].mxu0
    %v4478 = vadd.f32 0.0, %v4477
    %4479 = vdwg.mxu0
    %v4480 = vmax.f32 %v4063, 0.0
    %v4481 = vmax.f32 %v4065, 0.0
    %v4482 = vmax.f32 %v4176, 0.0
    %v4483 = vmax.f32 %v4178, 0.0
    %v4484 = vmax.f32 %v4289, 0.0
    %v4485 = vmax.f32 %v4291, 0.0
    %v4486 = vmax.f32 %v4402, 0.0
    %v4487 = vmax.f32 %v4404, 0.0
    %v4488 = vmax.f32 %v4067, 0.0
    %v4489 = vmax.f32 %v4069, 0.0
    %v4490 = vmax.f32 %v4180, 0.0
    %v4491 = vmax.f32 %v4182, 0.0
    %v4492 = vmax.f32 %v4293, 0.0
    %v4493 = vmax.f32 %v4295, 0.0
    %v4494 = vmax.f32 %v4406, 0.0
    %v4495 = vmax.f32 %v4408, 0.0
    %v4496 = vmax.f32 %v4073, 0.0
    %v4497 = vmax.f32 %v4075, 0.0
    %v4498 = vmax.f32 %v4186, 0.0
    %v4499 = vmax.f32 %v4188, 0.0
    %v4500 = vmax.f32 %v4299, 0.0
    %v4501 = vmax.f32 %v4301, 0.0
    %v4502 = vmax.f32 %v4412, 0.0
    %v4503 = vmax.f32 %v4414, 0.0
    %v4504 = vmax.f32 %v4077, 0.0
    %v4505 = vmax.f32 %v4079, 0.0
    %v4506 = vmax.f32 %v4190, 0.0
    %v4507 = vmax.f32 %v4192, 0.0
    %v4508 = vmax.f32 %v4303, 0.0
    %v4509 = vmax.f32 %v4305, 0.0
    %v4510 = vmax.f32 %v4416, 0.0
    %v4511 = vmax.f32 %v4418, 0.0
    %v4512 = vmax.f32 %v4083, 0.0
    %v4513 = vmax.f32 %v4085, 0.0
    %v4514 = vmax.f32 %v4196, 0.0
    %v4515 = vmax.f32 %v4198, 0.0
    %v4516 = vmax.f32 %v4309, 0.0
    %v4517 = vmax.f32 %v4311, 0.0
    %v4518 = vmax.f32 %v4422, 0.0
    %v4519 = vmax.f32 %v4424, 0.0
    %v4520 = vmax.f32 %v4087, 0.0
    %v4521 = vmax.f32 %v4089, 0.0
    %v4522 = vmax.f32 %v4200, 0.0
    %v4523 = vmax.f32 %v4202, 0.0
    %v4524 = vmax.f32 %v4313, 0.0
    %v4525 = vmax.f32 %v4315, 0.0
    %v4526 = vmax.f32 %v4426, 0.0
    %v4527 = vmax.f32 %v4428, 0.0
    %v4528 = vmax.f32 %v4093, 0.0
    %v4529 = vmax.f32 %v4095, 0.0
    %v4530 = vmax.f32 %v4206, 0.0
    %v4531 = vmax.f32 %v4208, 0.0
    %v4532 = vmax.f32 %v4319, 0.0
    %v4533 = vmax.f32 %v4321, 0.0
    %v4534 = vmax.f32 %v4432, 0.0
    %v4535 = vmax.f32 %v4434, 0.0
    %v4536 = vmax.f32 %v4097, 0.0
    %v4537 = vmax.f32 %v4099, 0.0
    %v4538 = vmax.f32 %v4210, 0.0
    %v4539 = vmax.f32 %v4212, 0.0
    %v4540 = vmax.f32 %v4323, 0.0
    %v4541 = vmax.f32 %v4325, 0.0
    %v4542 = vmax.f32 %v4436, 0.0
    %v4543 = vmax.f32 %v4438, 0.0
    %v4544 = vmax.f32 %v4103, 0.0
    %v4545 = vmax.f32 %v4105, 0.0
    %v4546 = vmax.f32 %v4216, 0.0
    %v4547 = vmax.f32 %v4218, 0.0
    %v4548 = vmax.f32 %v4329, 0.0
    %v4549 = vmax.f32 %v4331, 0.0
    %v4550 = vmax.f32 %v4442, 0.0
    %v4551 = vmax.f32 %v4444, 0.0
    %v4552 = vmax.f32 %v4107, 0.0
    %v4553 = vmax.f32 %v4109, 0.0
    %v4554 = vmax.f32 %v4220, 0.0
    %v4555 = vmax.f32 %v4222, 0.0
    %v4556 = vmax.f32 %v4333, 0.0
    %v4557 = vmax.f32 %v4335, 0.0
    %v4558 = vmax.f32 %v4446, 0.0
    %v4559 = vmax.f32 %v4448, 0.0
    %v4560 = vmax.f32 %v4113, 0.0
    %v4561 = vmax.f32 %v4115, 0.0
    %v4562 = vmax.f32 %v4226, 0.0
    %v4563 = vmax.f32 %v4228, 0.0
    %v4564 = vmax.f32 %v4339, 0.0
    %v4565 = vmax.f32 %v4341, 0.0
    %v4566 = vmax.f32 %v4452, 0.0
    %v4567 = vmax.f32 %v4454, 0.0
    %v4568 = vmax.f32 %v4117, 0.0
    %v4569 = vmax.f32 %v4119, 0.0
    %v4570 = vmax.f32 %v4230, 0.0
    %v4571 = vmax.f32 %v4232, 0.0
    %v4572 = vmax.f32 %v4343, 0.0
    %v4573 = vmax.f32 %v4345, 0.0
    %v4574 = vmax.f32 %v4456, 0.0
    %v4575 = vmax.f32 %v4458, 0.0
    %v4576 = vmax.f32 %v4123, 0.0
    %v4577 = vmax.f32 %v4125, 0.0
    %v4578 = vmax.f32 %v4236, 0.0
    %v4579 = vmax.f32 %v4238, 0.0
    %v4580 = vmax.f32 %v4349, 0.0
    %v4581 = vmax.f32 %v4351, 0.0
    %v4582 = vmax.f32 %v4462, 0.0
    %v4583 = vmax.f32 %v4464, 0.0
    %v4584 = vmax.f32 %v4127, 0.0
    %v4585 = vmax.f32 %v4129, 0.0
    %v4586 = vmax.f32 %v4240, 0.0
    %v4587 = vmax.f32 %v4242, 0.0
    %v4588 = vmax.f32 %v4353, 0.0
    %v4589 = vmax.f32 %v4355, 0.0
    %v4590 = vmax.f32 %v4466, 0.0
    %v4591 = vmax.f32 %v4468, 0.0
    %v4592 = vmax.f32 %v4133, 0.0
    %v4593 = vmax.f32 %v4135, 0.0
    %v4594 = vmax.f32 %v4246, 0.0
    %v4595 = vmax.f32 %v4248, 0.0
    %v4596 = vmax.f32 %v4359, 0.0
    %v4597 = vmax.f32 %v4361, 0.0
    %v4598 = vmax.f32 %v4472, 0.0
    %v4599 = vmax.f32 %v4474, 0.0
    %v4600 = vmax.f32 %v4137, 0.0
    %v4601 = vmax.f32 %v4139, 0.0
    %v4602 = vmax.f32 %v4250, 0.0
    %v4603 = vmax.f32 %v4252, 0.0
    %v4604 = vmax.f32 %v4363, 0.0
    %v4605 = vmax.f32 %v4365, 0.0
    %v4606 = vmax.f32 %v4476, 0.0
    %v4607 = vmax.f32 %v4478, 0.0
    %v4608 = vmul.f32 %v4480, %v4480
    %v4609 = vmul.f32 %v4481, %v4481
    %v4610 = vmul.f32 %v4482, %v4482
    %v4611 = vmul.f32 %v4483, %v4483
    %v4612 = vmul.f32 %v4484, %v4484
    %v4613 = vmul.f32 %v4485, %v4485
    %v4614 = vmul.f32 %v4486, %v4486
    %v4615 = vmul.f32 %v4487, %v4487
    %v4616 = vmul.f32 %v4488, %v4488
    %v4617 = vmul.f32 %v4489, %v4489
    %v4618 = vmul.f32 %v4490, %v4490
    %v4619 = vmul.f32 %v4491, %v4491
    %v4620 = vmul.f32 %v4492, %v4492
    %v4621 = vmul.f32 %v4493, %v4493
    %v4622 = vmul.f32 %v4494, %v4494
    %v4623 = vmul.f32 %v4495, %v4495
    %v4624 = vmul.f32 %v4496, %v4496
    %v4625 = vmul.f32 %v4497, %v4497
    %v4626 = vmul.f32 %v4498, %v4498
    %v4627 = vmul.f32 %v4499, %v4499
    %v4628 = vmul.f32 %v4500, %v4500
    %v4629 = vmul.f32 %v4501, %v4501
    %v4630 = vmul.f32 %v4502, %v4502
    %v4631 = vmul.f32 %v4503, %v4503
    %v4632 = vmul.f32 %v4504, %v4504
    %v4633 = vmul.f32 %v4505, %v4505
    %v4634 = vmul.f32 %v4506, %v4506
    %v4635 = vmul.f32 %v4507, %v4507
    %v4636 = vmul.f32 %v4508, %v4508
    %v4637 = vmul.f32 %v4509, %v4509
    %v4638 = vmul.f32 %v4510, %v4510
    %v4639 = vmul.f32 %v4511, %v4511
    %v4640 = vmul.f32 %v4512, %v4512
    %v4641 = vmul.f32 %v4513, %v4513
    %v4642 = vmul.f32 %v4514, %v4514
    %v4643 = vmul.f32 %v4515, %v4515
    %v4644 = vmul.f32 %v4516, %v4516
    %v4645 = vmul.f32 %v4517, %v4517
    %v4646 = vmul.f32 %v4518, %v4518
    %v4647 = vmul.f32 %v4519, %v4519
    %v4648 = vmul.f32 %v4520, %v4520
    %v4649 = vmul.f32 %v4521, %v4521
    %v4650 = vmul.f32 %v4522, %v4522
    %v4651 = vmul.f32 %v4523, %v4523
    %v4652 = vmul.f32 %v4524, %v4524
    %v4653 = vmul.f32 %v4525, %v4525
    %v4654 = vmul.f32 %v4526, %v4526
    %v4655 = vmul.f32 %v4527, %v4527
    %v4656 = vmul.f32 %v4528, %v4528
    %v4657 = vmul.f32 %v4529, %v4529
    %v4658 = vmul.f32 %v4530, %v4530
    %v4659 = vmul.f32 %v4531, %v4531
    %v4660 = vmul.f32 %v4532, %v4532
    %v4661 = vmul.f32 %v4533, %v4533
    %v4662 = vmul.f32 %v4534, %v4534
    %v4663 = vmul.f32 %v4535, %v4535
    %v4664 = vmul.f32 %v4536, %v4536
    %v4665 = vmul.f32 %v4537, %v4537
    %v4666 = vmul.f32 %v4538, %v4538
    %v4667 = vmul.f32 %v4539, %v4539
    %v4668 = vmul.f32 %v4540, %v4540
    %v4669 = vmul.f32 %v4541, %v4541
    %v4670 = vmul.f32 %v4542, %v4542
    %v4671 = vmul.f32 %v4543, %v4543
    %v4672 = vmul.f32 %v4544, %v4544
    %v4673 = vmul.f32 %v4545, %v4545
    %v4674 = vmul.f32 %v4546, %v4546
    %v4675 = vmul.f32 %v4547, %v4547
    %v4676 = vmul.f32 %v4548, %v4548
    %v4677 = vmul.f32 %v4549, %v4549
    %v4678 = vmul.f32 %v4550, %v4550
    %v4679 = vmul.f32 %v4551, %v4551
    %v4680 = vmul.f32 %v4552, %v4552
    %v4681 = vmul.f32 %v4553, %v4553
    %v4682 = vmul.f32 %v4554, %v4554
    %v4683 = vmul.f32 %v4555, %v4555
    %v4684 = vmul.f32 %v4556, %v4556
    %v4685 = vmul.f32 %v4557, %v4557
    %v4686 = vmul.f32 %v4558, %v4558
    %v4687 = vmul.f32 %v4559, %v4559
    %v4688 = vmul.f32 %v4560, %v4560
    %v4689 = vmul.f32 %v4561, %v4561
    %v4690 = vmul.f32 %v4562, %v4562
    %v4691 = vmul.f32 %v4563, %v4563
    %v4692 = vmul.f32 %v4564, %v4564
    %v4693 = vmul.f32 %v4565, %v4565
    %v4694 = vmul.f32 %v4566, %v4566
    %v4695 = vmul.f32 %v4567, %v4567
    %v4696 = vmul.f32 %v4568, %v4568
    %v4697 = vmul.f32 %v4569, %v4569
    %v4698 = vmul.f32 %v4570, %v4570
    %v4699 = vmul.f32 %v4571, %v4571
    %v4700 = vmul.f32 %v4572, %v4572
    %v4701 = vmul.f32 %v4573, %v4573
    %v4702 = vmul.f32 %v4574, %v4574
    %v4703 = vmul.f32 %v4575, %v4575
    %v4704 = vmul.f32 %v4576, %v4576
    %v4705 = vmul.f32 %v4577, %v4577
    %v4706 = vmul.f32 %v4578, %v4578
    %v4707 = vmul.f32 %v4579, %v4579
    %v4708 = vmul.f32 %v4580, %v4580
    %v4709 = vmul.f32 %v4581, %v4581
    %v4710 = vmul.f32 %v4582, %v4582
    %v4711 = vmul.f32 %v4583, %v4583
    %v4712 = vmul.f32 %v4584, %v4584
    %v4713 = vmul.f32 %v4585, %v4585
    %v4714 = vmul.f32 %v4586, %v4586
    %v4715 = vmul.f32 %v4587, %v4587
    %v4716 = vmul.f32 %v4588, %v4588
    %v4717 = vmul.f32 %v4589, %v4589
    %v4718 = vmul.f32 %v4590, %v4590
    %v4719 = vmul.f32 %v4591, %v4591
    %v4720 = vmul.f32 %v4592, %v4592
    %v4721 = vmul.f32 %v4593, %v4593
    %v4722 = vmul.f32 %v4594, %v4594
    %v4723 = vmul.f32 %v4595, %v4595
    %v4724 = vmul.f32 %v4596, %v4596
    %v4725 = vmul.f32 %v4597, %v4597
    %v4726 = vmul.f32 %v4598, %v4598
    %v4727 = vmul.f32 %v4599, %v4599
    %v4728 = vmul.f32 %v4600, %v4600
    %v4729 = vmul.f32 %v4601, %v4601
    %v4730 = vmul.f32 %v4602, %v4602
    %v4731 = vmul.f32 %v4603, %v4603
    %v4732 = vmul.f32 %v4604, %v4604
    %v4733 = vmul.f32 %v4605, %v4605
    %v4734 = vmul.f32 %v4606, %v4606
    %v4735 = vmul.f32 %v4607, %v4607
    %v4736 = vpack.c.bf16 %v4616, %v4608
    %v4737 = vpack.c.bf16 %v4617, %v4609
    %v4738 = vpack.c.bf16 %v4618, %v4610
    %v4739 = vpack.c.bf16 %v4619, %v4611
    %v4740 = vpack.c.bf16 %v4620, %v4612
    %v4741 = vpack.c.bf16 %v4621, %v4613
    %v4742 = vpack.c.bf16 %v4622, %v4614
    %v4743 = vpack.c.bf16 %v4623, %v4615
    %v4744 = vpack.c.bf16 %v4632, %v4624
    %v4745 = vpack.c.bf16 %v4633, %v4625
    %v4746 = vpack.c.bf16 %v4634, %v4626
    %v4747 = vpack.c.bf16 %v4635, %v4627
    %v4748 = vpack.c.bf16 %v4636, %v4628
    %v4749 = vpack.c.bf16 %v4637, %v4629
    %v4750 = vpack.c.bf16 %v4638, %v4630
    %v4751 = vpack.c.bf16 %v4639, %v4631
    %v4752 = vpack.c.bf16 %v4648, %v4640
    %v4753 = vpack.c.bf16 %v4649, %v4641
    %v4754 = vpack.c.bf16 %v4650, %v4642
    %v4755 = vpack.c.bf16 %v4651, %v4643
    %v4756 = vpack.c.bf16 %v4652, %v4644
    %v4757 = vpack.c.bf16 %v4653, %v4645
    %v4758 = vpack.c.bf16 %v4654, %v4646
    %v4759 = vpack.c.bf16 %v4655, %v4647
    %v4760 = vpack.c.bf16 %v4664, %v4656
    %v4761 = vpack.c.bf16 %v4665, %v4657
    %v4762 = vpack.c.bf16 %v4666, %v4658
    %v4763 = vpack.c.bf16 %v4667, %v4659
    %v4764 = vpack.c.bf16 %v4668, %v4660
    %v4765 = vpack.c.bf16 %v4669, %v4661
    %v4766 = vpack.c.bf16 %v4670, %v4662
    %v4767 = vpack.c.bf16 %v4671, %v4663
    %v4768 = vpack.c.bf16 %v4680, %v4672
    %v4769 = vpack.c.bf16 %v4681, %v4673
    %v4770 = vpack.c.bf16 %v4682, %v4674
    %v4771 = vpack.c.bf16 %v4683, %v4675
    %v4772 = vpack.c.bf16 %v4684, %v4676
    %v4773 = vpack.c.bf16 %v4685, %v4677
    %v4774 = vpack.c.bf16 %v4686, %v4678
    %v4775 = vpack.c.bf16 %v4687, %v4679
    %v4776 = vpack.c.bf16 %v4696, %v4688
    %v4777 = vpack.c.bf16 %v4697, %v4689
    %v4778 = vpack.c.bf16 %v4698, %v4690
    %v4779 = vpack.c.bf16 %v4699, %v4691
    %v4780 = vpack.c.bf16 %v4700, %v4692
    %v4781 = vpack.c.bf16 %v4701, %v4693
    %v4782 = vpack.c.bf16 %v4702, %v4694
    %v4783 = vpack.c.bf16 %v4703, %v4695
    %v4784 = vpack.c.bf16 %v4712, %v4704
    %v4785 = vpack.c.bf16 %v4713, %v4705
    %v4786 = vpack.c.bf16 %v4714, %v4706
    %v4787 = vpack.c.bf16 %v4715, %v4707
    %v4788 = vpack.c.bf16 %v4716, %v4708
    %v4789 = vpack.c.bf16 %v4717, %v4709
    %v4790 = vpack.c.bf16 %v4718, %v4710
    %v4791 = vpack.c.bf16 %v4719, %v4711
    %v4792 = vpack.c.bf16 %v4728, %v4720
    %v4793 = vpack.c.bf16 %v4729, %v4721
    %v4794 = vpack.c.bf16 %v4730, %v4722
    %v4795 = vpack.c.bf16 %v4731, %v4723
    %v4796 = vpack.c.bf16 %v4732, %v4724
    %v4797 = vpack.c.bf16 %v4733, %v4725
    %v4798 = vpack.c.bf16 %v4734, %v4726
    %v4799 = vpack.c.bf16 %v4735, %v4727
    %v4800 = vld [vmem:[#allocation3] sm:$0xff]
    %v4801 = vld [vmem:[#allocation3 + $0x8] sm:$0xff]
    %v4802 = vld [vmem:[#allocation3 + $0x10] sm:$0xff]
    %v4803 = vld [vmem:[#allocation3 + $0x18] sm:$0xff]
    %v4804 = vld [vmem:[#allocation3 + $0x20] sm:$0xff]
    %v4805 = vld [vmem:[#allocation3 + $0x28] sm:$0xff]
    %v4806 = vld [vmem:[#allocation3 + $0x30] sm:$0xff]
    %v4807 = vld [vmem:[#allocation3 + $0x38] sm:$0xff]
    %v4808 = vld [vmem:[#allocation3 + $0x40] sm:$0xff]
    %v4809 = vld [vmem:[#allocation3 + $0x48] sm:$0xff]
    %v4810 = vld [vmem:[#allocation3 + $0x50] sm:$0xff]
    %v4811 = vld [vmem:[#allocation3 + $0x58] sm:$0xff]
    %v4812 = vld [vmem:[#allocation3 + $0x60] sm:$0xff]
    %v4813 = vld [vmem:[#allocation3 + $0x68] sm:$0xff]
    %v4814 = vld [vmem:[#allocation3 + $0x70] sm:$0xff]
    %v4815 = vld [vmem:[#allocation3 + $0x78] sm:$0xff]
    %v4816 = vld [vmem:[#allocation3 + $0x80] sm:$0xff]
    %v4817 = vld [vmem:[#allocation3 + $0x88] sm:$0xff]
    %v4818 = vld [vmem:[#allocation3 + $0x90] sm:$0xff]
    %v4819 = vld [vmem:[#allocation3 + $0x98] sm:$0xff]
    %v4820 = vld [vmem:[#allocation3 + $0xa0] sm:$0xff]
    %v4821 = vld [vmem:[#allocation3 + $0xa8] sm:$0xff]
    %v4822 = vld [vmem:[#allocation3 + $0xb0] sm:$0xff]
    %v4823 = vld [vmem:[#allocation3 + $0xb8] sm:$0xff]
    %v4824 = vld [vmem:[#allocation3 + $0xc0] sm:$0xff]
    %v4825 = vld [vmem:[#allocation3 + $0xc8] sm:$0xff]
    %v4826 = vld [vmem:[#allocation3 + $0xd0] sm:$0xff]
    %v4827 = vld [vmem:[#allocation3 + $0xd8] sm:$0xff]
    %v4828 = vld [vmem:[#allocation3 + $0xe0] sm:$0xff]
    %v4829 = vld [vmem:[#allocation3 + $0xe8] sm:$0xff]
    %v4830 = vld [vmem:[#allocation3 + $0xf0] sm:$0xff]
    %v4831 = vld [vmem:[#allocation3 + $0xf8] sm:$0xff]
    %v4832 = vld [vmem:[#allocation3 + $0x100] sm:$0xff]
    %v4833 = vld [vmem:[#allocation3 + $0x108] sm:$0xff]
    %v4834 = vld [vmem:[#allocation3 + $0x110] sm:$0xff]
    %v4835 = vld [vmem:[#allocation3 + $0x118] sm:$0xff]
    %v4836 = vld [vmem:[#allocation3 + $0x120] sm:$0xff]
    %v4837 = vld [vmem:[#allocation3 + $0x128] sm:$0xff]
    %v4838 = vld [vmem:[#allocation3 + $0x130] sm:$0xff]
    %v4839 = vld [vmem:[#allocation3 + $0x138] sm:$0xff]
    %v4840 = vld [vmem:[#allocation3 + $0x140] sm:$0xff]
    %v4841 = vld [vmem:[#allocation3 + $0x148] sm:$0xff]
    %v4842 = vld [vmem:[#allocation3 + $0x150] sm:$0xff]
    %v4843 = vld [vmem:[#allocation3 + $0x158] sm:$0xff]
    %v4844 = vld [vmem:[#allocation3 + $0x160] sm:$0xff]
    %v4845 = vld [vmem:[#allocation3 + $0x168] sm:$0xff]
    %v4846 = vld [vmem:[#allocation3 + $0x170] sm:$0xff]
    %v4847 = vld [vmem:[#allocation3 + $0x178] sm:$0xff]
    %v4848 = vld [vmem:[#allocation3 + $0x180] sm:$0xff]
    %v4849 = vld [vmem:[#allocation3 + $0x188] sm:$0xff]
    %v4850 = vld [vmem:[#allocation3 + $0x190] sm:$0xff]
    %v4851 = vld [vmem:[#allocation3 + $0x198] sm:$0xff]
    %v4852 = vld [vmem:[#allocation3 + $0x1a0] sm:$0xff]
    %v4853 = vld [vmem:[#allocation3 + $0x1a8] sm:$0xff]
    %v4854 = vld [vmem:[#allocation3 + $0x1b0] sm:$0xff]
    %v4855 = vld [vmem:[#allocation3 + $0x1b8] sm:$0xff]
    %v4856 = vld [vmem:[#allocation3 + $0x1c0] sm:$0xff]
    %v4857 = vld [vmem:[#allocation3 + $0x1c8] sm:$0xff]
    %v4858 = vld [vmem:[#allocation3 + $0x1d0] sm:$0xff]
    %v4859 = vld [vmem:[#allocation3 + $0x1d8] sm:$0xff]
    %v4860 = vld [vmem:[#allocation3 + $0x1e0] sm:$0xff]
    %v4861 = vld [vmem:[#allocation3 + $0x1e8] sm:$0xff]
    %v4862 = vld [vmem:[#allocation3 + $0x1f0] sm:$0xff]
    %v4863 = vld [vmem:[#allocation3 + $0x1f8] sm:$0xff]
    %v4864 = vld [vmem:[#allocation3 + $0x200] sm:$0xff]
    %v4865 = vld [vmem:[#allocation3 + $0x208] sm:$0xff]
    %v4866 = vld [vmem:[#allocation3 + $0x210] sm:$0xff]
    %v4867 = vld [vmem:[#allocation3 + $0x218] sm:$0xff]
    %v4868 = vld [vmem:[#allocation3 + $0x220] sm:$0xff]
    %v4869 = vld [vmem:[#allocation3 + $0x228] sm:$0xff]
    %v4870 = vld [vmem:[#allocation3 + $0x230] sm:$0xff]
    %v4871 = vld [vmem:[#allocation3 + $0x238] sm:$0xff]
    %v4872 = vld [vmem:[#allocation3 + $0x240] sm:$0xff]
    %v4873 = vld [vmem:[#allocation3 + $0x248] sm:$0xff]
    %v4874 = vld [vmem:[#allocation3 + $0x250] sm:$0xff]
    %v4875 = vld [vmem:[#allocation3 + $0x258] sm:$0xff]
    %v4876 = vld [vmem:[#allocation3 + $0x260] sm:$0xff]
    %v4877 = vld [vmem:[#allocation3 + $0x268] sm:$0xff]
    %v4878 = vld [vmem:[#allocation3 + $0x270] sm:$0xff]
    %v4879 = vld [vmem:[#allocation3 + $0x278] sm:$0xff]
    %v4880 = vld [vmem:[#allocation3 + $0x280] sm:$0xff]
    %v4881 = vld [vmem:[#allocation3 + $0x288] sm:$0xff]
    %v4882 = vld [vmem:[#allocation3 + $0x290] sm:$0xff]
    %v4883 = vld [vmem:[#allocation3 + $0x298] sm:$0xff]
    %v4884 = vld [vmem:[#allocation3 + $0x2a0] sm:$0xff]
    %v4885 = vld [vmem:[#allocation3 + $0x2a8] sm:$0xff]
    %v4886 = vld [vmem:[#allocation3 + $0x2b0] sm:$0xff]
    %v4887 = vld [vmem:[#allocation3 + $0x2b8] sm:$0xff]
    %v4888 = vld [vmem:[#allocation3 + $0x2c0] sm:$0xff]
    %v4889 = vld [vmem:[#allocation3 + $0x2c8] sm:$0xff]
    %v4890 = vld [vmem:[#allocation3 + $0x2d0] sm:$0xff]
    %v4891 = vld [vmem:[#allocation3 + $0x2d8] sm:$0xff]
    %v4892 = vld [vmem:[#allocation3 + $0x2e0] sm:$0xff]
    %v4893 = vld [vmem:[#allocation3 + $0x2e8] sm:$0xff]
    %v4894 = vld [vmem:[#allocation3 + $0x2f0] sm:$0xff]
    %v4895 = vld [vmem:[#allocation3 + $0x2f8] sm:$0xff]
    %v4896 = vld [vmem:[#allocation3 + $0x300] sm:$0xff]
    %v4897 = vld [vmem:[#allocation3 + $0x308] sm:$0xff]
    %v4898 = vld [vmem:[#allocation3 + $0x310] sm:$0xff]
    %v4899 = vld [vmem:[#allocation3 + $0x318] sm:$0xff]
    %v4900 = vld [vmem:[#allocation3 + $0x320] sm:$0xff]
    %v4901 = vld [vmem:[#allocation3 + $0x328] sm:$0xff]
    %v4902 = vld [vmem:[#allocation3 + $0x330] sm:$0xff]
    %v4903 = vld [vmem:[#allocation3 + $0x338] sm:$0xff]
    %v4904 = vld [vmem:[#allocation3 + $0x340] sm:$0xff]
    %v4905 = vld [vmem:[#allocation3 + $0x348] sm:$0xff]
    %v4906 = vld [vmem:[#allocation3 + $0x350] sm:$0xff]
    %v4907 = vld [vmem:[#allocation3 + $0x358] sm:$0xff]
    %v4908 = vld [vmem:[#allocation3 + $0x360] sm:$0xff]
    %v4909 = vld [vmem:[#allocation3 + $0x368] sm:$0xff]
    %v4910 = vld [vmem:[#allocation3 + $0x370] sm:$0xff]
    %v4911 = vld [vmem:[#allocation3 + $0x378] sm:$0xff]
    %v4912 = vld [vmem:[#allocation3 + $0x380] sm:$0xff]
    %v4913 = vld [vmem:[#allocation3 + $0x388] sm:$0xff]
    %v4914 = vld [vmem:[#allocation3 + $0x390] sm:$0xff]
    %v4915 = vld [vmem:[#allocation3 + $0x398] sm:$0xff]
    %v4916 = vld [vmem:[#allocation3 + $0x3a0] sm:$0xff]
    %v4917 = vld [vmem:[#allocation3 + $0x3a8] sm:$0xff]
    %v4918 = vld [vmem:[#allocation3 + $0x3b0] sm:$0xff]
    %v4919 = vld [vmem:[#allocation3 + $0x3b8] sm:$0xff]
    %v4920 = vld [vmem:[#allocation3 + $0x3c0] sm:$0xff]
    %v4921 = vld [vmem:[#allocation3 + $0x3c8] sm:$0xff]
    %v4922 = vld [vmem:[#allocation3 + $0x3d0] sm:$0xff]
    %v4923 = vld [vmem:[#allocation3 + $0x3d8] sm:$0xff]
    %v4924 = vld [vmem:[#allocation3 + $0x3e0] sm:$0xff]
    %v4925 = vld [vmem:[#allocation3 + $0x3e8] sm:$0xff]
    %v4926 = vld [vmem:[#allocation3 + $0x3f0] sm:$0xff]
    %v4927 = vld [vmem:[#allocation3 + $0x3f8] sm:$0xff]
    %4928 = vmatprep.subr.bf16.mxu0 %v4801
    %4929 = vmatpush1.bf16.msra.mxu0 %v4800
    %4930 = vmatprep.subr.bf16.mxu0 %v4803
    %4931 = vmatpush1.bf16.msra.mxu0 %v4802
    %4932 = vmatprep.subr.bf16.mxu0 %v4805
    %4933 = vmatpush1.bf16.msra.mxu0 %v4804
    %4934 = vmatprep.subr.bf16.mxu0 %v4807
    %4935 = vmatpush1.bf16.msra.mxu0 %v4806
    %4936 = vmatprep.subr.bf16.mxu0 %v4809
    %4937 = vmatpush1.bf16.msra.mxu0 %v4808
    %4938 = vmatprep.subr.bf16.mxu0 %v4811
    %4939 = vmatpush1.bf16.msra.mxu0 %v4810
    %4940 = vmatprep.subr.bf16.mxu0 %v4813
    %4941 = vmatpush1.bf16.msra.mxu0 %v4812
    %4942 = vmatprep.subr.bf16.mxu0 %v4815
    %4943 = vmatpush1.bf16.msra.mxu0 %v4814
    %4944 = vmatprep.subr.bf16.mxu0 %v4817
    %4945 = vmatpush1.bf16.msra.mxu0 %v4816
    %4946 = vmatprep.subr.bf16.mxu0 %v4819
    %4947 = vmatpush1.bf16.msra.mxu0 %v4818
    %4948 = vmatprep.subr.bf16.mxu0 %v4821
    %4949 = vmatpush1.bf16.msra.mxu0 %v4820
    %4950 = vmatprep.subr.bf16.mxu0 %v4823
    %4951 = vmatpush1.bf16.msra.mxu0 %v4822
    %4952 = vmatprep.subr.bf16.mxu0 %v4825
    %4953 = vmatpush1.bf16.msra.mxu0 %v4824
    %4954 = vmatprep.subr.bf16.mxu0 %v4827
    %4955 = vmatpush1.bf16.msra.mxu0 %v4826
    %4956 = vmatprep.subr.bf16.mxu0 %v4829
    %4957 = vmatpush1.bf16.msra.mxu0 %v4828
    %4958 = vmatprep.subr.bf16.mxu0 %v4831
    %4959 = vmatpush1.bf16.msra.mxu0 %v4830
    %4960 = vmatprep.mubr.bf16.mxu0 %v4737
    %4961 = vmatmul.mubr.bf16.gmra.mrb[0].mxu0 %v4736
    %v4962 = vpop.f32.mrb[0].mxu0
    %v4963 = vadd.f32 0.0, %v4962
    %v4964 = vpop.f32.mrb[0].mxu0
    %v4965 = vadd.f32 0.0, %v4964
    %v4966 = vpop.f32.mrb[0].mxu0
    %v4967 = vadd.f32 0.0, %v4966
    %v4968 = vpop.f32.mrb[0].mxu0
    %v4969 = vadd.f32 0.0, %v4968
    %4970 = vmatprep.mubr.bf16.mxu0 %v4745
    %4971 = vmatmul.mubr.bf16.gmra.mrb[0].mxu0 %v4744
    %v4972 = vpop.f32.mrb[0].mxu0
    %v4973 = vadd.f32 0.0, %v4972
    %v4974 = vpop.f32.mrb[0].mxu0
    %v4975 = vadd.f32 0.0, %v4974
    %v4976 = vpop.f32.mrb[0].mxu0
    %v4977 = vadd.f32 0.0, %v4976
    %v4978 = vpop.f32.mrb[0].mxu0
    %v4979 = vadd.f32 0.0, %v4978
    %4980 = vmatprep.mubr.bf16.mxu0 %v4753
    %4981 = vmatmul.mubr.bf16.gmra.mrb[0].mxu0 %v4752
    %v4982 = vpop.f32.mrb[0].mxu0
    %v4983 = vadd.f32 0.0, %v4982
    %v4984 = vpop.f32.mrb[0].mxu0
    %v4985 = vadd.f32 0.0, %v4984
    %v4986 = vpop.f32.mrb[0].mxu0
    %v4987 = vadd.f32 0.0, %v4986
    %v4988 = vpop.f32.mrb[0].mxu0
    %v4989 = vadd.f32 0.0, %v4988
    %4990 = vmatprep.mubr.bf16.mxu0 %v4761
    %4991 = vmatmul.mubr.bf16.gmra.mrb[0].mxu0 %v4760
    %v4992 = vpop.f32.mrb[0].mxu0
    %v4993 = vadd.f32 0.0, %v4992
    %v4994 = vpop.f32.mrb[0].mxu0
    %v4995 = vadd.f32 0.0, %v4994
    %v4996 = vpop.f32.mrb[0].mxu0
    %v4997 = vadd.f32 0.0, %v4996
    %v4998 = vpop.f32.mrb[0].mxu0
    %v4999 = vadd.f32 0.0, %v4998
    %5000 = vmatprep.mubr.bf16.mxu0 %v4769
    %5001 = vmatmul.mubr.bf16.gmra.mrb[0].mxu0 %v4768
    %v5002 = vpop.f32.mrb[0].mxu0
    %v5003 = vadd.f32 0.0, %v5002
    %v5004 = vpop.f32.mrb[0].mxu0
    %v5005 = vadd.f32 0.0, %v5004
    %v5006 = vpop.f32.mrb[0].mxu0
    %v5007 = vadd.f32 0.0, %v5006
    %v5008 = vpop.f32.mrb[0].mxu0
    %v5009 = vadd.f32 0.0, %v5008
    %5010 = vmatprep.mubr.bf16.mxu0 %v4777
    %5011 = vmatmul.mubr.bf16.gmra.mrb[0].mxu0 %v4776
    %v5012 = vpop.f32.mrb[0].mxu0
    %v5013 = vadd.f32 0.0, %v5012
    %v5014 = vpop.f32.mrb[0].mxu0
    %v5015 = vadd.f32 0.0, %v5014
    %v5016 = vpop.f32.mrb[0].mxu0
    %v5017 = vadd.f32 0.0, %v5016
    %v5018 = vpop.f32.mrb[0].mxu0
    %v5019 = vadd.f32 0.0, %v5018
    %5020 = vmatprep.mubr.bf16.mxu0 %v4785
    %5021 = vmatmul.mubr.bf16.gmra.mrb[0].mxu0 %v4784
    %v5022 = vpop.f32.mrb[0].mxu0
    %v5023 = vadd.f32 0.0, %v5022
    %v5024 = vpop.f32.mrb[0].mxu0
    %v5025 = vadd.f32 0.0, %v5024
    %v5026 = vpop.f32.mrb[0].mxu0
    %v5027 = vadd.f32 0.0, %v5026
    %v5028 = vpop.f32.mrb[0].mxu0
    %v5029 = vadd.f32 0.0, %v5028
    %5030 = vmatprep.mubr.bf16.mxu0 %v4793
    %5031 = vmatmul.mubr.bf16.gmra.mrb[0].mxu0 %v4792
    %v5032 = vpop.f32.mrb[0].mxu0
    %v5033 = vadd.f32 0.0, %v5032
    %v5034 = vpop.f32.mrb[0].mxu0
    %v5035 = vadd.f32 0.0, %v5034
    %v5036 = vpop.f32.mrb[0].mxu0
    %v5037 = vadd.f32 0.0, %v5036
    %v5038 = vpop.f32.mrb[0].mxu0
    %v5039 = vadd.f32 0.0, %v5038
    %5040 = vdwg.mxu0
    %5041 = vmatprep.subr.bf16.mxu0 %v4833
    %5042 = vmatpush1.bf16.msra.mxu0 %v4832
    %5043 = vmatprep.subr.bf16.mxu0 %v4835
    %5044 = vmatpush1.bf16.msra.mxu0 %v4834
    %5045 = vmatprep.subr.bf16.mxu0 %v4837
    %5046 = vmatpush1.bf16.msra.mxu0 %v4836
    %5047 = vmatprep.subr.bf16.mxu0 %v4839
    %5048 = vmatpush1.bf16.msra.mxu0 %v4838
    %5049 = vmatprep.subr.bf16.mxu0 %v4841
    %5050 = vmatpush1.bf16.msra.mxu0 %v4840
    %5051 = vmatprep.subr.bf16.mxu0 %v4843
    %5052 = vmatpush1.bf16.msra.mxu0 %v4842
    %5053 = vmatprep.subr.bf16.mxu0 %v4845
    %5054 = vmatpush1.bf16.msra.mxu0 %v4844
    %5055 = vmatprep.subr.bf16.mxu0 %v4847
    %5056 = vmatpush1.bf16.msra.mxu0 %v4846
    %5057 = vmatprep.subr.bf16.mxu0 %v4849
    %5058 = vmatpush1.bf16.msra.mxu0 %v4848
    %5059 = vmatprep.subr.bf16.mxu0 %v4851
    %5060 = vmatpush1.bf16.msra.mxu0 %v4850
    %5061 = vmatprep.subr.bf16.mxu0 %v4853
    %5062 = vmatpush1.bf16.msra.mxu0 %v4852
    %5063 = vmatprep.subr.bf16.mxu0 %v4855
    %5064 = vmatpush1.bf16.msra.mxu0 %v4854
    %5065 = vmatprep.subr.bf16.mxu0 %v4857
    %5066 = vmatpush1.bf16.msra.mxu0 %v4856
    %5067 = vmatprep.subr.bf16.mxu0 %v4859
    %5068 = vmatpush1.bf16.msra.mxu0 %v4858
    %5069 = vmatprep.subr.bf16.mxu0 %v4861
    %5070 = vmatpush1.bf16.msra.mxu0 %v4860
    %5071 = vmatprep.subr.bf16.mxu0 %v4863
    %5072 = vmatpush1.bf16.msra.mxu0 %v4862
    %5073 = vmatprep.mubr.bf16.mxu0 %v4739
    %5074 = vmatmul.mubr.bf16.gmra.mrb[0].mxu0 %v4738
    %v5075 = vpop.f32.mrb[0].mxu0
    %v5076 = vadd.f32 %v4963, %v5075
    %v5077 = vpop.f32.mrb[0].mxu0
    %v5078 = vadd.f32 %v4965, %v5077
    %v5079 = vpop.f32.mrb[0].mxu0
    %v5080 = vadd.f32 %v4967, %v5079
    %v5081 = vpop.f32.mrb[0].mxu0
    %v5082 = vadd.f32 %v4969, %v5081
    %5083 = vmatprep.mubr.bf16.mxu0 %v4747
    %5084 = vmatmul.mubr.bf16.gmra.mrb[0].mxu0 %v4746
    %v5085 = vpop.f32.mrb[0].mxu0
    %v5086 = vadd.f32 %v4973, %v5085
    %v5087 = vpop.f32.mrb[0].mxu0
    %v5088 = vadd.f32 %v4975, %v5087
    %v5089 = vpop.f32.mrb[0].mxu0
    %v5090 = vadd.f32 %v4977, %v5089
    %v5091 = vpop.f32.mrb[0].mxu0
    %v5092 = vadd.f32 %v4979, %v5091
    %5093 = vmatprep.mubr.bf16.mxu0 %v4755
    %5094 = vmatmul.mubr.bf16.gmra.mrb[0].mxu0 %v4754
    %v5095 = vpop.f32.mrb[0].mxu0
    %v5096 = vadd.f32 %v4983, %v5095
    %v5097 = vpop.f32.mrb[0].mxu0
    %v5098 = vadd.f32 %v4985, %v5097
    %v5099 = vpop.f32.mrb[0].mxu0
    %v5100 = vadd.f32 %v4987, %v5099
    %v5101 = vpop.f32.mrb[0].mxu0
    %v5102 = vadd.f32 %v4989, %v5101
    %5103 = vmatprep.mubr.bf16.mxu0 %v4763
    %5104 = vmatmul.mubr.bf16.gmra.mrb[0].mxu0 %v4762
    %v5105 = vpop.f32.mrb[0].mxu0
    %v5106 = vadd.f32 %v4993, %v5105
    %v5107 = vpop.f32.mrb[0].mxu0
    %v5108 = vadd.f32 %v4995, %v5107
    %v5109 = vpop.f32.mrb[0].mxu0
    %v5110 = vadd.f32 %v4997, %v5109
    %v5111 = vpop.f32.mrb[0].mxu0
    %v5112 = vadd.f32 %v4999, %v5111
    %5113 = vmatprep.mubr.bf16.mxu0 %v4771
    %5114 = vmatmul.mubr.bf16.gmra.mrb[0].mxu0 %v4770
    %v5115 = vpop.f32.mrb[0].mxu0
    %v5116 = vadd.f32 %v5003, %v5115
    %v5117 = vpop.f32.mrb[0].mxu0
    %v5118 = vadd.f32 %v5005, %v5117
    %v5119 = vpop.f32.mrb[0].mxu0
    %v5120 = vadd.f32 %v5007, %v5119
    %v5121 = vpop.f32.mrb[0].mxu0
    %v5122 = vadd.f32 %v5009, %v5121
    %5123 = vmatprep.mubr.bf16.mxu0 %v4779
    %5124 = vmatmul.mubr.bf16.gmra.mrb[0].mxu0 %v4778
    %v5125 = vpop.f32.mrb[0].mxu0
    %v5126 = vadd.f32 %v5013, %v5125
    %v5127 = vpop.f32.mrb[0].mxu0
    %v5128 = vadd.f32 %v5015, %v5127
    %v5129 = vpop.f32.mrb[0].mxu0
    %v5130 = vadd.f32 %v5017, %v5129
    %v5131 = vpop.f32.mrb[0].mxu0
    %v5132 = vadd.f32 %v5019, %v5131
    %5133 = vmatprep.mubr.bf16.mxu0 %v4787
    %5134 = vmatmul.mubr.bf16.gmra.mrb[0].mxu0 %v4786
    %v5135 = vpop.f32.mrb[0].mxu0
    %v5136 = vadd.f32 %v5023, %v5135
    %v5137 = vpop.f32.mrb[0].mxu0
    %v5138 = vadd.f32 %v5025, %v5137
    %v5139 = vpop.f32.mrb[0].mxu0
    %v5140 = vadd.f32 %v5027, %v5139
    %v5141 = vpop.f32.mrb[0].mxu0
    %v5142 = vadd.f32 %v5029, %v5141
    %5143 = vmatprep.mubr.bf16.mxu0 %v4795
    %5144 = vmatmul.mubr.bf16.gmra.mrb[0].mxu0 %v4794
    %v5145 = vpop.f32.mrb[0].mxu0
    %v5146 = vadd.f32 %v5033, %v5145
    %v5147 = vpop.f32.mrb[0].mxu0
    %v5148 = vadd.f32 %v5035, %v5147
    %v5149 = vpop.f32.mrb[0].mxu0
    %v5150 = vadd.f32 %v5037, %v5149
    %v5151 = vpop.f32.mrb[0].mxu0
    %v5152 = vadd.f32 %v5039, %v5151
    %5153 = vdwg.mxu0
    %5154 = vmatprep.subr.bf16.mxu0 %v4865
    %5155 = vmatpush1.bf16.msra.mxu0 %v4864
    %5156 = vmatprep.subr.bf16.mxu0 %v4867
    %5157 = vmatpush1.bf16.msra.mxu0 %v4866
    %5158 = vmatprep.subr.bf16.mxu0 %v4869
    %5159 = vmatpush1.bf16.msra.mxu0 %v4868
    %5160 = vmatprep.subr.bf16.mxu0 %v4871
    %5161 = vmatpush1.bf16.msra.mxu0 %v4870
    %5162 = vmatprep.subr.bf16.mxu0 %v4873
    %5163 = vmatpush1.bf16.msra.mxu0 %v4872
    %5164 = vmatprep.subr.bf16.mxu0 %v4875
    %5165 = vmatpush1.bf16.msra.mxu0 %v4874
    %5166 = vmatprep.subr.bf16.mxu0 %v4877
    %5167 = vmatpush1.bf16.msra.mxu0 %v4876
    %5168 = vmatprep.subr.bf16.mxu0 %v4879
    %5169 = vmatpush1.bf16.msra.mxu0 %v4878
    %5170 = vmatprep.subr.bf16.mxu0 %v4881
    %5171 = vmatpush1.bf16.msra.mxu0 %v4880
    %5172 = vmatprep.subr.bf16.mxu0 %v4883
    %5173 = vmatpush1.bf16.msra.mxu0 %v4882
    %5174 = vmatprep.subr.bf16.mxu0 %v4885
    %5175 = vmatpush1.bf16.msra.mxu0 %v4884
    %5176 = vmatprep.subr.bf16.mxu0 %v4887
    %5177 = vmatpush1.bf16.msra.mxu0 %v4886
    %5178 = vmatprep.subr.bf16.mxu0 %v4889
    %5179 = vmatpush1.bf16.msra.mxu0 %v4888
    %5180 = vmatprep.subr.bf16.mxu0 %v4891
    %5181 = vmatpush1.bf16.msra.mxu0 %v4890
    %5182 = vmatprep.subr.bf16.mxu0 %v4893
    %5183 = vmatpush1.bf16.msra.mxu0 %v4892
    %5184 = vmatprep.subr.bf16.mxu0 %v4895
    %5185 = vmatpush1.bf16.msra.mxu0 %v4894
    %5186 = vmatprep.mubr.bf16.mxu0 %v4741
    %5187 = vmatmul.mubr.bf16.gmra.mrb[0].mxu0 %v4740
    %v5188 = vpop.f32.mrb[0].mxu0
    %v5189 = vadd.f32 %v5076, %v5188
    %v5190 = vpop.f32.mrb[0].mxu0
    %v5191 = vadd.f32 %v5078, %v5190
    %v5192 = vpop.f32.mrb[0].mxu0
    %v5193 = vadd.f32 %v5080, %v5192
    %v5194 = vpop.f32.mrb[0].mxu0
    %v5195 = vadd.f32 %v5082, %v5194
    %5196 = vmatprep.mubr.bf16.mxu0 %v4749
    %5197 = vmatmul.mubr.bf16.gmra.mrb[0].mxu0 %v4748
    %v5198 = vpop.f32.mrb[0].mxu0
    %v5199 = vadd.f32 %v5086, %v5198
    %v5200 = vpop.f32.mrb[0].mxu0
    %v5201 = vadd.f32 %v5088, %v5200
    %v5202 = vpop.f32.mrb[0].mxu0
    %v5203 = vadd.f32 %v5090, %v5202
    %v5204 = vpop.f32.mrb[0].mxu0
    %v5205 = vadd.f32 %v5092, %v5204
    %5206 = vmatprep.mubr.bf16.mxu0 %v4757
    %5207 = vmatmul.mubr.bf16.gmra.mrb[0].mxu0 %v4756
    %v5208 = vpop.f32.mrb[0].mxu0
    %v5209 = vadd.f32 %v5096, %v5208
    %v5210 = vpop.f32.mrb[0].mxu0
    %v5211 = vadd.f32 %v5098, %v5210
    %v5212 = vpop.f32.mrb[0].mxu0
    %v5213 = vadd.f32 %v5100, %v5212
    %v5214 = vpop.f32.mrb[0].mxu0
    %v5215 = vadd.f32 %v5102, %v5214
    %5216 = vmatprep.mubr.bf16.mxu0 %v4765
    %5217 = vmatmul.mubr.bf16.gmra.mrb[0].mxu0 %v4764
    %v5218 = vpop.f32.mrb[0].mxu0
    %v5219 = vadd.f32 %v5106, %v5218
    %v5220 = vpop.f32.mrb[0].mxu0
    %v5221 = vadd.f32 %v5108, %v5220
    %v5222 = vpop.f32.mrb[0].mxu0
    %v5223 = vadd.f32 %v5110, %v5222
    %v5224 = vpop.f32.mrb[0].mxu0
    %v5225 = vadd.f32 %v5112, %v5224
    %5226 = vmatprep.mubr.bf16.mxu0 %v4773
    %5227 = vmatmul.mubr.bf16.gmra.mrb[0].mxu0 %v4772
    %v5228 = vpop.f32.mrb[0].mxu0
    %v5229 = vadd.f32 %v5116, %v5228
    %v5230 = vpop.f32.mrb[0].mxu0
    %v5231 = vadd.f32 %v5118, %v5230
    %v5232 = vpop.f32.mrb[0].mxu0
    %v5233 = vadd.f32 %v5120, %v5232
    %v5234 = vpop.f32.mrb[0].mxu0
    %v5235 = vadd.f32 %v5122, %v5234
    %5236 = vmatprep.mubr.bf16.mxu0 %v4781
    %5237 = vmatmul.mubr.bf16.gmra.mrb[0].mxu0 %v4780
    %v5238 = vpop.f32.mrb[0].mxu0
    %v5239 = vadd.f32 %v5126, %v5238
    %v5240 = vpop.f32.mrb[0].mxu0
    %v5241 = vadd.f32 %v5128, %v5240
    %v5242 = vpop.f32.mrb[0].mxu0
    %v5243 = vadd.f32 %v5130, %v5242
    %v5244 = vpop.f32.mrb[0].mxu0
    %v5245 = vadd.f32 %v5132, %v5244
    %5246 = vmatprep.mubr.bf16.mxu0 %v4789
    %5247 = vmatmul.mubr.bf16.gmra.mrb[0].mxu0 %v4788
    %v5248 = vpop.f32.mrb[0].mxu0
    %v5249 = vadd.f32 %v5136, %v5248
    %v5250 = vpop.f32.mrb[0].mxu0
    %v5251 = vadd.f32 %v5138, %v5250
    %v5252 = vpop.f32.mrb[0].mxu0
    %v5253 = vadd.f32 %v5140, %v5252
    %v5254 = vpop.f32.mrb[0].mxu0
    %v5255 = vadd.f32 %v5142, %v5254
    %5256 = vmatprep.mubr.bf16.mxu0 %v4797
    %5257 = vmatmul.mubr.bf16.gmra.mrb[0].mxu0 %v4796
    %v5258 = vpop.f32.mrb[0].mxu0
    %v5259 = vadd.f32 %v5146, %v5258
    %v5260 = vpop.f32.mrb[0].mxu0
    %v5261 = vadd.f32 %v5148, %v5260
    %v5262 = vpop.f32.mrb[0].mxu0
    %v5263 = vadd.f32 %v5150, %v5262
    %v5264 = vpop.f32.mrb[0].mxu0
    %v5265 = vadd.f32 %v5152, %v5264
    %5266 = vdwg.mxu0
    %5267 = vmatprep.subr.bf16.mxu0 %v4897
    %5268 = vmatpush1.bf16.msra.mxu0 %v4896
    %5269 = vmatprep.subr.bf16.mxu0 %v4899
    %5270 = vmatpush1.bf16.msra.mxu0 %v4898
    %5271 = vmatprep.subr.bf16.mxu0 %v4901
    %5272 = vmatpush1.bf16.msra.mxu0 %v4900
    %5273 = vmatprep.subr.bf16.mxu0 %v4903
    %5274 = vmatpush1.bf16.msra.mxu0 %v4902
    %5275 = vmatprep.subr.bf16.mxu0 %v4905
    %5276 = vmatpush1.bf16.msra.mxu0 %v4904
    %5277 = vmatprep.subr.bf16.mxu0 %v4907
    %5278 = vmatpush1.bf16.msra.mxu0 %v4906
    %5279 = vmatprep.subr.bf16.mxu0 %v4909
    %5280 = vmatpush1.bf16.msra.mxu0 %v4908
    %5281 = vmatprep.subr.bf16.mxu0 %v4911
    %5282 = vmatpush1.bf16.msra.mxu0 %v4910
    %5283 = vmatprep.subr.bf16.mxu0 %v4913
    %5284 = vmatpush1.bf16.msra.mxu0 %v4912
    %5285 = vmatprep.subr.bf16.mxu0 %v4915
    %5286 = vmatpush1.bf16.msra.mxu0 %v4914
    %5287 = vmatprep.subr.bf16.mxu0 %v4917
    %5288 = vmatpush1.bf16.msra.mxu0 %v4916
    %5289 = vmatprep.subr.bf16.mxu0 %v4919
    %5290 = vmatpush1.bf16.msra.mxu0 %v4918
    %5291 = vmatprep.subr.bf16.mxu0 %v4921
    %5292 = vmatpush1.bf16.msra.mxu0 %v4920
    %5293 = vmatprep.subr.bf16.mxu0 %v4923
    %5294 = vmatpush1.bf16.msra.mxu0 %v4922
    %5295 = vmatprep.subr.bf16.mxu0 %v4925
    %5296 = vmatpush1.bf16.msra.mxu0 %v4924
    %5297 = vmatprep.subr.bf16.mxu0 %v4927
    %5298 = vmatpush1.bf16.msra.mxu0 %v4926
    %5299 = vmatprep.mubr.bf16.mxu0 %v4743
    %5300 = vmatmul.mubr.bf16.gmra.mrb[0].mxu0 %v4742
    %v5301 = vpop.f32.mrb[0].mxu0
    %v5302 = vadd.f32 %v5189, %v5301
    %v5303 = vpop.f32.mrb[0].mxu0
    %v5304 = vadd.f32 %v5191, %v5303
    %v5305 = vpop.f32.mrb[0].mxu0
    %v5306 = vadd.f32 %v5193, %v5305
    %v5307 = vpop.f32.mrb[0].mxu0
    %v5308 = vadd.f32 %v5195, %v5307
    %5309 = vmatprep.mubr.bf16.mxu0 %v4751
    %5310 = vmatmul.mubr.bf16.gmra.mrb[0].mxu0 %v4750
    %v5311 = vpop.f32.mrb[0].mxu0
    %v5312 = vadd.f32 %v5199, %v5311
    %v5313 = vpop.f32.mrb[0].mxu0
    %v5314 = vadd.f32 %v5201, %v5313
    %v5315 = vpop.f32.mrb[0].mxu0
    %v5316 = vadd.f32 %v5203, %v5315
    %v5317 = vpop.f32.mrb[0].mxu0
    %v5318 = vadd.f32 %v5205, %v5317
    %5319 = vmatprep.mubr.bf16.mxu0 %v4759
    %5320 = vmatmul.mubr.bf16.gmra.mrb[0].mxu0 %v4758
    %v5321 = vpop.f32.mrb[0].mxu0
    %v5322 = vadd.f32 %v5209, %v5321
    %v5323 = vpop.f32.mrb[0].mxu0
    %v5324 = vadd.f32 %v5211, %v5323
    %v5325 = vpop.f32.mrb[0].mxu0
    %v5326 = vadd.f32 %v5213, %v5325
    %v5327 = vpop.f32.mrb[0].mxu0
    %v5328 = vadd.f32 %v5215, %v5327
    %5329 = vmatprep.mubr.bf16.mxu0 %v4767
    %5330 = vmatmul.mubr.bf16.gmra.mrb[0].mxu0 %v4766
    %v5331 = vpop.f32.mrb[0].mxu0
    %v5332 = vadd.f32 %v5219, %v5331
    %v5333 = vpop.f32.mrb[0].mxu0
    %v5334 = vadd.f32 %v5221, %v5333
    %v5335 = vpop.f32.mrb[0].mxu0
    %v5336 = vadd.f32 %v5223, %v5335
    %v5337 = vpop.f32.mrb[0].mxu0
    %v5338 = vadd.f32 %v5225, %v5337
    %5339 = vmatprep.mubr.bf16.mxu0 %v4775
    %5340 = vmatmul.mubr.bf16.gmra.mrb[0].mxu0 %v4774
    %v5341 = vpop.f32.mrb[0].mxu0
    %v5342 = vadd.f32 %v5229, %v5341
    %v5343 = vpop.f32.mrb[0].mxu0
    %v5344 = vadd.f32 %v5231, %v5343
    %v5345 = vpop.f32.mrb[0].mxu0
    %v5346 = vadd.f32 %v5233, %v5345
    %v5347 = vpop.f32.mrb[0].mxu0
    %v5348 = vadd.f32 %v5235, %v5347
    %5349 = vmatprep.mubr.bf16.mxu0 %v4783
    %5350 = vmatmul.mubr.bf16.gmra.mrb[0].mxu0 %v4782
    %v5351 = vpop.f32.mrb[0].mxu0
    %v5352 = vadd.f32 %v5239, %v5351
    %v5353 = vpop.f32.mrb[0].mxu0
    %v5354 = vadd.f32 %v5241, %v5353
    %v5355 = vpop.f32.mrb[0].mxu0
    %v5356 = vadd.f32 %v5243, %v5355
    %v5357 = vpop.f32.mrb[0].mxu0
    %v5358 = vadd.f32 %v5245, %v5357
    %5359 = vmatprep.mubr.bf16.mxu0 %v4791
    %5360 = vmatmul.mubr.bf16.gmra.mrb[0].mxu0 %v4790
    %v5361 = vpop.f32.mrb[0].mxu0
    %v5362 = vadd.f32 %v5249, %v5361
    %v5363 = vpop.f32.mrb[0].mxu0
    %v5364 = vadd.f32 %v5251, %v5363
    %v5365 = vpop.f32.mrb[0].mxu0
    %v5366 = vadd.f32 %v5253, %v5365
    %v5367 = vpop.f32.mrb[0].mxu0
    %v5368 = vadd.f32 %v5255, %v5367
    %5369 = vmatprep.mubr.bf16.mxu0 %v4799
    %5370 = vmatmul.mubr.bf16.gmra.mrb[0].mxu0 %v4798
    %v5371 = vpop.f32.mrb[0].mxu0
    %v5372 = vadd.f32 %v5259, %v5371
    %v5373 = vpop.f32.mrb[0].mxu0
    %v5374 = vadd.f32 %v5261, %v5373
    %v5375 = vpop.f32.mrb[0].mxu0
    %v5376 = vadd.f32 %v5263, %v5375
    %v5377 = vpop.f32.mrb[0].mxu0
    %v5378 = vadd.f32 %v5265, %v5377
    %5379 = vdwg.mxu0
    %v5380 = vadd.f32 %v3684, %v5302
    %v5381 = vadd.f32 %v3685, %v5304
    %v5382 = vadd.f32 %v3686, %v5306
    %v5383 = vadd.f32 %v3687, %v5308
    %v5384 = vadd.f32 %v3688, %v5312
    %v5385 = vadd.f32 %v3689, %v5314
    %v5386 = vadd.f32 %v3690, %v5316
    %v5387 = vadd.f32 %v3691, %v5318
    %v5388 = vadd.f32 %v3692, %v5322
    %v5389 = vadd.f32 %v3693, %v5324
    %v5390 = vadd.f32 %v3694, %v5326
    %v5391 = vadd.f32 %v3695, %v5328
    %v5392 = vadd.f32 %v3696, %v5332
    %v5393 = vadd.f32 %v3697, %v5334
    %v5394 = vadd.f32 %v3698, %v5336
    %v5395 = vadd.f32 %v3699, %v5338
    %v5396 = vadd.f32 %v3700, %v5342
    %v5397 = vadd.f32 %v3701, %v5344
    %v5398 = vadd.f32 %v3702, %v5346
    %v5399 = vadd.f32 %v3703, %v5348
    %v5400 = vadd.f32 %v3704, %v5352
    %v5401 = vadd.f32 %v3705, %v5354
    %v5402 = vadd.f32 %v3706, %v5356
    %v5403 = vadd.f32 %v3707, %v5358
    %v5404 = vadd.f32 %v3708, %v5362
    %v5405 = vadd.f32 %v3709, %v5364
    %v5406 = vadd.f32 %v3710, %v5366
    %v5407 = vadd.f32 %v3711, %v5368
    %v5408 = vadd.f32 %v3712, %v5372
    %v5409 = vadd.f32 %v3713, %v5374
    %v5410 = vadd.f32 %v3714, %v5376
    %v5411 = vadd.f32 %v3715, %v5378
    %5412 = vst [vmem:[#allocation23] sm:$0xff] %v5380
    %5413 = vst [vmem:[#allocation23 + $0x8] sm:$0xff] %v5381
    %5414 = vst [vmem:[#allocation23 + $0x10] sm:$0xff] %v5382
    %5415 = vst [vmem:[#allocation23 + $0x18] sm:$0xff] %v5383
    %5416 = vst [vmem:[#allocation23 + $0x20] sm:$0xff] %v5384
    %5417 = vst [vmem:[#allocation23 + $0x28] sm:$0xff] %v5385
    %5418 = vst [vmem:[#allocation23 + $0x30] sm:$0xff] %v5386
    %5419 = vst [vmem:[#allocation23 + $0x38] sm:$0xff] %v5387
    %5420 = vst [vmem:[#allocation23 + $0x40] sm:$0xff] %v5388
    %5421 = vst [vmem:[#allocation23 + $0x48] sm:$0xff] %v5389
    %5422 = vst [vmem:[#allocation23 + $0x50] sm:$0xff] %v5390
    %5423 = vst [vmem:[#allocation23 + $0x58] sm:$0xff] %v5391
    %5424 = vst [vmem:[#allocation23 + $0x60] sm:$0xff] %v5392
    %5425 = vst [vmem:[#allocation23 + $0x68] sm:$0xff] %v5393
    %5426 = vst [vmem:[#allocation23 + $0x70] sm:$0xff] %v5394
    %5427 = vst [vmem:[#allocation23 + $0x78] sm:$0xff] %v5395
    %5428 = vst [vmem:[#allocation23 + $0x80] sm:$0xff] %v5396
    %5429 = vst [vmem:[#allocation23 + $0x88] sm:$0xff] %v5397
    %5430 = vst [vmem:[#allocation23 + $0x90] sm:$0xff] %v5398
    %5431 = vst [vmem:[#allocation23 + $0x98] sm:$0xff] %v5399
    %5432 = vst [vmem:[#allocation23 + $0xa0] sm:$0xff] %v5400
    %5433 = vst [vmem:[#allocation23 + $0xa8] sm:$0xff] %v5401
    %5434 = vst [vmem:[#allocation23 + $0xb0] sm:$0xff] %v5402
    %5435 = vst [vmem:[#allocation23 + $0xb8] sm:$0xff] %v5403
    %5436 = vst [vmem:[#allocation23 + $0xc0] sm:$0xff] %v5404
    %5437 = vst [vmem:[#allocation23 + $0xc8] sm:$0xff] %v5405
    %5438 = vst [vmem:[#allocation23 + $0xd0] sm:$0xff] %v5406
    %5439 = vst [vmem:[#allocation23 + $0xd8] sm:$0xff] %v5407
    %5440 = vst [vmem:[#allocation23 + $0xe0] sm:$0xff] %v5408
    %5441 = vst [vmem:[#allocation23 + $0xe8] sm:$0xff] %v5409
    %5442 = vst [vmem:[#allocation23 + $0xf0] sm:$0xff] %v5410
    %5443 = vst [vmem:[#allocation23 + $0xf8] sm:$0xff] %v5411
    // Predicated region
    $region82: #{tpu_custom_call.1} parent=1 // pred_check
      _
    $region83: #{tpu_custom_call.1} parent=1 // pred_check_branch
      %5445 = sbr.rel (0) target = $region85
    $region84: #{tpu_custom_call.1} parent=1 // pred_region
      %s5447 = ssub.s32 4096, 4096
      %5448 = vsyncadd [#allocation7], %s5447
      %s5449 = sshll.u32 [#allocation23], 4
      %s5450 = int_to_ptr.vmem [resolvable:$true] %s5449
      %5455 = dma.vmem_to_hbm [thread:$0]  %s5450, 4096, %s12, [#allocation7], 256, 256, 16
    $region85: #{tpu_custom_call.1} parent=1 // pred_fallthru
      _
    // Predicated region
    $region86: #{tpu_custom_call.1} parent=1 // pred_check
      _
    $region87: #{tpu_custom_call.1} parent=1 // pred_check_branch
      %5457 = sbr.rel (0) target = $region89
    $region88: #{tpu_custom_call.1} parent=1 // pred_region
      %5458 = dma.done [#allocation7], 4096
    $region89: #{tpu_custom_call.1} parent=1 // pred_fallthru
      _
    %5459 = vsyncpa [#allocation6], 1
    %5460 = vsyncpa [#allocation13], 1
    %5461 = vsyncpa [#allocation16], 1
    %5462 = vsyncpa [#allocation19], 1
    %5463 = vsyncpa [#allocation22], 1
    %5464 = vsyncpa [#allocation7], 1
    %5465 = vsyncpa [#allocation8], 1
    %5466 = vsyncpa [#allocation9], 1
  %5467 = vsyncmov [#allocation4]
  %s5468 = vpop.sfrf %5467
  %p5469 = scmp.eq.s32.totalorder %s5468, 0
  %p5470 = pneg %p5469
  %5472 = shalt.err (%p5470)
  %s5473 = scalar_lea.sflag [#allocation4], 1
  %5474 = vsyncmov %s5473
  %s5475 = vpop.sfrf %5474
  %p5476 = scmp.eq.s32.totalorder %s5475, 0
  %p5477 = pneg %p5476
  %5479 = shalt.err (%p5477)

</llo_original>
